<compile_context>
chip_gen: v7x
topology: tpu7x:2x2x1
jax: 0.10.0
libtpu: 0.0.40
codegen_flags: <defaults>
</compile_context>

<pallas_src>
import functools

import jax
import jax.numpy as jnp
from jax.experimental import pallas as pl
from jax.experimental.pallas import tpu as pltpu


# ----------------------------------------------------------------------------
# Fused Pallas kernel: num_layers x LSTM + Linear head, single invocation
# ----------------------------------------------------------------------------
def _fused_lstm_kernel(*refs, T, Bp, H, num_layers):
    """Fused multi-layer LSTM + Linear head.

    refs layout:
      refs[0]             : x2d      (T*Bp, D)  time-major, batch padded to Bp
      refs[1 + 3*l + 0]   : w_ih[l]  (D_in, 4H) pre-transposed, i/f/o cols * 0.5
      refs[1 + 3*l + 1]   : w_hh[l]  (H, 4H)    pre-transposed, i/f/o cols * 0.5
      refs[1 + 3*l + 2]   : b[l]     (1, 4H)    b_ih + b_hh,    i/f/o cols * 0.5
      refs[1 + 3*L]       : w_lin    (1, H)     head weight (torch layout)
      refs[2 + 3*L]       : b_lin    (1, 1)     head bias
      refs[3 + 3*L]       : out      (Bp, 1)    output (padded rows are garbage)
      refs[4 + 3*L]       : gx_a     (T*Bp, 4H) VMEM scratch (gate projections)
      refs[5 + 3*L]       : gx_b     (T*Bp, 4H) VMEM scratch (ping-pong buffer)
    """
    x_ref = refs[0]
    w_lin_ref = refs[1 + 3 * num_layers]
    b_lin_ref = refs[2 + 3 * num_layers]
    out_ref = refs[3 + 3 * num_layers]
    gx_bufs = (refs[4 + 3 * num_layers], refs[5 + 3 * num_layers])

    f32 = jnp.float32

    # ---- Layer 0 hoisted input projection: one (T*Bp, D) x (D, 4H) MXU matmul.
    gx_bufs[0][...] = (
        jnp.dot(x_ref[...], refs[1][...], preferred_element_type=f32)
        + refs[3][...]
    )

    h_last = None
    for layer in range(num_layers):
        w_hh = refs[2 + 3 * layer][...]          # (H, 4H), hoisted weight load
        gx_cur = gx_bufs[layer % 2]
        has_next = layer + 1 < num_layers
        gx_next = w_ih_next = b_next = None
        if has_next:
            gx_next = gx_bufs[(layer + 1) % 2]
            w_ih_next = refs[1 + 3 * (layer + 1)][...]   # (H, 4H)
            b_next = refs[3 + 3 * (layer + 1)][...]      # (1, 4H)

        def step(t, carry):
            h, c = carry
            row = pl.multiple_of(t * Bp, Bp)     # 8-sublane-aligned slab start
            # Only the recurrent term stays on the serial dependency chain.
            gates = gx_cur[pl.ds(row, Bp), :] + jnp.dot(
                h, w_hh, preferred_element_type=f32
            )                                    # (Bp, 4H) = full (8,128) tile
            # Single EUP push over all 4H columns.  i/f/o columns were
            # pre-scaled by 0.5, so sigmoid(z) == 0.5 * tanh(z/2) + 0.5.
            act = jnp.tanh(gates)
            if_g = act[:, : 2 * H] * 0.5 + 0.5   # i and f together (VPU)
            i_g = if_g[:, :H]
            f_g = if_g[:, H:]
            g_g = act[:, 2 * H: 3 * H]
            o_g = act[:, 3 * H:] * 0.5 + 0.5
            c_new = f_g * c + i_g * g_g
            h_new = o_g * jnp.tanh(c_new)
            if has_next:
                # Overlap next layer's input projection with this layer's
                # recurrence; result only needed after this layer finishes.
                gx_next[pl.ds(row, Bp), :] = (
                    jnp.dot(h_new, w_ih_next, preferred_element_type=f32)
                    + b_next
                )
            return (h_new, c_new)

        h0 = jnp.zeros((Bp, H), f32)
        c0 = jnp.zeros((Bp, H), f32)
        h_last, _ = jax.lax.fori_loop(0, T, step, (h0, c0), unroll=min(T, 8))

    # Linear(H, 1) head on the final hidden state: lane-reduction, same kernel.
    out_ref[...] = (
        jnp.sum(h_last * w_lin_ref[...], axis=1, keepdims=True) + b_lin_ref[...]
    ).astype(out_ref.dtype)


# ----------------------------------------------------------------------------
# Wrapper
# ----------------------------------------------------------------------------
@functools.partial(jax.jit, static_argnames=("time_major",))
def lstm_model_forward(x, params, *, time_major=False):
    """Forward of LSTMModel.

    x: (B, T, D) batch-first (default), (T, B, D) if time_major=True, or the
    PyTorch unbatched (T, D) case.  `params` must come from prepare_params().
    Returns (B, 1) (or (1,) for unbatched input).
    """
    squeeze_batch = x.ndim == 2
    if squeeze_batch:
        x_tbd = x.astype(jnp.float32)[:, None, :]            # (T, 1, D)
    elif time_major:
        x_tbd = x.astype(jnp.float32)                         # (T, B, D)
    else:
        x_tbd = jnp.transpose(x, (1, 0, 2)).astype(jnp.float32)

    T, B, D = x_tbd.shape
    H = params["lstm"][0]["w_hh"].shape[0]
    num_layers = len(params["lstm"])

    # Pad the batch/sublane dim to a multiple of 8 so every per-t slab of the
    # gate scratch is a whole aligned (8, 4H) tile.
    Bp = max(8, -(-B // 8) * 8)
    x_pad = jnp.pad(x_tbd, ((0, 0), (0, Bp - B), (0, 0)))
    x2d = x_pad.reshape(T * Bp, D)

    args = [x2d]
    for layer in params["lstm"]:
        args += [layer["w_ih"], layer["w_hh"], layer["b"]]
    args += [params["linear"]["w"], params["linear"]["b"]]

    # Explicit VMEM budget (v5e default scoped = 16 MiB, v7x physical = 64 MiB).
    scratch_bytes = 2 * T * Bp * 4 * H * 4
    io_bytes = sum(int(a.size) * 4 for a in args) + Bp * 4
    vmem_limit = int(min(max(2 * (scratch_bytes + io_bytes) + (2 << 20),
                             16 << 20), 64 << 20))

    vmem = pl.BlockSpec(memory_space=pltpu.MemorySpace.VMEM)
    kernel = functools.partial(
        _fused_lstm_kernel, T=T, Bp=Bp, H=H, num_layers=num_layers
    )

    out = pl.pallas_call(
        kernel,
        out_shape=jax.ShapeDtypeStruct((Bp, 1), jnp.float32),
        in_specs=[vmem] * len(args),
        out_specs=vmem,
        scratch_shapes=[
            pltpu.VMEM((T * Bp, 4 * H), jnp.float32),  # gate projections (cur)
            pltpu.VMEM((T * Bp, 4 * H), jnp.float32),  # gate projections (next)
        ],
        compiler_params=pltpu.CompilerParams(vmem_limit_bytes=vmem_limit),
    )(*args)

    out = out[:B]
    return out[0] if squeeze_batch else out


# ----------------------------------------------------------------------------
# Parameter init (PyTorch-style, pre-transposed) + one-time kernel fold
# ----------------------------------------------------------------------------
def init_params(key, input_dim, hidden_dim, num_layers):
    bound = 1.0 / jnp.sqrt(jnp.float32(hidden_dim))
    params = {"lstm": [], "linear": {}}
    for layer in range(num_layers):
        d_in = input_dim if layer == 0 else hidden_dim
        key, k1, k2, k3, k4 = jax.random.split(key, 5)
        # torch weight_ih: (4H, D) -> stored transposed (D, 4H); gate order i,f,g,o
        w_ih = jax.random.uniform(k1, (d_in, 4 * hidden_dim), jnp.float32, -bound, bound)
        w_hh = jax.random.uniform(k2, (hidden_dim, 4 * hidden_dim), jnp.float32, -bound, bound)
        b_ih = jax.random.uniform(k3, (4 * hidden_dim,), jnp.float32, -bound, bound)
        b_hh = jax.random.uniform(k4, (4 * hidden_dim,), jnp.float32, -bound, bound)
        params["lstm"].append(
            {"w_ih": w_ih, "w_hh": w_hh, "b": (b_ih + b_hh)[None, :]}
        )
    key, k1, k2 = jax.random.split(key, 3)
    # torch nn.Linear(hidden, 1).weight has shape (1, hidden) — keep that layout
    params["linear"]["w"] = jax.random.uniform(k1, (1, hidden_dim), jnp.float32, -bound, bound)
    params["linear"]["b"] = jax.random.uniform(k2, (1, 1), jnp.float32, -bound, bound)
    return params


def prepare_params(params):
    """One-time (free) fold: scale the i/f/o gate columns of w_ih, w_hh and the
    combined bias by 0.5 so the kernel can use a single tanh for all gates
    (sigmoid(z) = 0.5 * tanh(z/2) + 0.5).  The g columns are untouched."""
    H = params["lstm"][0]["w_hh"].shape[0]
    col_scale = jnp.concatenate([
        jnp.full((2 * H,), 0.5, jnp.float32),   # i, f
        jnp.ones((H,), jnp.float32),            # g
        jnp.full((H,), 0.5, jnp.float32),       # o
    ])
    prepped = {"lstm": [], "linear": dict(params["linear"])}
    for layer in params["lstm"]:
        prepped["lstm"].append({
            "w_ih": layer["w_ih"] * col_scale,
            "w_hh": layer["w_hh"] * col_scale,
            "b": layer["b"] * col_scale,
        })
    return prepped


# ----------------------------------------------------------------------------
# Pure-JAX reference (uses the UNscaled params, standard sigmoid/tanh gates)
# ----------------------------------------------------------------------------
def lstm_model_reference(x, params):
    x_tbd = jnp.transpose(x, (1, 0, 2)).astype(jnp.float32)  # (T, B, D)
    h_seq = x_tbd
    for layer in params["lstm"]:
        H = layer["w_hh"].shape[0]
        B = h_seq.shape[1]

        def step(carry, x_t, layer=layer, H=H):
            h, c = carry
            gates = x_t @ layer["w_ih"] + h @ layer["w_hh"] + layer["b"]
            i = jax.nn.sigmoid(gates[:, 0 * H:1 * H])
            f = jax.nn.sigmoid(gates[:, 1 * H:2 * H])
            g = jnp.tanh(gates[:, 2 * H:3 * H])
            o = jax.nn.sigmoid(gates[:, 3 * H:4 * H])
            c = f * c + i * g
            h = o * jnp.tanh(c)
            return (h, c), h

        init = (jnp.zeros((B, H), jnp.float32), jnp.zeros((B, H), jnp.float32))
        _, h_seq = jax.lax.scan(step, init, h_seq)
    h_last = h_seq[-1]
    return h_last @ params["linear"]["w"].T + params["linear"]["b"]


# ----------------------------------------------------------------------------
if __name__ == "__main__":
    B, T, INPUT_DIM, HIDDEN_DIM, NUM_LAYERS = 2, 8, 4, 32, 2

    key = jax.random.PRNGKey(0)
    key, xk, pk = jax.random.split(key, 3)
    x = jax.random.normal(xk, (B, T, INPUT_DIM), jnp.float32)
    params = init_params(pk, INPUT_DIM, HIDDEN_DIM, NUM_LAYERS)
    kparams = prepare_params(params)   # one-time sigmoid->tanh column fold

    # Batched (batch_first) path
    out = lstm_model_forward(x, kparams)
    out = jax.block_until_ready(out)
    ref = lstm_model_reference(x, params)
    assert out.shape == (B, 1), out.shape
    assert jnp.allclose(out, ref, atol=1e-5, rtol=1e-5), (out, ref)

    # Unbatched (T, D) path from the PyTorch forward()
    out2 = jax.block_until_ready(lstm_model_forward(x[0], kparams))
    ref2 = lstm_model_reference(x[:1], params)[0]
    assert out2.shape == (1,), out2.shape
    assert jnp.allclose(out2, ref2, atol=1e-5, rtol=1e-5), (out2, ref2)

    print("KERNEL_OK")
</pallas_src>

<mosaic_0001>
module attributes {stable_mosaic.version = 11 : i64} {
  func.func @_fused_lstm_kernel(%arg0: memref<64x4xf32, #tpu.memory_space<vmem>>, %arg1: memref<4x128xf32, #tpu.memory_space<vmem>>, %arg2: memref<32x128xf32, #tpu.memory_space<vmem>>, %arg3: memref<1x128xf32, #tpu.memory_space<vmem>>, %arg4: memref<32x128xf32, #tpu.memory_space<vmem>>, %arg5: memref<32x128xf32, #tpu.memory_space<vmem>>, %arg6: memref<1x128xf32, #tpu.memory_space<vmem>>, %arg7: memref<1x32xf32, #tpu.memory_space<vmem>>, %arg8: memref<1x1xf32, #tpu.memory_space<vmem>>, %arg9: memref<8x1xf32, #tpu.memory_space<vmem>>, %arg10: memref<64x128xf32, #tpu.memory_space<vmem>>, %arg11: memref<64x128xf32, #tpu.memory_space<vmem>>) attributes {dimension_semantics = [], scalar_prefetch = 0 : i64, scratch_operands = 2 : i64, tpu.core_type = #tpu.core_type<tc>} {
    %c0 = arith.constant 0 : index
    %c0_0 = arith.constant 0 : index
    %0 = vector.load %arg0[%c0, %c0_0] : memref<64x4xf32, #tpu.memory_space<vmem>>, vector<64x4xf32>
    %c0_1 = arith.constant 0 : index
    %c0_2 = arith.constant 0 : index
    %1 = vector.load %arg1[%c0_1, %c0_2] : memref<4x128xf32, #tpu.memory_space<vmem>>, vector<4x128xf32>
    %cst = arith.constant dense<0.000000e+00> : vector<64x128xf32>
    %2 = tpu.matmul %0, %1, %cst {dimension_numbers = #tpu.dot_dimension_numbers<[1], [0], [0], [1], [0, 0, 1, 1], [], []>} : vector<64x4xf32>, vector<4x128xf32>, vector<64x128xf32> -> vector<64x128xf32>
    %c0_3 = arith.constant 0 : index
    %c0_4 = arith.constant 0 : index
    %3 = vector.load %arg3[%c0_3, %c0_4] : memref<1x128xf32, #tpu.memory_space<vmem>>, vector<1x128xf32>
    %4 = vector.broadcast %3 : vector<1x128xf32> to vector<64x128xf32>
    %5 = arith.addf %2, %4 : vector<64x128xf32>
    %c0_5 = arith.constant 0 : index
    %c0_6 = arith.constant 0 : index
    %6 = vector.load %arg10[%c0_5, %c0_6] : memref<64x128xf32, #tpu.memory_space<vmem>>, vector<64x128xf32>
    tpu.vector_store %arg10[%c0_5, %c0_6], %5 {strides = array<i32>} : memref<64x128xf32, #tpu.memory_space<vmem>>, vector<64x128xf32>,
    %c0_7 = arith.constant 0 : index
    %c0_8 = arith.constant 0 : index
    %7 = vector.load %arg2[%c0_7, %c0_8] : memref<32x128xf32, #tpu.memory_space<vmem>>, vector<32x128xf32>
    %c0_9 = arith.constant 0 : index
    %c0_10 = arith.constant 0 : index
    %8 = vector.load %arg4[%c0_9, %c0_10] : memref<32x128xf32, #tpu.memory_space<vmem>>, vector<32x128xf32>
    %c0_11 = arith.constant 0 : index
    %c0_12 = arith.constant 0 : index
    %9 = vector.load %arg6[%c0_11, %c0_12] : memref<1x128xf32, #tpu.memory_space<vmem>>, vector<1x128xf32>
    %cst_13 = arith.constant 0.000000e+00 : f32
    %10 = vector.broadcast %cst_13 : f32 to vector<8x32xf32>
    %cst_14 = arith.constant 0.000000e+00 : f32
    %11 = vector.broadcast %cst_14 : f32 to vector<8x32xf32>
    %c0_i32 = arith.constant 0 : i32
    %c8_i32 = arith.constant 8 : i32
    %12 = arith.muli %c0_i32, %c8_i32 : i32
    %13 = tpu.assume_multiple %12, 8 : i32
    %14 = arith.index_cast %13 : i32 to index
    %c0_15 = arith.constant 0 : index
    %15 = vector.load %arg10[%14, %c0_15] : memref<64x128xf32, #tpu.memory_space<vmem>>, vector<8x128xf32>
    %cst_16 = arith.constant dense<0.000000e+00> : vector<8x128xf32>
    %16 = tpu.matmul %10, %7, %cst_16 {dimension_numbers = #tpu.dot_dimension_numbers<[1], [0], [0], [1], [0, 0, 1, 1], [], []>} : vector<8x32xf32>, vector<32x128xf32>, vector<8x128xf32> -> vector<8x128xf32>
    %17 = arith.addf %15, %16 : vector<8x128xf32>
    %18 = math.tanh %17 : vector<8x128xf32>
    %19 = vector.extract_strided_slice %18 {offsets = [0, 0], sizes = [8, 64], strides = [1, 1]} : vector<8x128xf32> to vector<8x64xf32>
    %cst_17 = arith.constant 5.000000e-01 : f32
    %20 = vector.broadcast %cst_17 : f32 to vector<8x64xf32>
    %21 = arith.mulf %19, %20 : vector<8x64xf32>
    %cst_18 = arith.constant 5.000000e-01 : f32
    %22 = vector.broadcast %cst_18 : f32 to vector<8x64xf32>
    %23 = arith.addf %21, %22 : vector<8x64xf32>
    %24 = vector.extract_strided_slice %23 {offsets = [0, 0], sizes = [8, 32], strides = [1, 1]} : vector<8x64xf32> to vector<8x32xf32>
    %25 = vector.extract_strided_slice %23 {offsets = [0, 32], sizes = [8, 32], strides = [1, 1]} : vector<8x64xf32> to vector<8x32xf32>
    %26 = vector.extract_strided_slice %18 {offsets = [0, 64], sizes = [8, 32], strides = [1, 1]} : vector<8x128xf32> to vector<8x32xf32>
    %27 = vector.extract_strided_slice %18 {offsets = [0, 96], sizes = [8, 32], strides = [1, 1]} : vector<8x128xf32> to vector<8x32xf32>
    %cst_19 = arith.constant 5.000000e-01 : f32
    %28 = vector.broadcast %cst_19 : f32 to vector<8x32xf32>
    %29 = arith.mulf %27, %28 : vector<8x32xf32>
    %cst_20 = arith.constant 5.000000e-01 : f32
    %30 = vector.broadcast %cst_20 : f32 to vector<8x32xf32>
    %31 = arith.addf %29, %30 : vector<8x32xf32>
    %32 = arith.mulf %25, %11 : vector<8x32xf32>
    %33 = arith.mulf %24, %26 : vector<8x32xf32>
    %34 = arith.addf %32, %33 : vector<8x32xf32>
    %35 = math.tanh %34 : vector<8x32xf32>
    %36 = arith.mulf %31, %35 : vector<8x32xf32>
    %cst_21 = arith.constant dense<0.000000e+00> : vector<8x128xf32>
    %37 = tpu.matmul %36, %8, %cst_21 {dimension_numbers = #tpu.dot_dimension_numbers<[1], [0], [0], [1], [0, 0, 1, 1], [], []>} : vector<8x32xf32>, vector<32x128xf32>, vector<8x128xf32> -> vector<8x128xf32>
    %38 = vector.broadcast %9 : vector<1x128xf32> to vector<8x128xf32>
    %39 = arith.addf %37, %38 : vector<8x128xf32>
    %40 = arith.index_cast %13 : i32 to index
    %c0_22 = arith.constant 0 : index
    %41 = vector.load %arg11[%40, %c0_22] : memref<64x128xf32, #tpu.memory_space<vmem>>, vector<8x128xf32>
    tpu.vector_store %arg11[%40, %c0_22], %39 {strides = array<i32>} : memref<64x128xf32, #tpu.memory_space<vmem>>, vector<8x128xf32>,
    %c1_i32 = arith.constant 1 : i32
    %c8_i32_23 = arith.constant 8 : i32
    %42 = arith.muli %c1_i32, %c8_i32_23 : i32
    %43 = tpu.assume_multiple %42, 8 : i32
    %44 = arith.index_cast %43 : i32 to index
    %c0_24 = arith.constant 0 : index
    %45 = vector.load %arg10[%44, %c0_24] : memref<64x128xf32, #tpu.memory_space<vmem>>, vector<8x128xf32>
    %cst_25 = arith.constant dense<0.000000e+00> : vector<8x128xf32>
    %46 = tpu.matmul %36, %7, %cst_25 {dimension_numbers = #tpu.dot_dimension_numbers<[1], [0], [0], [1], [0, 0, 1, 1], [], []>} : vector<8x32xf32>, vector<32x128xf32>, vector<8x128xf32> -> vector<8x128xf32>
    %47 = arith.addf %45, %46 : vector<8x128xf32>
    %48 = math.tanh %47 : vector<8x128xf32>
    %49 = vector.extract_strided_slice %48 {offsets = [0, 0], sizes = [8, 64], strides = [1, 1]} : vector<8x128xf32> to vector<8x64xf32>
    %cst_26 = arith.constant 5.000000e-01 : f32
    %50 = vector.broadcast %cst_26 : f32 to vector<8x64xf32>
    %51 = arith.mulf %49, %50 : vector<8x64xf32>
    %cst_27 = arith.constant 5.000000e-01 : f32
    %52 = vector.broadcast %cst_27 : f32 to vector<8x64xf32>
    %53 = arith.addf %51, %52 : vector<8x64xf32>
    %54 = vector.extract_strided_slice %53 {offsets = [0, 0], sizes = [8, 32], strides = [1, 1]} : vector<8x64xf32> to vector<8x32xf32>
    %55 = vector.extract_strided_slice %53 {offsets = [0, 32], sizes = [8, 32], strides = [1, 1]} : vector<8x64xf32> to vector<8x32xf32>
    %56 = vector.extract_strided_slice %48 {offsets = [0, 64], sizes = [8, 32], strides = [1, 1]} : vector<8x128xf32> to vector<8x32xf32>
    %57 = vector.extract_strided_slice %48 {offsets = [0, 96], sizes = [8, 32], strides = [1, 1]} : vector<8x128xf32> to vector<8x32xf32>
    %cst_28 = arith.constant 5.000000e-01 : f32
    %58 = vector.broadcast %cst_28 : f32 to vector<8x32xf32>
    %59 = arith.mulf %57, %58 : vector<8x32xf32>
    %cst_29 = arith.constant 5.000000e-01 : f32
    %60 = vector.broadcast %cst_29 : f32 to vector<8x32xf32>
    %61 = arith.addf %59, %60 : vector<8x32xf32>
    %62 = arith.mulf %55, %34 : vector<8x32xf32>
    %63 = arith.mulf %54, %56 : vector<8x32xf32>
    %64 = arith.addf %62, %63 : vector<8x32xf32>
    %65 = math.tanh %64 : vector<8x32xf32>
    %66 = arith.mulf %61, %65 : vector<8x32xf32>
    %cst_30 = arith.constant dense<0.000000e+00> : vector<8x128xf32>
    %67 = tpu.matmul %66, %8, %cst_30 {dimension_numbers = #tpu.dot_dimension_numbers<[1], [0], [0], [1], [0, 0, 1, 1], [], []>} : vector<8x32xf32>, vector<32x128xf32>, vector<8x128xf32> -> vector<8x128xf32>
    %68 = vector.broadcast %9 : vector<1x128xf32> to vector<8x128xf32>
    %69 = arith.addf %67, %68 : vector<8x128xf32>
    %70 = arith.index_cast %43 : i32 to index
    %c0_31 = arith.constant 0 : index
    %71 = vector.load %arg11[%70, %c0_31] : memref<64x128xf32, #tpu.memory_space<vmem>>, vector<8x128xf32>
    tpu.vector_store %arg11[%70, %c0_31], %69 {strides = array<i32>} : memref<64x128xf32, #tpu.memory_space<vmem>>, vector<8x128xf32>,
    %c2_i32 = arith.constant 2 : i32
    %c8_i32_32 = arith.constant 8 : i32
    %72 = arith.muli %c2_i32, %c8_i32_32 : i32
    %73 = tpu.assume_multiple %72, 8 : i32
    %74 = arith.index_cast %73 : i32 to index
    %c0_33 = arith.constant 0 : index
    %75 = vector.load %arg10[%74, %c0_33] : memref<64x128xf32, #tpu.memory_space<vmem>>, vector<8x128xf32>
    %cst_34 = arith.constant dense<0.000000e+00> : vector<8x128xf32>
    %76 = tpu.matmul %66, %7, %cst_34 {dimension_numbers = #tpu.dot_dimension_numbers<[1], [0], [0], [1], [0, 0, 1, 1], [], []>} : vector<8x32xf32>, vector<32x128xf32>, vector<8x128xf32> -> vector<8x128xf32>
    %77 = arith.addf %75, %76 : vector<8x128xf32>
    %78 = math.tanh %77 : vector<8x128xf32>
    %79 = vector.extract_strided_slice %78 {offsets = [0, 0], sizes = [8, 64], strides = [1, 1]} : vector<8x128xf32> to vector<8x64xf32>
    %cst_35 = arith.constant 5.000000e-01 : f32
    %80 = vector.broadcast %cst_35 : f32 to vector<8x64xf32>
    %81 = arith.mulf %79, %80 : vector<8x64xf32>
    %cst_36 = arith.constant 5.000000e-01 : f32
    %82 = vector.broadcast %cst_36 : f32 to vector<8x64xf32>
    %83 = arith.addf %81, %82 : vector<8x64xf32>
    %84 = vector.extract_strided_slice %83 {offsets = [0, 0], sizes = [8, 32], strides = [1, 1]} : vector<8x64xf32> to vector<8x32xf32>
    %85 = vector.extract_strided_slice %83 {offsets = [0, 32], sizes = [8, 32], strides = [1, 1]} : vector<8x64xf32> to vector<8x32xf32>
    %86 = vector.extract_strided_slice %78 {offsets = [0, 64], sizes = [8, 32], strides = [1, 1]} : vector<8x128xf32> to vector<8x32xf32>
    %87 = vector.extract_strided_slice %78 {offsets = [0, 96], sizes = [8, 32], strides = [1, 1]} : vector<8x128xf32> to vector<8x32xf32>
    %cst_37 = arith.constant 5.000000e-01 : f32
    %88 = vector.broadcast %cst_37 : f32 to vector<8x32xf32>
    %89 = arith.mulf %87, %88 : vector<8x32xf32>
    %cst_38 = arith.constant 5.000000e-01 : f32
    %90 = vector.broadcast %cst_38 : f32 to vector<8x32xf32>
    %91 = arith.addf %89, %90 : vector<8x32xf32>
    %92 = arith.mulf %85, %64 : vector<8x32xf32>
    %93 = arith.mulf %84, %86 : vector<8x32xf32>
    %94 = arith.addf %92, %93 : vector<8x32xf32>
    %95 = math.tanh %94 : vector<8x32xf32>
    %96 = arith.mulf %91, %95 : vector<8x32xf32>
    %cst_39 = arith.constant dense<0.000000e+00> : vector<8x128xf32>
    %97 = tpu.matmul %96, %8, %cst_39 {dimension_numbers = #tpu.dot_dimension_numbers<[1], [0], [0], [1], [0, 0, 1, 1], [], []>} : vector<8x32xf32>, vector<32x128xf32>, vector<8x128xf32> -> vector<8x128xf32>
    %98 = vector.broadcast %9 : vector<1x128xf32> to vector<8x128xf32>
    %99 = arith.addf %97, %98 : vector<8x128xf32>
    %100 = arith.index_cast %73 : i32 to index
    %c0_40 = arith.constant 0 : index
    %101 = vector.load %arg11[%100, %c0_40] : memref<64x128xf32, #tpu.memory_space<vmem>>, vector<8x128xf32>
    tpu.vector_store %arg11[%100, %c0_40], %99 {strides = array<i32>} : memref<64x128xf32, #tpu.memory_space<vmem>>, vector<8x128xf32>,
    %c3_i32 = arith.constant 3 : i32
    %c8_i32_41 = arith.constant 8 : i32
    %102 = arith.muli %c3_i32, %c8_i32_41 : i32
    %103 = tpu.assume_multiple %102, 8 : i32
    %104 = arith.index_cast %103 : i32 to index
    %c0_42 = arith.constant 0 : index
    %105 = vector.load %arg10[%104, %c0_42] : memref<64x128xf32, #tpu.memory_space<vmem>>, vector<8x128xf32>
    %cst_43 = arith.constant dense<0.000000e+00> : vector<8x128xf32>
    %106 = tpu.matmul %96, %7, %cst_43 {dimension_numbers = #tpu.dot_dimension_numbers<[1], [0], [0], [1], [0, 0, 1, 1], [], []>} : vector<8x32xf32>, vector<32x128xf32>, vector<8x128xf32> -> vector<8x128xf32>
    %107 = arith.addf %105, %106 : vector<8x128xf32>
    %108 = math.tanh %107 : vector<8x128xf32>
    %109 = vector.extract_strided_slice %108 {offsets = [0, 0], sizes = [8, 64], strides = [1, 1]} : vector<8x128xf32> to vector<8x64xf32>
    %cst_44 = arith.constant 5.000000e-01 : f32
    %110 = vector.broadcast %cst_44 : f32 to vector<8x64xf32>
    %111 = arith.mulf %109, %110 : vector<8x64xf32>
    %cst_45 = arith.constant 5.000000e-01 : f32
    %112 = vector.broadcast %cst_45 : f32 to vector<8x64xf32>
    %113 = arith.addf %111, %112 : vector<8x64xf32>
    %114 = vector.extract_strided_slice %113 {offsets = [0, 0], sizes = [8, 32], strides = [1, 1]} : vector<8x64xf32> to vector<8x32xf32>
    %115 = vector.extract_strided_slice %113 {offsets = [0, 32], sizes = [8, 32], strides = [1, 1]} : vector<8x64xf32> to vector<8x32xf32>
    %116 = vector.extract_strided_slice %108 {offsets = [0, 64], sizes = [8, 32], strides = [1, 1]} : vector<8x128xf32> to vector<8x32xf32>
    %117 = vector.extract_strided_slice %108 {offsets = [0, 96], sizes = [8, 32], strides = [1, 1]} : vector<8x128xf32> to vector<8x32xf32>
    %cst_46 = arith.constant 5.000000e-01 : f32
    %118 = vector.broadcast %cst_46 : f32 to vector<8x32xf32>
    %119 = arith.mulf %117, %118 : vector<8x32xf32>
    %cst_47 = arith.constant 5.000000e-01 : f32
    %120 = vector.broadcast %cst_47 : f32 to vector<8x32xf32>
    %121 = arith.addf %119, %120 : vector<8x32xf32>
    %122 = arith.mulf %115, %94 : vector<8x32xf32>
    %123 = arith.mulf %114, %116 : vector<8x32xf32>
    %124 = arith.addf %122, %123 : vector<8x32xf32>
    %125 = math.tanh %124 : vector<8x32xf32>
    %126 = arith.mulf %121, %125 : vector<8x32xf32>
    %cst_48 = arith.constant dense<0.000000e+00> : vector<8x128xf32>
    %127 = tpu.matmul %126, %8, %cst_48 {dimension_numbers = #tpu.dot_dimension_numbers<[1], [0], [0], [1], [0, 0, 1, 1], [], []>} : vector<8x32xf32>, vector<32x128xf32>, vector<8x128xf32> -> vector<8x128xf32>
    %128 = vector.broadcast %9 : vector<1x128xf32> to vector<8x128xf32>
    %129 = arith.addf %127, %128 : vector<8x128xf32>
    %130 = arith.index_cast %103 : i32 to index
    %c0_49 = arith.constant 0 : index
    %131 = vector.load %arg11[%130, %c0_49] : memref<64x128xf32, #tpu.memory_space<vmem>>, vector<8x128xf32>
    tpu.vector_store %arg11[%130, %c0_49], %129 {strides = array<i32>} : memref<64x128xf32, #tpu.memory_space<vmem>>, vector<8x128xf32>,
    %c4_i32 = arith.constant 4 : i32
    %c8_i32_50 = arith.constant 8 : i32
    %132 = arith.muli %c4_i32, %c8_i32_50 : i32
    %133 = tpu.assume_multiple %132, 8 : i32
    %134 = arith.index_cast %133 : i32 to index
    %c0_51 = arith.constant 0 : index
    %135 = vector.load %arg10[%134, %c0_51] : memref<64x128xf32, #tpu.memory_space<vmem>>, vector<8x128xf32>
    %cst_52 = arith.constant dense<0.000000e+00> : vector<8x128xf32>
    %136 = tpu.matmul %126, %7, %cst_52 {dimension_numbers = #tpu.dot_dimension_numbers<[1], [0], [0], [1], [0, 0, 1, 1], [], []>} : vector<8x32xf32>, vector<32x128xf32>, vector<8x128xf32> -> vector<8x128xf32>
    %137 = arith.addf %135, %136 : vector<8x128xf32>
    %138 = math.tanh %137 : vector<8x128xf32>
    %139 = vector.extract_strided_slice %138 {offsets = [0, 0], sizes = [8, 64], strides = [1, 1]} : vector<8x128xf32> to vector<8x64xf32>
    %cst_53 = arith.constant 5.000000e-01 : f32
    %140 = vector.broadcast %cst_53 : f32 to vector<8x64xf32>
    %141 = arith.mulf %139, %140 : vector<8x64xf32>
    %cst_54 = arith.constant 5.000000e-01 : f32
    %142 = vector.broadcast %cst_54 : f32 to vector<8x64xf32>
    %143 = arith.addf %141, %142 : vector<8x64xf32>
    %144 = vector.extract_strided_slice %143 {offsets = [0, 0], sizes = [8, 32], strides = [1, 1]} : vector<8x64xf32> to vector<8x32xf32>
    %145 = vector.extract_strided_slice %143 {offsets = [0, 32], sizes = [8, 32], strides = [1, 1]} : vector<8x64xf32> to vector<8x32xf32>
    %146 = vector.extract_strided_slice %138 {offsets = [0, 64], sizes = [8, 32], strides = [1, 1]} : vector<8x128xf32> to vector<8x32xf32>
    %147 = vector.extract_strided_slice %138 {offsets = [0, 96], sizes = [8, 32], strides = [1, 1]} : vector<8x128xf32> to vector<8x32xf32>
    %cst_55 = arith.constant 5.000000e-01 : f32
    %148 = vector.broadcast %cst_55 : f32 to vector<8x32xf32>
    %149 = arith.mulf %147, %148 : vector<8x32xf32>
    %cst_56 = arith.constant 5.000000e-01 : f32
    %150 = vector.broadcast %cst_56 : f32 to vector<8x32xf32>
    %151 = arith.addf %149, %150 : vector<8x32xf32>
    %152 = arith.mulf %145, %124 : vector<8x32xf32>
    %153 = arith.mulf %144, %146 : vector<8x32xf32>
    %154 = arith.addf %152, %153 : vector<8x32xf32>
    %155 = math.tanh %154 : vector<8x32xf32>
    %156 = arith.mulf %151, %155 : vector<8x32xf32>
    %cst_57 = arith.constant dense<0.000000e+00> : vector<8x128xf32>
    %157 = tpu.matmul %156, %8, %cst_57 {dimension_numbers = #tpu.dot_dimension_numbers<[1], [0], [0], [1], [0, 0, 1, 1], [], []>} : vector<8x32xf32>, vector<32x128xf32>, vector<8x128xf32> -> vector<8x128xf32>
    %158 = vector.broadcast %9 : vector<1x128xf32> to vector<8x128xf32>
    %159 = arith.addf %157, %158 : vector<8x128xf32>
    %160 = arith.index_cast %133 : i32 to index
    %c0_58 = arith.constant 0 : index
    %161 = vector.load %arg11[%160, %c0_58] : memref<64x128xf32, #tpu.memory_space<vmem>>, vector<8x128xf32>
    tpu.vector_store %arg11[%160, %c0_58], %159 {strides = array<i32>} : memref<64x128xf32, #tpu.memory_space<vmem>>, vector<8x128xf32>,
    %c5_i32 = arith.constant 5 : i32
    %c8_i32_59 = arith.constant 8 : i32
    %162 = arith.muli %c5_i32, %c8_i32_59 : i32
    %163 = tpu.assume_multiple %162, 8 : i32
    %164 = arith.index_cast %163 : i32 to index
    %c0_60 = arith.constant 0 : index
    %165 = vector.load %arg10[%164, %c0_60] : memref<64x128xf32, #tpu.memory_space<vmem>>, vector<8x128xf32>
    %cst_61 = arith.constant dense<0.000000e+00> : vector<8x128xf32>
    %166 = tpu.matmul %156, %7, %cst_61 {dimension_numbers = #tpu.dot_dimension_numbers<[1], [0], [0], [1], [0, 0, 1, 1], [], []>} : vector<8x32xf32>, vector<32x128xf32>, vector<8x128xf32> -> vector<8x128xf32>
    %167 = arith.addf %165, %166 : vector<8x128xf32>
    %168 = math.tanh %167 : vector<8x128xf32>
    %169 = vector.extract_strided_slice %168 {offsets = [0, 0], sizes = [8, 64], strides = [1, 1]} : vector<8x128xf32> to vector<8x64xf32>
    %cst_62 = arith.constant 5.000000e-01 : f32
    %170 = vector.broadcast %cst_62 : f32 to vector<8x64xf32>
    %171 = arith.mulf %169, %170 : vector<8x64xf32>
    %cst_63 = arith.constant 5.000000e-01 : f32
    %172 = vector.broadcast %cst_63 : f32 to vector<8x64xf32>
    %173 = arith.addf %171, %172 : vector<8x64xf32>
    %174 = vector.extract_strided_slice %173 {offsets = [0, 0], sizes = [8, 32], strides = [1, 1]} : vector<8x64xf32> to vector<8x32xf32>
    %175 = vector.extract_strided_slice %173 {offsets = [0, 32], sizes = [8, 32], strides = [1, 1]} : vector<8x64xf32> to vector<8x32xf32>
    %176 = vector.extract_strided_slice %168 {offsets = [0, 64], sizes = [8, 32], strides = [1, 1]} : vector<8x128xf32> to vector<8x32xf32>
    %177 = vector.extract_strided_slice %168 {offsets = [0, 96], sizes = [8, 32], strides = [1, 1]} : vector<8x128xf32> to vector<8x32xf32>
    %cst_64 = arith.constant 5.000000e-01 : f32
    %178 = vector.broadcast %cst_64 : f32 to vector<8x32xf32>
    %179 = arith.mulf %177, %178 : vector<8x32xf32>
    %cst_65 = arith.constant 5.000000e-01 : f32
    %180 = vector.broadcast %cst_65 : f32 to vector<8x32xf32>
    %181 = arith.addf %179, %180 : vector<8x32xf32>
    %182 = arith.mulf %175, %154 : vector<8x32xf32>
    %183 = arith.mulf %174, %176 : vector<8x32xf32>
    %184 = arith.addf %182, %183 : vector<8x32xf32>
    %185 = math.tanh %184 : vector<8x32xf32>
    %186 = arith.mulf %181, %185 : vector<8x32xf32>
    %cst_66 = arith.constant dense<0.000000e+00> : vector<8x128xf32>
    %187 = tpu.matmul %186, %8, %cst_66 {dimension_numbers = #tpu.dot_dimension_numbers<[1], [0], [0], [1], [0, 0, 1, 1], [], []>} : vector<8x32xf32>, vector<32x128xf32>, vector<8x128xf32> -> vector<8x128xf32>
    %188 = vector.broadcast %9 : vector<1x128xf32> to vector<8x128xf32>
    %189 = arith.addf %187, %188 : vector<8x128xf32>
    %190 = arith.index_cast %163 : i32 to index
    %c0_67 = arith.constant 0 : index
    %191 = vector.load %arg11[%190, %c0_67] : memref<64x128xf32, #tpu.memory_space<vmem>>, vector<8x128xf32>
    tpu.vector_store %arg11[%190, %c0_67], %189 {strides = array<i32>} : memref<64x128xf32, #tpu.memory_space<vmem>>, vector<8x128xf32>,
    %c6_i32 = arith.constant 6 : i32
    %c8_i32_68 = arith.constant 8 : i32
    %192 = arith.muli %c6_i32, %c8_i32_68 : i32
    %193 = tpu.assume_multiple %192, 8 : i32
    %194 = arith.index_cast %193 : i32 to index
    %c0_69 = arith.constant 0 : index
    %195 = vector.load %arg10[%194, %c0_69] : memref<64x128xf32, #tpu.memory_space<vmem>>, vector<8x128xf32>
    %cst_70 = arith.constant dense<0.000000e+00> : vector<8x128xf32>
    %196 = tpu.matmul %186, %7, %cst_70 {dimension_numbers = #tpu.dot_dimension_numbers<[1], [0], [0], [1], [0, 0, 1, 1], [], []>} : vector<8x32xf32>, vector<32x128xf32>, vector<8x128xf32> -> vector<8x128xf32>
    %197 = arith.addf %195, %196 : vector<8x128xf32>
    %198 = math.tanh %197 : vector<8x128xf32>
    %199 = vector.extract_strided_slice %198 {offsets = [0, 0], sizes = [8, 64], strides = [1, 1]} : vector<8x128xf32> to vector<8x64xf32>
    %cst_71 = arith.constant 5.000000e-01 : f32
    %200 = vector.broadcast %cst_71 : f32 to vector<8x64xf32>
    %201 = arith.mulf %199, %200 : vector<8x64xf32>
    %cst_72 = arith.constant 5.000000e-01 : f32
    %202 = vector.broadcast %cst_72 : f32 to vector<8x64xf32>
    %203 = arith.addf %201, %202 : vector<8x64xf32>
    %204 = vector.extract_strided_slice %203 {offsets = [0, 0], sizes = [8, 32], strides = [1, 1]} : vector<8x64xf32> to vector<8x32xf32>
    %205 = vector.extract_strided_slice %203 {offsets = [0, 32], sizes = [8, 32], strides = [1, 1]} : vector<8x64xf32> to vector<8x32xf32>
    %206 = vector.extract_strided_slice %198 {offsets = [0, 64], sizes = [8, 32], strides = [1, 1]} : vector<8x128xf32> to vector<8x32xf32>
    %207 = vector.extract_strided_slice %198 {offsets = [0, 96], sizes = [8, 32], strides = [1, 1]} : vector<8x128xf32> to vector<8x32xf32>
    %cst_73 = arith.constant 5.000000e-01 : f32
    %208 = vector.broadcast %cst_73 : f32 to vector<8x32xf32>
    %209 = arith.mulf %207, %208 : vector<8x32xf32>
    %cst_74 = arith.constant 5.000000e-01 : f32
    %210 = vector.broadcast %cst_74 : f32 to vector<8x32xf32>
    %211 = arith.addf %209, %210 : vector<8x32xf32>
    %212 = arith.mulf %205, %184 : vector<8x32xf32>
    %213 = arith.mulf %204, %206 : vector<8x32xf32>
    %214 = arith.addf %212, %213 : vector<8x32xf32>
    %215 = math.tanh %214 : vector<8x32xf32>
    %216 = arith.mulf %211, %215 : vector<8x32xf32>
    %cst_75 = arith.constant dense<0.000000e+00> : vector<8x128xf32>
    %217 = tpu.matmul %216, %8, %cst_75 {dimension_numbers = #tpu.dot_dimension_numbers<[1], [0], [0], [1], [0, 0, 1, 1], [], []>} : vector<8x32xf32>, vector<32x128xf32>, vector<8x128xf32> -> vector<8x128xf32>
    %218 = vector.broadcast %9 : vector<1x128xf32> to vector<8x128xf32>
    %219 = arith.addf %217, %218 : vector<8x128xf32>
    %220 = arith.index_cast %193 : i32 to index
    %c0_76 = arith.constant 0 : index
    %221 = vector.load %arg11[%220, %c0_76] : memref<64x128xf32, #tpu.memory_space<vmem>>, vector<8x128xf32>
    tpu.vector_store %arg11[%220, %c0_76], %219 {strides = array<i32>} : memref<64x128xf32, #tpu.memory_space<vmem>>, vector<8x128xf32>,
    %c7_i32 = arith.constant 7 : i32
    %c8_i32_77 = arith.constant 8 : i32
    %222 = arith.muli %c7_i32, %c8_i32_77 : i32
    %223 = tpu.assume_multiple %222, 8 : i32
    %224 = arith.index_cast %223 : i32 to index
    %c0_78 = arith.constant 0 : index
    %225 = vector.load %arg10[%224, %c0_78] : memref<64x128xf32, #tpu.memory_space<vmem>>, vector<8x128xf32>
    %cst_79 = arith.constant dense<0.000000e+00> : vector<8x128xf32>
    %226 = tpu.matmul %216, %7, %cst_79 {dimension_numbers = #tpu.dot_dimension_numbers<[1], [0], [0], [1], [0, 0, 1, 1], [], []>} : vector<8x32xf32>, vector<32x128xf32>, vector<8x128xf32> -> vector<8x128xf32>
    %227 = arith.addf %225, %226 : vector<8x128xf32>
    %228 = math.tanh %227 : vector<8x128xf32>
    %229 = vector.extract_strided_slice %228 {offsets = [0, 0], sizes = [8, 64], strides = [1, 1]} : vector<8x128xf32> to vector<8x64xf32>
    %cst_80 = arith.constant 5.000000e-01 : f32
    %230 = vector.broadcast %cst_80 : f32 to vector<8x64xf32>
    %231 = arith.mulf %229, %230 : vector<8x64xf32>
    %cst_81 = arith.constant 5.000000e-01 : f32
    %232 = vector.broadcast %cst_81 : f32 to vector<8x64xf32>
    %233 = arith.addf %231, %232 : vector<8x64xf32>
    %234 = vector.extract_strided_slice %233 {offsets = [0, 0], sizes = [8, 32], strides = [1, 1]} : vector<8x64xf32> to vector<8x32xf32>
    %235 = vector.extract_strided_slice %233 {offsets = [0, 32], sizes = [8, 32], strides = [1, 1]} : vector<8x64xf32> to vector<8x32xf32>
    %236 = vector.extract_strided_slice %228 {offsets = [0, 64], sizes = [8, 32], strides = [1, 1]} : vector<8x128xf32> to vector<8x32xf32>
    %237 = vector.extract_strided_slice %228 {offsets = [0, 96], sizes = [8, 32], strides = [1, 1]} : vector<8x128xf32> to vector<8x32xf32>
    %cst_82 = arith.constant 5.000000e-01 : f32
    %238 = vector.broadcast %cst_82 : f32 to vector<8x32xf32>
    %239 = arith.mulf %237, %238 : vector<8x32xf32>
    %cst_83 = arith.constant 5.000000e-01 : f32
    %240 = vector.broadcast %cst_83 : f32 to vector<8x32xf32>
    %241 = arith.addf %239, %240 : vector<8x32xf32>
    %242 = arith.mulf %235, %214 : vector<8x32xf32>
    %243 = arith.mulf %234, %236 : vector<8x32xf32>
    %244 = arith.addf %242, %243 : vector<8x32xf32>
    %245 = math.tanh %244 : vector<8x32xf32>
    %246 = arith.mulf %241, %245 : vector<8x32xf32>
    %cst_84 = arith.constant dense<0.000000e+00> : vector<8x128xf32>
    %247 = tpu.matmul %246, %8, %cst_84 {dimension_numbers = #tpu.dot_dimension_numbers<[1], [0], [0], [1], [0, 0, 1, 1], [], []>} : vector<8x32xf32>, vector<32x128xf32>, vector<8x128xf32> -> vector<8x128xf32>
    %248 = vector.broadcast %9 : vector<1x128xf32> to vector<8x128xf32>
    %249 = arith.addf %247, %248 : vector<8x128xf32>
    %250 = arith.index_cast %223 : i32 to index
    %c0_85 = arith.constant 0 : index
    %251 = vector.load %arg11[%250, %c0_85] : memref<64x128xf32, #tpu.memory_space<vmem>>, vector<8x128xf32>
    tpu.vector_store %arg11[%250, %c0_85], %249 {strides = array<i32>} : memref<64x128xf32, #tpu.memory_space<vmem>>, vector<8x128xf32>,
    %c8_i32_86 = arith.constant 8 : i32
    %c0_87 = arith.constant 0 : index
    %c0_88 = arith.constant 0 : index
    %252 = vector.load %arg5[%c0_87, %c0_88] : memref<32x128xf32, #tpu.memory_space<vmem>>, vector<32x128xf32>
    %cst_89 = arith.constant 0.000000e+00 : f32
    %253 = vector.broadcast %cst_89 : f32 to vector<8x32xf32>
    %cst_90 = arith.constant 0.000000e+00 : f32
    %254 = vector.broadcast %cst_90 : f32 to vector<8x32xf32>
    %c0_i32_91 = arith.constant 0 : i32
    %c8_i32_92 = arith.constant 8 : i32
    %255 = arith.muli %c0_i32_91, %c8_i32_92 : i32
    %256 = tpu.assume_multiple %255, 8 : i32
    %257 = arith.index_cast %256 : i32 to index
    %c0_93 = arith.constant 0 : index
    %258 = vector.load %arg11[%257, %c0_93] : memref<64x128xf32, #tpu.memory_space<vmem>>, vector<8x128xf32>
    %cst_94 = arith.constant dense<0.000000e+00> : vector<8x128xf32>
    %259 = tpu.matmul %253, %252, %cst_94 {dimension_numbers = #tpu.dot_dimension_numbers<[1], [0], [0], [1], [0, 0, 1, 1], [], []>} : vector<8x32xf32>, vector<32x128xf32>, vector<8x128xf32> -> vector<8x128xf32>
    %260 = arith.addf %258, %259 : vector<8x128xf32>
    %261 = math.tanh %260 : vector<8x128xf32>
    %262 = vector.extract_strided_slice %261 {offsets = [0, 0], sizes = [8, 64], strides = [1, 1]} : vector<8x128xf32> to vector<8x64xf32>
    %cst_95 = arith.constant 5.000000e-01 : f32
    %263 = vector.broadcast %cst_95 : f32 to vector<8x64xf32>
    %264 = arith.mulf %262, %263 : vector<8x64xf32>
    %cst_96 = arith.constant 5.000000e-01 : f32
    %265 = vector.broadcast %cst_96 : f32 to vector<8x64xf32>
    %266 = arith.addf %264, %265 : vector<8x64xf32>
    %267 = vector.extract_strided_slice %266 {offsets = [0, 0], sizes = [8, 32], strides = [1, 1]} : vector<8x64xf32> to vector<8x32xf32>
    %268 = vector.extract_strided_slice %266 {offsets = [0, 32], sizes = [8, 32], strides = [1, 1]} : vector<8x64xf32> to vector<8x32xf32>
    %269 = vector.extract_strided_slice %261 {offsets = [0, 64], sizes = [8, 32], strides = [1, 1]} : vector<8x128xf32> to vector<8x32xf32>
    %270 = vector.extract_strided_slice %261 {offsets = [0, 96], sizes = [8, 32], strides = [1, 1]} : vector<8x128xf32> to vector<8x32xf32>
    %cst_97 = arith.constant 5.000000e-01 : f32
    %271 = vector.broadcast %cst_97 : f32 to vector<8x32xf32>
    %272 = arith.mulf %270, %271 : vector<8x32xf32>
    %cst_98 = arith.constant 5.000000e-01 : f32
    %273 = vector.broadcast %cst_98 : f32 to vector<8x32xf32>
    %274 = arith.addf %272, %273 : vector<8x32xf32>
    %275 = arith.mulf %268, %254 : vector<8x32xf32>
    %276 = arith.mulf %267, %269 : vector<8x32xf32>
    %277 = arith.addf %275, %276 : vector<8x32xf32>
    %278 = math.tanh %277 : vector<8x32xf32>
    %279 = arith.mulf %274, %278 : vector<8x32xf32>
    %c1_i32_99 = arith.constant 1 : i32
    %c8_i32_100 = arith.constant 8 : i32
    %280 = arith.muli %c1_i32_99, %c8_i32_100 : i32
    %281 = tpu.assume_multiple %280, 8 : i32
    %282 = arith.index_cast %281 : i32 to index
    %c0_101 = arith.constant 0 : index
    %283 = vector.load %arg11[%282, %c0_101] : memref<64x128xf32, #tpu.memory_space<vmem>>, vector<8x128xf32>
    %cst_102 = arith.constant dense<0.000000e+00> : vector<8x128xf32>
    %284 = tpu.matmul %279, %252, %cst_102 {dimension_numbers = #tpu.dot_dimension_numbers<[1], [0], [0], [1], [0, 0, 1, 1], [], []>} : vector<8x32xf32>, vector<32x128xf32>, vector<8x128xf32> -> vector<8x128xf32>
    %285 = arith.addf %283, %284 : vector<8x128xf32>
    %286 = math.tanh %285 : vector<8x128xf32>
    %287 = vector.extract_strided_slice %286 {offsets = [0, 0], sizes = [8, 64], strides = [1, 1]} : vector<8x128xf32> to vector<8x64xf32>
    %cst_103 = arith.constant 5.000000e-01 : f32
    %288 = vector.broadcast %cst_103 : f32 to vector<8x64xf32>
    %289 = arith.mulf %287, %288 : vector<8x64xf32>
    %cst_104 = arith.constant 5.000000e-01 : f32
    %290 = vector.broadcast %cst_104 : f32 to vector<8x64xf32>
    %291 = arith.addf %289, %290 : vector<8x64xf32>
    %292 = vector.extract_strided_slice %291 {offsets = [0, 0], sizes = [8, 32], strides = [1, 1]} : vector<8x64xf32> to vector<8x32xf32>
    %293 = vector.extract_strided_slice %291 {offsets = [0, 32], sizes = [8, 32], strides = [1, 1]} : vector<8x64xf32> to vector<8x32xf32>
    %294 = vector.extract_strided_slice %286 {offsets = [0, 64], sizes = [8, 32], strides = [1, 1]} : vector<8x128xf32> to vector<8x32xf32>
    %295 = vector.extract_strided_slice %286 {offsets = [0, 96], sizes = [8, 32], strides = [1, 1]} : vector<8x128xf32> to vector<8x32xf32>
    %cst_105 = arith.constant 5.000000e-01 : f32
    %296 = vector.broadcast %cst_105 : f32 to vector<8x32xf32>
    %297 = arith.mulf %295, %296 : vector<8x32xf32>
    %cst_106 = arith.constant 5.000000e-01 : f32
    %298 = vector.broadcast %cst_106 : f32 to vector<8x32xf32>
    %299 = arith.addf %297, %298 : vector<8x32xf32>
    %300 = arith.mulf %293, %277 : vector<8x32xf32>
    %301 = arith.mulf %292, %294 : vector<8x32xf32>
    %302 = arith.addf %300, %301 : vector<8x32xf32>
    %303 = math.tanh %302 : vector<8x32xf32>
    %304 = arith.mulf %299, %303 : vector<8x32xf32>
    %c2_i32_107 = arith.constant 2 : i32
    %c8_i32_108 = arith.constant 8 : i32
    %305 = arith.muli %c2_i32_107, %c8_i32_108 : i32
    %306 = tpu.assume_multiple %305, 8 : i32
    %307 = arith.index_cast %306 : i32 to index
    %c0_109 = arith.constant 0 : index
    %308 = vector.load %arg11[%307, %c0_109] : memref<64x128xf32, #tpu.memory_space<vmem>>, vector<8x128xf32>
    %cst_110 = arith.constant dense<0.000000e+00> : vector<8x128xf32>
    %309 = tpu.matmul %304, %252, %cst_110 {dimension_numbers = #tpu.dot_dimension_numbers<[1], [0], [0], [1], [0, 0, 1, 1], [], []>} : vector<8x32xf32>, vector<32x128xf32>, vector<8x128xf32> -> vector<8x128xf32>
    %310 = arith.addf %308, %309 : vector<8x128xf32>
    %311 = math.tanh %310 : vector<8x128xf32>
    %312 = vector.extract_strided_slice %311 {offsets = [0, 0], sizes = [8, 64], strides = [1, 1]} : vector<8x128xf32> to vector<8x64xf32>
    %cst_111 = arith.constant 5.000000e-01 : f32
    %313 = vector.broadcast %cst_111 : f32 to vector<8x64xf32>
    %314 = arith.mulf %312, %313 : vector<8x64xf32>
    %cst_112 = arith.constant 5.000000e-01 : f32
    %315 = vector.broadcast %cst_112 : f32 to vector<8x64xf32>
    %316 = arith.addf %314, %315 : vector<8x64xf32>
    %317 = vector.extract_strided_slice %316 {offsets = [0, 0], sizes = [8, 32], strides = [1, 1]} : vector<8x64xf32> to vector<8x32xf32>
    %318 = vector.extract_strided_slice %316 {offsets = [0, 32], sizes = [8, 32], strides = [1, 1]} : vector<8x64xf32> to vector<8x32xf32>
    %319 = vector.extract_strided_slice %311 {offsets = [0, 64], sizes = [8, 32], strides = [1, 1]} : vector<8x128xf32> to vector<8x32xf32>
    %320 = vector.extract_strided_slice %311 {offsets = [0, 96], sizes = [8, 32], strides = [1, 1]} : vector<8x128xf32> to vector<8x32xf32>
    %cst_113 = arith.constant 5.000000e-01 : f32
    %321 = vector.broadcast %cst_113 : f32 to vector<8x32xf32>
    %322 = arith.mulf %320, %321 : vector<8x32xf32>
    %cst_114 = arith.constant 5.000000e-01 : f32
    %323 = vector.broadcast %cst_114 : f32 to vector<8x32xf32>
    %324 = arith.addf %322, %323 : vector<8x32xf32>
    %325 = arith.mulf %318, %302 : vector<8x32xf32>
    %326 = arith.mulf %317, %319 : vector<8x32xf32>
    %327 = arith.addf %325, %326 : vector<8x32xf32>
    %328 = math.tanh %327 : vector<8x32xf32>
    %329 = arith.mulf %324, %328 : vector<8x32xf32>
    %c3_i32_115 = arith.constant 3 : i32
    %c8_i32_116 = arith.constant 8 : i32
    %330 = arith.muli %c3_i32_115, %c8_i32_116 : i32
    %331 = tpu.assume_multiple %330, 8 : i32
    %332 = arith.index_cast %331 : i32 to index
    %c0_117 = arith.constant 0 : index
    %333 = vector.load %arg11[%332, %c0_117] : memref<64x128xf32, #tpu.memory_space<vmem>>, vector<8x128xf32>
    %cst_118 = arith.constant dense<0.000000e+00> : vector<8x128xf32>
    %334 = tpu.matmul %329, %252, %cst_118 {dimension_numbers = #tpu.dot_dimension_numbers<[1], [0], [0], [1], [0, 0, 1, 1], [], []>} : vector<8x32xf32>, vector<32x128xf32>, vector<8x128xf32> -> vector<8x128xf32>
    %335 = arith.addf %333, %334 : vector<8x128xf32>
    %336 = math.tanh %335 : vector<8x128xf32>
    %337 = vector.extract_strided_slice %336 {offsets = [0, 0], sizes = [8, 64], strides = [1, 1]} : vector<8x128xf32> to vector<8x64xf32>
    %cst_119 = arith.constant 5.000000e-01 : f32
    %338 = vector.broadcast %cst_119 : f32 to vector<8x64xf32>
    %339 = arith.mulf %337, %338 : vector<8x64xf32>
    %cst_120 = arith.constant 5.000000e-01 : f32
    %340 = vector.broadcast %cst_120 : f32 to vector<8x64xf32>
    %341 = arith.addf %339, %340 : vector<8x64xf32>
    %342 = vector.extract_strided_slice %341 {offsets = [0, 0], sizes = [8, 32], strides = [1, 1]} : vector<8x64xf32> to vector<8x32xf32>
    %343 = vector.extract_strided_slice %341 {offsets = [0, 32], sizes = [8, 32], strides = [1, 1]} : vector<8x64xf32> to vector<8x32xf32>
    %344 = vector.extract_strided_slice %336 {offsets = [0, 64], sizes = [8, 32], strides = [1, 1]} : vector<8x128xf32> to vector<8x32xf32>
    %345 = vector.extract_strided_slice %336 {offsets = [0, 96], sizes = [8, 32], strides = [1, 1]} : vector<8x128xf32> to vector<8x32xf32>
    %cst_121 = arith.constant 5.000000e-01 : f32
    %346 = vector.broadcast %cst_121 : f32 to vector<8x32xf32>
    %347 = arith.mulf %345, %346 : vector<8x32xf32>
    %cst_122 = arith.constant 5.000000e-01 : f32
    %348 = vector.broadcast %cst_122 : f32 to vector<8x32xf32>
    %349 = arith.addf %347, %348 : vector<8x32xf32>
    %350 = arith.mulf %343, %327 : vector<8x32xf32>
    %351 = arith.mulf %342, %344 : vector<8x32xf32>
    %352 = arith.addf %350, %351 : vector<8x32xf32>
    %353 = math.tanh %352 : vector<8x32xf32>
    %354 = arith.mulf %349, %353 : vector<8x32xf32>
    %c4_i32_123 = arith.constant 4 : i32
    %c8_i32_124 = arith.constant 8 : i32
    %355 = arith.muli %c4_i32_123, %c8_i32_124 : i32
    %356 = tpu.assume_multiple %355, 8 : i32
    %357 = arith.index_cast %356 : i32 to index
    %c0_125 = arith.constant 0 : index
    %358 = vector.load %arg11[%357, %c0_125] : memref<64x128xf32, #tpu.memory_space<vmem>>, vector<8x128xf32>
    %cst_126 = arith.constant dense<0.000000e+00> : vector<8x128xf32>
    %359 = tpu.matmul %354, %252, %cst_126 {dimension_numbers = #tpu.dot_dimension_numbers<[1], [0], [0], [1], [0, 0, 1, 1], [], []>} : vector<8x32xf32>, vector<32x128xf32>, vector<8x128xf32> -> vector<8x128xf32>
    %360 = arith.addf %358, %359 : vector<8x128xf32>
    %361 = math.tanh %360 : vector<8x128xf32>
    %362 = vector.extract_strided_slice %361 {offsets = [0, 0], sizes = [8, 64], strides = [1, 1]} : vector<8x128xf32> to vector<8x64xf32>
    %cst_127 = arith.constant 5.000000e-01 : f32
    %363 = vector.broadcast %cst_127 : f32 to vector<8x64xf32>
    %364 = arith.mulf %362, %363 : vector<8x64xf32>
    %cst_128 = arith.constant 5.000000e-01 : f32
    %365 = vector.broadcast %cst_128 : f32 to vector<8x64xf32>
    %366 = arith.addf %364, %365 : vector<8x64xf32>
    %367 = vector.extract_strided_slice %366 {offsets = [0, 0], sizes = [8, 32], strides = [1, 1]} : vector<8x64xf32> to vector<8x32xf32>
    %368 = vector.extract_strided_slice %366 {offsets = [0, 32], sizes = [8, 32], strides = [1, 1]} : vector<8x64xf32> to vector<8x32xf32>
    %369 = vector.extract_strided_slice %361 {offsets = [0, 64], sizes = [8, 32], strides = [1, 1]} : vector<8x128xf32> to vector<8x32xf32>
    %370 = vector.extract_strided_slice %361 {offsets = [0, 96], sizes = [8, 32], strides = [1, 1]} : vector<8x128xf32> to vector<8x32xf32>
    %cst_129 = arith.constant 5.000000e-01 : f32
    %371 = vector.broadcast %cst_129 : f32 to vector<8x32xf32>
    %372 = arith.mulf %370, %371 : vector<8x32xf32>
    %cst_130 = arith.constant 5.000000e-01 : f32
    %373 = vector.broadcast %cst_130 : f32 to vector<8x32xf32>
    %374 = arith.addf %372, %373 : vector<8x32xf32>
    %375 = arith.mulf %368, %352 : vector<8x32xf32>
    %376 = arith.mulf %367, %369 : vector<8x32xf32>
    %377 = arith.addf %375, %376 : vector<8x32xf32>
    %378 = math.tanh %377 : vector<8x32xf32>
    %379 = arith.mulf %374, %378 : vector<8x32xf32>
    %c5_i32_131 = arith.constant 5 : i32
    %c8_i32_132 = arith.constant 8 : i32
    %380 = arith.muli %c5_i32_131, %c8_i32_132 : i32
    %381 = tpu.assume_multiple %380, 8 : i32
    %382 = arith.index_cast %381 : i32 to index
    %c0_133 = arith.constant 0 : index
    %383 = vector.load %arg11[%382, %c0_133] : memref<64x128xf32, #tpu.memory_space<vmem>>, vector<8x128xf32>
    %cst_134 = arith.constant dense<0.000000e+00> : vector<8x128xf32>
    %384 = tpu.matmul %379, %252, %cst_134 {dimension_numbers = #tpu.dot_dimension_numbers<[1], [0], [0], [1], [0, 0, 1, 1], [], []>} : vector<8x32xf32>, vector<32x128xf32>, vector<8x128xf32> -> vector<8x128xf32>
    %385 = arith.addf %383, %384 : vector<8x128xf32>
    %386 = math.tanh %385 : vector<8x128xf32>
    %387 = vector.extract_strided_slice %386 {offsets = [0, 0], sizes = [8, 64], strides = [1, 1]} : vector<8x128xf32> to vector<8x64xf32>
    %cst_135 = arith.constant 5.000000e-01 : f32
    %388 = vector.broadcast %cst_135 : f32 to vector<8x64xf32>
    %389 = arith.mulf %387, %388 : vector<8x64xf32>
    %cst_136 = arith.constant 5.000000e-01 : f32
    %390 = vector.broadcast %cst_136 : f32 to vector<8x64xf32>
    %391 = arith.addf %389, %390 : vector<8x64xf32>
    %392 = vector.extract_strided_slice %391 {offsets = [0, 0], sizes = [8, 32], strides = [1, 1]} : vector<8x64xf32> to vector<8x32xf32>
    %393 = vector.extract_strided_slice %391 {offsets = [0, 32], sizes = [8, 32], strides = [1, 1]} : vector<8x64xf32> to vector<8x32xf32>
    %394 = vector.extract_strided_slice %386 {offsets = [0, 64], sizes = [8, 32], strides = [1, 1]} : vector<8x128xf32> to vector<8x32xf32>
    %395 = vector.extract_strided_slice %386 {offsets = [0, 96], sizes = [8, 32], strides = [1, 1]} : vector<8x128xf32> to vector<8x32xf32>
    %cst_137 = arith.constant 5.000000e-01 : f32
    %396 = vector.broadcast %cst_137 : f32 to vector<8x32xf32>
    %397 = arith.mulf %395, %396 : vector<8x32xf32>
    %cst_138 = arith.constant 5.000000e-01 : f32
    %398 = vector.broadcast %cst_138 : f32 to vector<8x32xf32>
    %399 = arith.addf %397, %398 : vector<8x32xf32>
    %400 = arith.mulf %393, %377 : vector<8x32xf32>
    %401 = arith.mulf %392, %394 : vector<8x32xf32>
    %402 = arith.addf %400, %401 : vector<8x32xf32>
    %403 = math.tanh %402 : vector<8x32xf32>
    %404 = arith.mulf %399, %403 : vector<8x32xf32>
    %c6_i32_139 = arith.constant 6 : i32
    %c8_i32_140 = arith.constant 8 : i32
    %405 = arith.muli %c6_i32_139, %c8_i32_140 : i32
    %406 = tpu.assume_multiple %405, 8 : i32
    %407 = arith.index_cast %406 : i32 to index
    %c0_141 = arith.constant 0 : index
    %408 = vector.load %arg11[%407, %c0_141] : memref<64x128xf32, #tpu.memory_space<vmem>>, vector<8x128xf32>
    %cst_142 = arith.constant dense<0.000000e+00> : vector<8x128xf32>
    %409 = tpu.matmul %404, %252, %cst_142 {dimension_numbers = #tpu.dot_dimension_numbers<[1], [0], [0], [1], [0, 0, 1, 1], [], []>} : vector<8x32xf32>, vector<32x128xf32>, vector<8x128xf32> -> vector<8x128xf32>
    %410 = arith.addf %408, %409 : vector<8x128xf32>
    %411 = math.tanh %410 : vector<8x128xf32>
    %412 = vector.extract_strided_slice %411 {offsets = [0, 0], sizes = [8, 64], strides = [1, 1]} : vector<8x128xf32> to vector<8x64xf32>
    %cst_143 = arith.constant 5.000000e-01 : f32
    %413 = vector.broadcast %cst_143 : f32 to vector<8x64xf32>
    %414 = arith.mulf %412, %413 : vector<8x64xf32>
    %cst_144 = arith.constant 5.000000e-01 : f32
    %415 = vector.broadcast %cst_144 : f32 to vector<8x64xf32>
    %416 = arith.addf %414, %415 : vector<8x64xf32>
    %417 = vector.extract_strided_slice %416 {offsets = [0, 0], sizes = [8, 32], strides = [1, 1]} : vector<8x64xf32> to vector<8x32xf32>
    %418 = vector.extract_strided_slice %416 {offsets = [0, 32], sizes = [8, 32], strides = [1, 1]} : vector<8x64xf32> to vector<8x32xf32>
    %419 = vector.extract_strided_slice %411 {offsets = [0, 64], sizes = [8, 32], strides = [1, 1]} : vector<8x128xf32> to vector<8x32xf32>
    %420 = vector.extract_strided_slice %411 {offsets = [0, 96], sizes = [8, 32], strides = [1, 1]} : vector<8x128xf32> to vector<8x32xf32>
    %cst_145 = arith.constant 5.000000e-01 : f32
    %421 = vector.broadcast %cst_145 : f32 to vector<8x32xf32>
    %422 = arith.mulf %420, %421 : vector<8x32xf32>
    %cst_146 = arith.constant 5.000000e-01 : f32
    %423 = vector.broadcast %cst_146 : f32 to vector<8x32xf32>
    %424 = arith.addf %422, %423 : vector<8x32xf32>
    %425 = arith.mulf %418, %402 : vector<8x32xf32>
    %426 = arith.mulf %417, %419 : vector<8x32xf32>
    %427 = arith.addf %425, %426 : vector<8x32xf32>
    %428 = math.tanh %427 : vector<8x32xf32>
    %429 = arith.mulf %424, %428 : vector<8x32xf32>
    %c7_i32_147 = arith.constant 7 : i32
    %c8_i32_148 = arith.constant 8 : i32
    %430 = arith.muli %c7_i32_147, %c8_i32_148 : i32
    %431 = tpu.assume_multiple %430, 8 : i32
    %432 = arith.index_cast %431 : i32 to index
    %c0_149 = arith.constant 0 : index
    %433 = vector.load %arg11[%432, %c0_149] : memref<64x128xf32, #tpu.memory_space<vmem>>, vector<8x128xf32>
    %cst_150 = arith.constant dense<0.000000e+00> : vector<8x128xf32>
    %434 = tpu.matmul %429, %252, %cst_150 {dimension_numbers = #tpu.dot_dimension_numbers<[1], [0], [0], [1], [0, 0, 1, 1], [], []>} : vector<8x32xf32>, vector<32x128xf32>, vector<8x128xf32> -> vector<8x128xf32>
    %435 = arith.addf %433, %434 : vector<8x128xf32>
    %436 = math.tanh %435 : vector<8x128xf32>
    %437 = vector.extract_strided_slice %436 {offsets = [0, 0], sizes = [8, 64], strides = [1, 1]} : vector<8x128xf32> to vector<8x64xf32>
    %cst_151 = arith.constant 5.000000e-01 : f32
    %438 = vector.broadcast %cst_151 : f32 to vector<8x64xf32>
    %439 = arith.mulf %437, %438 : vector<8x64xf32>
    %cst_152 = arith.constant 5.000000e-01 : f32
    %440 = vector.broadcast %cst_152 : f32 to vector<8x64xf32>
    %441 = arith.addf %439, %440 : vector<8x64xf32>
    %442 = vector.extract_strided_slice %441 {offsets = [0, 0], sizes = [8, 32], strides = [1, 1]} : vector<8x64xf32> to vector<8x32xf32>
    %443 = vector.extract_strided_slice %441 {offsets = [0, 32], sizes = [8, 32], strides = [1, 1]} : vector<8x64xf32> to vector<8x32xf32>
    %444 = vector.extract_strided_slice %436 {offsets = [0, 64], sizes = [8, 32], strides = [1, 1]} : vector<8x128xf32> to vector<8x32xf32>
    %445 = vector.extract_strided_slice %436 {offsets = [0, 96], sizes = [8, 32], strides = [1, 1]} : vector<8x128xf32> to vector<8x32xf32>
    %cst_153 = arith.constant 5.000000e-01 : f32
    %446 = vector.broadcast %cst_153 : f32 to vector<8x32xf32>
    %447 = arith.mulf %445, %446 : vector<8x32xf32>
    %cst_154 = arith.constant 5.000000e-01 : f32
    %448 = vector.broadcast %cst_154 : f32 to vector<8x32xf32>
    %449 = arith.addf %447, %448 : vector<8x32xf32>
    %450 = arith.mulf %443, %427 : vector<8x32xf32>
    %451 = arith.mulf %442, %444 : vector<8x32xf32>
    %452 = arith.addf %450, %451 : vector<8x32xf32>
    %453 = math.tanh %452 : vector<8x32xf32>
    %454 = arith.mulf %449, %453 : vector<8x32xf32>
    %c8_i32_155 = arith.constant 8 : i32
    %c0_156 = arith.constant 0 : index
    %c0_157 = arith.constant 0 : index
    %455 = vector.load %arg7[%c0_156, %c0_157] : memref<1x32xf32, #tpu.memory_space<vmem>>, vector<1x32xf32>
    %456 = vector.broadcast %455 : vector<1x32xf32> to vector<8x32xf32>
    %457 = arith.mulf %454, %456 : vector<8x32xf32>
    %cst_158 = arith.constant dense<0.000000e+00> : vector<8xf32>
    %458 = vector.multi_reduction <add>, %457, %cst_158 [1] : vector<8x32xf32> to vector<8xf32>
    %459 = vector.shape_cast %458 : vector<8xf32> to vector<8x1xf32>
    %c0_159 = arith.constant 0 : index
    %c0_160 = arith.constant 0 : index
    %460 = vector.load %arg8[%c0_159, %c0_160] : memref<1x1xf32, #tpu.memory_space<vmem>>, vector<1x1xf32>
    %461 = vector.broadcast %460 : vector<1x1xf32> to vector<8x1xf32>
    %462 = arith.addf %459, %461 : vector<8x1xf32>
    %c0_161 = arith.constant 0 : index
    %c0_162 = arith.constant 0 : index
    %463 = vector.load %arg9[%c0_161, %c0_162] : memref<8x1xf32, #tpu.memory_space<vmem>>, vector<8x1xf32>
    tpu.vector_store %arg9[%c0_161, %c0_162], %462 {strides = array<i32>} : memref<8x1xf32, #tpu.memory_space<vmem>>, vector<8x1xf32>,
    return
  }
}

</mosaic_0001>

<llo_original>
// kernel: lstm_model_forward.1
$region0: #{lstm_model_forward.1}
  #allocation0 [shape = 'u32[]', space=smem, size = 0x4, offset = 0x4, fixed_abs, tag = 'smem constant byte address 0x4 - core index']
  #allocation1 [shape = 'u32[144,128]{1,0:T(1,128)}', space=vmem, size = 0x12000, scoped, tag = 'internal scratch']
  #allocation2 [shape = 'f32[64,128]{1,0:T(8,128)}', space=vmem, size = 0x8000, scoped, tag = 'scratch operand']
  #allocation3 [shape = 'f32[64,128]{1,0:T(8,128)}', space=vmem, size = 0x8000, scoped, tag = 'scratch operand']
  #allocation4 [shape = 'f32[1,1]{1,0:T(1,128)S(1)}', space=vmem, size = 0x200, scoped, tag = 'scoped memory for lstm_model_forward.1']
  %s0 = inlined_call_operand.vmem [shape: f32[64,4], index: 0, kind: input, shape index: {}]
  %s1 = inlined_call_operand.vmem [shape: f32[4,128], index: 1, kind: input, shape index: {}]
  %s2 = inlined_call_operand.vmem [shape: f32[32,128], index: 2, kind: input, shape index: {}]
  %s3 = inlined_call_operand.vmem [shape: f32[1,128], index: 3, kind: input, shape index: {}]
  %s4 = inlined_call_operand.vmem [shape: f32[32,128], index: 4, kind: input, shape index: {}]
  %s5 = inlined_call_operand.vmem [shape: f32[32,128], index: 5, kind: input, shape index: {}]
  %s6 = inlined_call_operand.vmem [shape: f32[1,128], index: 6, kind: input, shape index: {}]
  %s7 = inlined_call_operand.vmem [shape: f32[1,32], index: 7, kind: input, shape index: {}]
  %s8 = inlined_call_operand.<no memory space> [shape: f32[1,1], index: 8, kind: input, shape index: {}]
  %s9 = inlined_call_operand.vmem [shape: f32[8,1], index: 9, kind: output, shape index: {}]
  %s10 = sld [smem:[#allocation0]]
  $region46: #{lstm_model_forward.1} parent=0
    _
  %s12 = ssub.s32 1, %s10
  %s13 = scalar_select 0, %s12, %s10
  %v14 = vstv %s8
  %15 = vst [vmem:[#allocation4] sm:$0x1] %v14
  // Predicated region
  $region2: #{lstm_model_forward.1} parent=0 // pred_check
    _
  $region3: #{lstm_model_forward.1} parent=0 // pred_check_branch
    %17 = sbr.rel (0) target = $region5
  $region4: #{lstm_model_forward.1} parent=0 // pred_region
    _
  $region5: #{lstm_model_forward.1} parent=0 // pred_fallthru
    _
  // Predicated region
  $region6: #{lstm_model_forward.1} parent=0 // pred_check
    _
  $region7: #{lstm_model_forward.1} parent=0 // pred_check_branch
    %19 = sbr.rel (0) target = $region9
  $region8: #{lstm_model_forward.1} parent=0 // pred_region
    _
  $region9: #{lstm_model_forward.1} parent=0 // pred_fallthru
    _
  // Predicated region
  $region10: #{lstm_model_forward.1} parent=0 // pred_check
    _
  $region11: #{lstm_model_forward.1} parent=0 // pred_check_branch
    %21 = sbr.rel (0) target = $region13
  $region12: #{lstm_model_forward.1} parent=0 // pred_region
    _
  $region13: #{lstm_model_forward.1} parent=0 // pred_fallthru
    _
  // Predicated region
  $region14: #{lstm_model_forward.1} parent=0 // pred_check
    _
  $region15: #{lstm_model_forward.1} parent=0 // pred_check_branch
    %23 = sbr.rel (0) target = $region17
  $region16: #{lstm_model_forward.1} parent=0 // pred_region
    _
  $region17: #{lstm_model_forward.1} parent=0 // pred_fallthru
    _
  // Predicated region
  $region18: #{lstm_model_forward.1} parent=0 // pred_check
    _
  $region19: #{lstm_model_forward.1} parent=0 // pred_check_branch
    %25 = sbr.rel (0) target = $region21
  $region20: #{lstm_model_forward.1} parent=0 // pred_region
    _
  $region21: #{lstm_model_forward.1} parent=0 // pred_fallthru
    _
  // Predicated region
  $region22: #{lstm_model_forward.1} parent=0 // pred_check
    _
  $region23: #{lstm_model_forward.1} parent=0 // pred_check_branch
    %27 = sbr.rel (0) target = $region25
  $region24: #{lstm_model_forward.1} parent=0 // pred_region
    _
  $region25: #{lstm_model_forward.1} parent=0 // pred_fallthru
    _
  // Predicated region
  $region26: #{lstm_model_forward.1} parent=0 // pred_check
    _
  $region27: #{lstm_model_forward.1} parent=0 // pred_check_branch
    %29 = sbr.rel (0) target = $region29
  $region28: #{lstm_model_forward.1} parent=0 // pred_region
    _
  $region29: #{lstm_model_forward.1} parent=0 // pred_fallthru
    _
  // Predicated region
  $region30: #{lstm_model_forward.1} parent=0 // pred_check
    _
  $region31: #{lstm_model_forward.1} parent=0 // pred_check_branch
    %31 = sbr.rel (0) target = $region33
  $region32: #{lstm_model_forward.1} parent=0 // pred_region
    _
  $region33: #{lstm_model_forward.1} parent=0 // pred_fallthru
    _
  // Predicated region
  $region34: #{lstm_model_forward.1} parent=0 // pred_check
    _
  $region35: #{lstm_model_forward.1} parent=0 // pred_check_branch
    %33 = sbr.rel (0) target = $region37
  $region36: #{lstm_model_forward.1} parent=0 // pred_region
    _
  $region37: #{lstm_model_forward.1} parent=0 // pred_fallthru
    _
  %v34 = vld [vmem:[%s0] sm:$0xff]
  %v35 = vld [vmem:[%s0 + $0x8] sm:$0xff]
  %v36 = vld [vmem:[%s0 + $0x10] sm:$0xff]
  %v37 = vld [vmem:[%s0 + $0x18] sm:$0xff]
  %v38 = vld [vmem:[%s0 + $0x20] sm:$0xff]
  %v39 = vld [vmem:[%s0 + $0x28] sm:$0xff]
  %v40 = vld [vmem:[%s0 + $0x30] sm:$0xff]
  %v41 = vld [vmem:[%s0 + $0x38] sm:$0xff]
  %v42 = vld [vmem:[%s1] sm:$0xf]
  %v43 = vld [vmem:[%s3] sm:$0x1]
  %v45 = vlaneseq
  %v46 = vshrl.u32 %v45, 7
  %v47 = vsub.s32 0, %v46
  %v48 = vrot.slane %v43, %v47
  %vm50 = vcmask 31744
  %v52 = vsel %vm50, %v34, 0
  %v55 = vsel %vm50, %v35, 0
  %v58 = vsel %vm50, %v36, 0
  %v61 = vsel %vm50, %v37, 0
  %v64 = vsel %vm50, %v38, 0
  %v67 = vsel %vm50, %v39, 0
  %v70 = vsel %vm50, %v40, 0
  %v73 = vsel %vm50, %v41, 0
  %vm75 = vcmask 1043456
  %v77 = vsel %vm75, %v42, 0
  %79 = vmatprep.subr.mxu0 0.0
  %80 = vmatpush1.msra.mxu0 %v77
  %81 = vmatprep.subr.mxu0 0.0
  %82 = vmatpush1.msra.mxu0 0.0
  %83 = vmatprep.subr.mxu0 0.0
  %84 = vmatpush1.msra.mxu0 0.0
  %85 = vmatprep.subr.mxu0 0.0
  %86 = vmatpush1.msra.mxu0 0.0
  %87 = vmatprep.subr.mxu0 0.0
  %88 = vmatpush1.msra.mxu0 0.0
  %89 = vmatprep.subr.mxu0 0.0
  %90 = vmatpush1.msra.mxu0 0.0
  %91 = vmatprep.subr.mxu0 0.0
  %92 = vmatpush1.msra.mxu0 0.0
  %93 = vmatprep.subr.mxu0 0.0
  %94 = vmatpush1.msra.mxu0 0.0
  %95 = vmatprep.subr.mxu0 0.0
  %96 = vmatpush1.msra.mxu0 0.0
  %97 = vmatprep.subr.mxu0 0.0
  %98 = vmatpush1.msra.mxu0 0.0
  %99 = vmatprep.subr.mxu0 0.0
  %100 = vmatpush1.msra.mxu0 0.0
  %101 = vmatprep.subr.mxu0 0.0
  %102 = vmatpush1.msra.mxu0 0.0
  %103 = vmatprep.subr.mxu0 0.0
  %104 = vmatpush1.msra.mxu0 0.0
  %105 = vmatprep.subr.mxu0 0.0
  %106 = vmatpush1.msra.mxu0 0.0
  %107 = vmatprep.subr.mxu0 0.0
  %108 = vmatpush1.msra.mxu0 0.0
  %109 = vmatprep.subr.mxu0 0.0
  %110 = vmatpush1.msra.mxu0 0.0
  %111 = vmatprep.subr.mxu0 0.0
  %112 = vmatpush1.msra.mxu0 0.0
  %113 = vmatprep.subr.mxu0 0.0
  %114 = vmatpush1.msra.mxu0 0.0
  %115 = vmatprep.subr.mxu0 0.0
  %116 = vmatpush1.msra.mxu0 0.0
  %117 = vmatprep.subr.mxu0 0.0
  %118 = vmatpush1.msra.mxu0 0.0
  %119 = vmatprep.subr.mxu0 0.0
  %120 = vmatpush1.msra.mxu0 0.0
  %121 = vmatprep.subr.mxu0 0.0
  %122 = vmatpush1.msra.mxu0 0.0
  %123 = vmatprep.subr.mxu0 0.0
  %124 = vmatpush1.msra.mxu0 0.0
  %125 = vmatprep.subr.mxu0 0.0
  %126 = vmatpush1.msra.mxu0 0.0
  %127 = vmatprep.subr.mxu0 0.0
  %128 = vmatpush1.msra.mxu0 0.0
  %129 = vmatprep.subr.mxu0 0.0
  %130 = vmatpush1.msra.mxu0 0.0
  %131 = vmatprep.subr.mxu0 0.0
  %132 = vmatpush1.msra.mxu0 0.0
  %133 = vmatprep.subr.mxu0 0.0
  %134 = vmatpush1.msra.mxu0 0.0
  %135 = vmatprep.subr.mxu0 0.0
  %136 = vmatpush1.msra.mxu0 0.0
  %137 = vmatprep.subr.mxu0 0.0
  %138 = vmatpush1.msra.mxu0 0.0
  %139 = vmatprep.subr.mxu0 0.0
  %140 = vmatpush1.msra.mxu0 0.0
  %141 = vmatprep.subr.mxu0 0.0
  %142 = vmatpush1.msra.mxu0 0.0
  %143 = vmatprep.mubr.f32.mxu0 0.0
  %144 = vmatmul.mubr.f32.gmra.mrb[0].mxu0 %v52
  %v145 = vpop.f32.mrb[0].mxu0
  %v146 = vadd.f32 %v48, %v145
  %v147 = vpop.f32.mrb[0].mxu0
  %148 = vmatprep.mubr.f32.mxu0 0.0
  %149 = vmatmul.mubr.f32.gmra.mrb[0].mxu0 %v55
  %v150 = vpop.f32.mrb[0].mxu0
  %v151 = vadd.f32 %v48, %v150
  %v152 = vpop.f32.mrb[0].mxu0
  %153 = vmatprep.mubr.f32.mxu0 0.0
  %154 = vmatmul.mubr.f32.gmra.mrb[0].mxu0 %v58
  %v155 = vpop.f32.mrb[0].mxu0
  %v156 = vadd.f32 %v48, %v155
  %v157 = vpop.f32.mrb[0].mxu0
  %158 = vmatprep.mubr.f32.mxu0 0.0
  %159 = vmatmul.mubr.f32.gmra.mrb[0].mxu0 %v61
  %v160 = vpop.f32.mrb[0].mxu0
  %v161 = vadd.f32 %v48, %v160
  %v162 = vpop.f32.mrb[0].mxu0
  %163 = vmatprep.mubr.f32.mxu0 0.0
  %164 = vmatmul.mubr.f32.gmra.mrb[0].mxu0 %v64
  %v165 = vpop.f32.mrb[0].mxu0
  %v166 = vadd.f32 %v48, %v165
  %v167 = vpop.f32.mrb[0].mxu0
  %168 = vmatprep.mubr.f32.mxu0 0.0
  %169 = vmatmul.mubr.f32.gmra.mrb[0].mxu0 %v67
  %v170 = vpop.f32.mrb[0].mxu0
  %v171 = vadd.f32 %v48, %v170
  %v172 = vpop.f32.mrb[0].mxu0
  %173 = vmatprep.mubr.f32.mxu0 0.0
  %174 = vmatmul.mubr.f32.gmra.mrb[0].mxu0 %v70
  %v175 = vpop.f32.mrb[0].mxu0
  %v176 = vadd.f32 %v48, %v175
  %v177 = vpop.f32.mrb[0].mxu0
  %178 = vmatprep.mubr.f32.mxu0 0.0
  %179 = vmatmul.mubr.f32.gmra.mrb[0].mxu0 %v73
  %v180 = vpop.f32.mrb[0].mxu0
  %v181 = vadd.f32 %v48, %v180
  %v182 = vpop.f32.mrb[0].mxu0
  %183 = vdwg.mxu0
  %184 = vst [vmem:[#allocation2] sm:$0xff] %v146
  %185 = vst [vmem:[#allocation2 + $0x8] sm:$0xff] %v151
  %186 = vst [vmem:[#allocation2 + $0x10] sm:$0xff] %v156
  %187 = vst [vmem:[#allocation2 + $0x18] sm:$0xff] %v161
  %188 = vst [vmem:[#allocation2 + $0x20] sm:$0xff] %v166
  %189 = vst [vmem:[#allocation2 + $0x28] sm:$0xff] %v171
  %190 = vst [vmem:[#allocation2 + $0x30] sm:$0xff] %v176
  %191 = vst [vmem:[#allocation2 + $0x38] sm:$0xff] %v181
  %v192 = vld [vmem:[%s2] sm:$0xff]
  %v193 = vld [vmem:[%s2 + $0x8] sm:$0xff]
  %v194 = vld [vmem:[%s2 + $0x10] sm:$0xff]
  %v195 = vld [vmem:[%s2 + $0x18] sm:$0xff]
  %v196 = vld [vmem:[%s4] sm:$0xff]
  %v197 = vld [vmem:[%s4 + $0x8] sm:$0xff]
  %v198 = vld [vmem:[%s4 + $0x10] sm:$0xff]
  %v199 = vld [vmem:[%s4 + $0x18] sm:$0xff]
  %v200 = vld [vmem:[%s6] sm:$0x1]
  %v201 = vld [vmem:[#allocation2] sm:$0xff]
  %vm202 = vcmask 261120
  %v204 = vsel %vm202, 0.0, 0
  %206 = vmatprep.subr.mxu0 0.0
  %207 = vmatpush1.msra.mxu0 %v192
  %208 = vmatprep.subr.mxu0 0.0
  %209 = vmatpush1.msra.mxu0 %v193
  %210 = vmatprep.subr.mxu0 0.0
  %211 = vmatpush1.msra.mxu0 %v194
  %212 = vmatprep.subr.mxu0 0.0
  %213 = vmatpush1.msra.mxu0 %v195
  %214 = vmatprep.subr.mxu0 0.0
  %215 = vmatpush1.msra.mxu0 0.0
  %216 = vmatprep.subr.mxu0 0.0
  %217 = vmatpush1.msra.mxu0 0.0
  %218 = vmatprep.subr.mxu0 0.0
  %219 = vmatpush1.msra.mxu0 0.0
  %220 = vmatprep.subr.mxu0 0.0
  %221 = vmatpush1.msra.mxu0 0.0
  %222 = vmatprep.subr.mxu0 0.0
  %223 = vmatpush1.msra.mxu0 0.0
  %224 = vmatprep.subr.mxu0 0.0
  %225 = vmatpush1.msra.mxu0 0.0
  %226 = vmatprep.subr.mxu0 0.0
  %227 = vmatpush1.msra.mxu0 0.0
  %228 = vmatprep.subr.mxu0 0.0
  %229 = vmatpush1.msra.mxu0 0.0
  %230 = vmatprep.subr.mxu0 0.0
  %231 = vmatpush1.msra.mxu0 0.0
  %232 = vmatprep.subr.mxu0 0.0
  %233 = vmatpush1.msra.mxu0 0.0
  %234 = vmatprep.subr.mxu0 0.0
  %235 = vmatpush1.msra.mxu0 0.0
  %236 = vmatprep.subr.mxu0 0.0
  %237 = vmatpush1.msra.mxu0 0.0
  %238 = vmatprep.subr.mxu0 0.0
  %239 = vmatpush1.msra.mxu0 0.0
  %240 = vmatprep.subr.mxu0 0.0
  %241 = vmatpush1.msra.mxu0 0.0
  %242 = vmatprep.subr.mxu0 0.0
  %243 = vmatpush1.msra.mxu0 0.0
  %244 = vmatprep.subr.mxu0 0.0
  %245 = vmatpush1.msra.mxu0 0.0
  %246 = vmatprep.subr.mxu0 0.0
  %247 = vmatpush1.msra.mxu0 0.0
  %248 = vmatprep.subr.mxu0 0.0
  %249 = vmatpush1.msra.mxu0 0.0
  %250 = vmatprep.subr.mxu0 0.0
  %251 = vmatpush1.msra.mxu0 0.0
  %252 = vmatprep.subr.mxu0 0.0
  %253 = vmatpush1.msra.mxu0 0.0
  %254 = vmatprep.subr.mxu0 0.0
  %255 = vmatpush1.msra.mxu0 0.0
  %256 = vmatprep.subr.mxu0 0.0
  %257 = vmatpush1.msra.mxu0 0.0
  %258 = vmatprep.subr.mxu0 0.0
  %259 = vmatpush1.msra.mxu0 0.0
  %260 = vmatprep.subr.mxu0 0.0
  %261 = vmatpush1.msra.mxu0 0.0
  %262 = vmatprep.subr.mxu0 0.0
  %263 = vmatpush1.msra.mxu0 0.0
  %264 = vmatprep.subr.mxu0 0.0
  %265 = vmatpush1.msra.mxu0 0.0
  %266 = vmatprep.subr.mxu0 0.0
  %267 = vmatpush1.msra.mxu0 0.0
  %268 = vmatprep.subr.mxu0 0.0
  %269 = vmatpush1.msra.mxu0 0.0
  %270 = vmatprep.mubr.f32.mxu0 0.0
  %271 = vmatmul.mubr.f32.gmra.mrb[0].mxu0 %v204
  %v272 = vpop.f32.mrb[0].mxu0
  %v273 = vadd.f32 0.0, %v272
  %v274 = vpop.f32.mrb[0].mxu0
  %275 = vdwg.mxu0
  %v276 = vadd.f32 %v201, %v273
  %v277 = vtanh.pop %v276
  %v278 = vmul.f32 %v277, 0.5
  %v279 = vadd.f32 %v278, 0.5
  %v280 = vmul.f32 %v279, 0.0
  %282 = vrot.lane.b32.xlu0 %v277, 64
  %v283 = vpop.permute.xlu0 %282
  %v285 = vmul.f32 %v279, %v283
  %287 = vrot.lane.b32.xlu0 %v285, 32
  %v288 = vpop.permute.xlu0 %287
  %v290 = vadd.f32 %v280, %v288
  %v291 = vtanh.pop %v290
  %293 = vrot.lane.b32.xlu0 %v291, 64
  %v294 = vpop.permute.xlu0 %293
  %v296 = vmul.f32 %v279, %v294
  %v298 = vlaneseq
  %v299 = vshrl.u32 %v298, 7
  %v300 = vsub.s32 0, %v299
  %v301 = vrot.slane %v200, %v300
  %304 = vrot.lane.b32.xlu0 %v296, 32
  %v305 = vpop.permute.xlu0 %304
  %v306 = vsel %vm202, %v305, 0
  %308 = vmatprep.subr.mxu0 0.0
  %309 = vmatpush1.msra.mxu0 %v196
  %310 = vmatprep.subr.mxu0 0.0
  %311 = vmatpush1.msra.mxu0 %v197
  %312 = vmatprep.subr.mxu0 0.0
  %313 = vmatpush1.msra.mxu0 %v198
  %314 = vmatprep.subr.mxu0 0.0
  %315 = vmatpush1.msra.mxu0 %v199
  %316 = vmatprep.subr.mxu0 0.0
  %317 = vmatpush1.msra.mxu0 0.0
  %318 = vmatprep.subr.mxu0 0.0
  %319 = vmatpush1.msra.mxu0 0.0
  %320 = vmatprep.subr.mxu0 0.0
  %321 = vmatpush1.msra.mxu0 0.0
  %322 = vmatprep.subr.mxu0 0.0
  %323 = vmatpush1.msra.mxu0 0.0
  %324 = vmatprep.subr.mxu0 0.0
  %325 = vmatpush1.msra.mxu0 0.0
  %326 = vmatprep.subr.mxu0 0.0
  %327 = vmatpush1.msra.mxu0 0.0
  %328 = vmatprep.subr.mxu0 0.0
  %329 = vmatpush1.msra.mxu0 0.0
  %330 = vmatprep.subr.mxu0 0.0
  %331 = vmatpush1.msra.mxu0 0.0
  %332 = vmatprep.subr.mxu0 0.0
  %333 = vmatpush1.msra.mxu0 0.0
  %334 = vmatprep.subr.mxu0 0.0
  %335 = vmatpush1.msra.mxu0 0.0
  %336 = vmatprep.subr.mxu0 0.0
  %337 = vmatpush1.msra.mxu0 0.0
  %338 = vmatprep.subr.mxu0 0.0
  %339 = vmatpush1.msra.mxu0 0.0
  %340 = vmatprep.subr.mxu0 0.0
  %341 = vmatpush1.msra.mxu0 0.0
  %342 = vmatprep.subr.mxu0 0.0
  %343 = vmatpush1.msra.mxu0 0.0
  %344 = vmatprep.subr.mxu0 0.0
  %345 = vmatpush1.msra.mxu0 0.0
  %346 = vmatprep.subr.mxu0 0.0
  %347 = vmatpush1.msra.mxu0 0.0
  %348 = vmatprep.subr.mxu0 0.0
  %349 = vmatpush1.msra.mxu0 0.0
  %350 = vmatprep.subr.mxu0 0.0
  %351 = vmatpush1.msra.mxu0 0.0
  %352 = vmatprep.subr.mxu0 0.0
  %353 = vmatpush1.msra.mxu0 0.0
  %354 = vmatprep.subr.mxu0 0.0
  %355 = vmatpush1.msra.mxu0 0.0
  %356 = vmatprep.subr.mxu0 0.0
  %357 = vmatpush1.msra.mxu0 0.0
  %358 = vmatprep.subr.mxu0 0.0
  %359 = vmatpush1.msra.mxu0 0.0
  %360 = vmatprep.subr.mxu0 0.0
  %361 = vmatpush1.msra.mxu0 0.0
  %362 = vmatprep.subr.mxu0 0.0
  %363 = vmatpush1.msra.mxu0 0.0
  %364 = vmatprep.subr.mxu0 0.0
  %365 = vmatpush1.msra.mxu0 0.0
  %366 = vmatprep.subr.mxu0 0.0
  %367 = vmatpush1.msra.mxu0 0.0
  %368 = vmatprep.subr.mxu0 0.0
  %369 = vmatpush1.msra.mxu0 0.0
  %370 = vmatprep.subr.mxu0 0.0
  %371 = vmatpush1.msra.mxu0 0.0
  %372 = vmatprep.mubr.f32.mxu0 0.0
  %373 = vmatmul.mubr.f32.gmra.mrb[0].mxu0 %v306
  %v374 = vpop.f32.mrb[0].mxu0
  %v375 = vadd.f32 %v301, %v374
  %v376 = vpop.f32.mrb[0].mxu0
  %377 = vdwg.mxu0
  %378 = vst [vmem:[#allocation3] sm:$0xff] %v375
  %s379 = scalar_lea.vmem [#allocation2], 8
  %v380 = vld [vmem:[%s379] sm:$0xff]
  %381 = vmatprep.subr.mxu0 0.0
  %382 = vmatpush1.msra.mxu0 %v192
  %383 = vmatprep.subr.mxu0 0.0
  %384 = vmatpush1.msra.mxu0 %v193
  %385 = vmatprep.subr.mxu0 0.0
  %386 = vmatpush1.msra.mxu0 %v194
  %387 = vmatprep.subr.mxu0 0.0
  %388 = vmatpush1.msra.mxu0 %v195
  %389 = vmatprep.subr.mxu0 0.0
  %390 = vmatpush1.msra.mxu0 0.0
  %391 = vmatprep.subr.mxu0 0.0
  %392 = vmatpush1.msra.mxu0 0.0
  %393 = vmatprep.subr.mxu0 0.0
  %394 = vmatpush1.msra.mxu0 0.0
  %395 = vmatprep.subr.mxu0 0.0
  %396 = vmatpush1.msra.mxu0 0.0
  %397 = vmatprep.subr.mxu0 0.0
  %398 = vmatpush1.msra.mxu0 0.0
  %399 = vmatprep.subr.mxu0 0.0
  %400 = vmatpush1.msra.mxu0 0.0
  %401 = vmatprep.subr.mxu0 0.0
  %402 = vmatpush1.msra.mxu0 0.0
  %403 = vmatprep.subr.mxu0 0.0
  %404 = vmatpush1.msra.mxu0 0.0
  %405 = vmatprep.subr.mxu0 0.0
  %406 = vmatpush1.msra.mxu0 0.0
  %407 = vmatprep.subr.mxu0 0.0
  %408 = vmatpush1.msra.mxu0 0.0
  %409 = vmatprep.subr.mxu0 0.0
  %410 = vmatpush1.msra.mxu0 0.0
  %411 = vmatprep.subr.mxu0 0.0
  %412 = vmatpush1.msra.mxu0 0.0
  %413 = vmatprep.subr.mxu0 0.0
  %414 = vmatpush1.msra.mxu0 0.0
  %415 = vmatprep.subr.mxu0 0.0
  %416 = vmatpush1.msra.mxu0 0.0
  %417 = vmatprep.subr.mxu0 0.0
  %418 = vmatpush1.msra.mxu0 0.0
  %419 = vmatprep.subr.mxu0 0.0
  %420 = vmatpush1.msra.mxu0 0.0
  %421 = vmatprep.subr.mxu0 0.0
  %422 = vmatpush1.msra.mxu0 0.0
  %423 = vmatprep.subr.mxu0 0.0
  %424 = vmatpush1.msra.mxu0 0.0
  %425 = vmatprep.subr.mxu0 0.0
  %426 = vmatpush1.msra.mxu0 0.0
  %427 = vmatprep.subr.mxu0 0.0
  %428 = vmatpush1.msra.mxu0 0.0
  %429 = vmatprep.subr.mxu0 0.0
  %430 = vmatpush1.msra.mxu0 0.0
  %431 = vmatprep.subr.mxu0 0.0
  %432 = vmatpush1.msra.mxu0 0.0
  %433 = vmatprep.subr.mxu0 0.0
  %434 = vmatpush1.msra.mxu0 0.0
  %435 = vmatprep.subr.mxu0 0.0
  %436 = vmatpush1.msra.mxu0 0.0
  %437 = vmatprep.subr.mxu0 0.0
  %438 = vmatpush1.msra.mxu0 0.0
  %439 = vmatprep.subr.mxu0 0.0
  %440 = vmatpush1.msra.mxu0 0.0
  %441 = vmatprep.subr.mxu0 0.0
  %442 = vmatpush1.msra.mxu0 0.0
  %443 = vmatprep.subr.mxu0 0.0
  %444 = vmatpush1.msra.mxu0 0.0
  %445 = vmatprep.mubr.f32.mxu0 0.0
  %446 = vmatmul.mubr.f32.gmra.mrb[0].mxu0 %v306
  %v447 = vpop.f32.mrb[0].mxu0
  %v448 = vadd.f32 0.0, %v447
  %v449 = vpop.f32.mrb[0].mxu0
  %450 = vdwg.mxu0
  %v451 = vadd.f32 %v380, %v448
  %v452 = vtanh.pop %v451
  %v453 = vmul.f32 %v452, 0.5
  %v454 = vadd.f32 %v453, 0.5
  %v455 = vmul.f32 %v454, %v290
  %457 = vrot.lane.b32.xlu0 %v452, 64
  %v458 = vpop.permute.xlu0 %457
  %v460 = vmul.f32 %v454, %v458
  %462 = vrot.lane.b32.xlu0 %v460, 32
  %v463 = vpop.permute.xlu0 %462
  %v465 = vadd.f32 %v455, %v463
  %v466 = vtanh.pop %v465
  %468 = vrot.lane.b32.xlu0 %v466, 64
  %v469 = vpop.permute.xlu0 %468
  %v471 = vmul.f32 %v454, %v469
  %473 = vrot.lane.b32.xlu0 %v471, 32
  %v474 = vpop.permute.xlu0 %473
  %v475 = vsel %vm202, %v474, 0
  %477 = vmatprep.subr.mxu0 0.0
  %478 = vmatpush1.msra.mxu0 %v196
  %479 = vmatprep.subr.mxu0 0.0
  %480 = vmatpush1.msra.mxu0 %v197
  %481 = vmatprep.subr.mxu0 0.0
  %482 = vmatpush1.msra.mxu0 %v198
  %483 = vmatprep.subr.mxu0 0.0
  %484 = vmatpush1.msra.mxu0 %v199
  %485 = vmatprep.subr.mxu0 0.0
  %486 = vmatpush1.msra.mxu0 0.0
  %487 = vmatprep.subr.mxu0 0.0
  %488 = vmatpush1.msra.mxu0 0.0
  %489 = vmatprep.subr.mxu0 0.0
  %490 = vmatpush1.msra.mxu0 0.0
  %491 = vmatprep.subr.mxu0 0.0
  %492 = vmatpush1.msra.mxu0 0.0
  %493 = vmatprep.subr.mxu0 0.0
  %494 = vmatpush1.msra.mxu0 0.0
  %495 = vmatprep.subr.mxu0 0.0
  %496 = vmatpush1.msra.mxu0 0.0
  %497 = vmatprep.subr.mxu0 0.0
  %498 = vmatpush1.msra.mxu0 0.0
  %499 = vmatprep.subr.mxu0 0.0
  %500 = vmatpush1.msra.mxu0 0.0
  %501 = vmatprep.subr.mxu0 0.0
  %502 = vmatpush1.msra.mxu0 0.0
  %503 = vmatprep.subr.mxu0 0.0
  %504 = vmatpush1.msra.mxu0 0.0
  %505 = vmatprep.subr.mxu0 0.0
  %506 = vmatpush1.msra.mxu0 0.0
  %507 = vmatprep.subr.mxu0 0.0
  %508 = vmatpush1.msra.mxu0 0.0
  %509 = vmatprep.subr.mxu0 0.0
  %510 = vmatpush1.msra.mxu0 0.0
  %511 = vmatprep.subr.mxu0 0.0
  %512 = vmatpush1.msra.mxu0 0.0
  %513 = vmatprep.subr.mxu0 0.0
  %514 = vmatpush1.msra.mxu0 0.0
  %515 = vmatprep.subr.mxu0 0.0
  %516 = vmatpush1.msra.mxu0 0.0
  %517 = vmatprep.subr.mxu0 0.0
  %518 = vmatpush1.msra.mxu0 0.0
  %519 = vmatprep.subr.mxu0 0.0
  %520 = vmatpush1.msra.mxu0 0.0
  %521 = vmatprep.subr.mxu0 0.0
  %522 = vmatpush1.msra.mxu0 0.0
  %523 = vmatprep.subr.mxu0 0.0
  %524 = vmatpush1.msra.mxu0 0.0
  %525 = vmatprep.subr.mxu0 0.0
  %526 = vmatpush1.msra.mxu0 0.0
  %527 = vmatprep.subr.mxu0 0.0
  %528 = vmatpush1.msra.mxu0 0.0
  %529 = vmatprep.subr.mxu0 0.0
  %530 = vmatpush1.msra.mxu0 0.0
  %531 = vmatprep.subr.mxu0 0.0
  %532 = vmatpush1.msra.mxu0 0.0
  %533 = vmatprep.subr.mxu0 0.0
  %534 = vmatpush1.msra.mxu0 0.0
  %535 = vmatprep.subr.mxu0 0.0
  %536 = vmatpush1.msra.mxu0 0.0
  %537 = vmatprep.subr.mxu0 0.0
  %538 = vmatpush1.msra.mxu0 0.0
  %539 = vmatprep.subr.mxu0 0.0
  %540 = vmatpush1.msra.mxu0 0.0
  %541 = vmatprep.mubr.f32.mxu0 0.0
  %542 = vmatmul.mubr.f32.gmra.mrb[0].mxu0 %v475
  %v543 = vpop.f32.mrb[0].mxu0
  %v544 = vadd.f32 %v301, %v543
  %v545 = vpop.f32.mrb[0].mxu0
  %546 = vdwg.mxu0
  %s547 = scalar_lea.vmem [#allocation3], 8
  %548 = vst [vmem:[%s547] sm:$0xff] %v544
  %s549 = scalar_lea.vmem [#allocation2], 16
  %v550 = vld [vmem:[%s549] sm:$0xff]
  %551 = vmatprep.subr.mxu0 0.0
  %552 = vmatpush1.msra.mxu0 %v192
  %553 = vmatprep.subr.mxu0 0.0
  %554 = vmatpush1.msra.mxu0 %v193
  %555 = vmatprep.subr.mxu0 0.0
  %556 = vmatpush1.msra.mxu0 %v194
  %557 = vmatprep.subr.mxu0 0.0
  %558 = vmatpush1.msra.mxu0 %v195
  %559 = vmatprep.subr.mxu0 0.0
  %560 = vmatpush1.msra.mxu0 0.0
  %561 = vmatprep.subr.mxu0 0.0
  %562 = vmatpush1.msra.mxu0 0.0
  %563 = vmatprep.subr.mxu0 0.0
  %564 = vmatpush1.msra.mxu0 0.0
  %565 = vmatprep.subr.mxu0 0.0
  %566 = vmatpush1.msra.mxu0 0.0
  %567 = vmatprep.subr.mxu0 0.0
  %568 = vmatpush1.msra.mxu0 0.0
  %569 = vmatprep.subr.mxu0 0.0
  %570 = vmatpush1.msra.mxu0 0.0
  %571 = vmatprep.subr.mxu0 0.0
  %572 = vmatpush1.msra.mxu0 0.0
  %573 = vmatprep.subr.mxu0 0.0
  %574 = vmatpush1.msra.mxu0 0.0
  %575 = vmatprep.subr.mxu0 0.0
  %576 = vmatpush1.msra.mxu0 0.0
  %577 = vmatprep.subr.mxu0 0.0
  %578 = vmatpush1.msra.mxu0 0.0
  %579 = vmatprep.subr.mxu0 0.0
  %580 = vmatpush1.msra.mxu0 0.0
  %581 = vmatprep.subr.mxu0 0.0
  %582 = vmatpush1.msra.mxu0 0.0
  %583 = vmatprep.subr.mxu0 0.0
  %584 = vmatpush1.msra.mxu0 0.0
  %585 = vmatprep.subr.mxu0 0.0
  %586 = vmatpush1.msra.mxu0 0.0
  %587 = vmatprep.subr.mxu0 0.0
  %588 = vmatpush1.msra.mxu0 0.0
  %589 = vmatprep.subr.mxu0 0.0
  %590 = vmatpush1.msra.mxu0 0.0
  %591 = vmatprep.subr.mxu0 0.0
  %592 = vmatpush1.msra.mxu0 0.0
  %593 = vmatprep.subr.mxu0 0.0
  %594 = vmatpush1.msra.mxu0 0.0
  %595 = vmatprep.subr.mxu0 0.0
  %596 = vmatpush1.msra.mxu0 0.0
  %597 = vmatprep.subr.mxu0 0.0
  %598 = vmatpush1.msra.mxu0 0.0
  %599 = vmatprep.subr.mxu0 0.0
  %600 = vmatpush1.msra.mxu0 0.0
  %601 = vmatprep.subr.mxu0 0.0
  %602 = vmatpush1.msra.mxu0 0.0
  %603 = vmatprep.subr.mxu0 0.0
  %604 = vmatpush1.msra.mxu0 0.0
  %605 = vmatprep.subr.mxu0 0.0
  %606 = vmatpush1.msra.mxu0 0.0
  %607 = vmatprep.subr.mxu0 0.0
  %608 = vmatpush1.msra.mxu0 0.0
  %609 = vmatprep.subr.mxu0 0.0
  %610 = vmatpush1.msra.mxu0 0.0
  %611 = vmatprep.subr.mxu0 0.0
  %612 = vmatpush1.msra.mxu0 0.0
  %613 = vmatprep.subr.mxu0 0.0
  %614 = vmatpush1.msra.mxu0 0.0
  %615 = vmatprep.mubr.f32.mxu0 0.0
  %616 = vmatmul.mubr.f32.gmra.mrb[0].mxu0 %v475
  %v617 = vpop.f32.mrb[0].mxu0
  %v618 = vadd.f32 0.0, %v617
  %v619 = vpop.f32.mrb[0].mxu0
  %620 = vdwg.mxu0
  %v621 = vadd.f32 %v550, %v618
  %v622 = vtanh.pop %v621
  %v623 = vmul.f32 %v622, 0.5
  %v624 = vadd.f32 %v623, 0.5
  %v625 = vmul.f32 %v624, %v465
  %627 = vrot.lane.b32.xlu0 %v622, 64
  %v628 = vpop.permute.xlu0 %627
  %v630 = vmul.f32 %v624, %v628
  %632 = vrot.lane.b32.xlu0 %v630, 32
  %v633 = vpop.permute.xlu0 %632
  %v635 = vadd.f32 %v625, %v633
  %v636 = vtanh.pop %v635
  %638 = vrot.lane.b32.xlu0 %v636, 64
  %v639 = vpop.permute.xlu0 %638
  %v641 = vmul.f32 %v624, %v639
  %643 = vrot.lane.b32.xlu0 %v641, 32
  %v644 = vpop.permute.xlu0 %643
  %v645 = vsel %vm202, %v644, 0
  %647 = vmatprep.subr.mxu0 0.0
  %648 = vmatpush1.msra.mxu0 %v196
  %649 = vmatprep.subr.mxu0 0.0
  %650 = vmatpush1.msra.mxu0 %v197
  %651 = vmatprep.subr.mxu0 0.0
  %652 = vmatpush1.msra.mxu0 %v198
  %653 = vmatprep.subr.mxu0 0.0
  %654 = vmatpush1.msra.mxu0 %v199
  %655 = vmatprep.subr.mxu0 0.0
  %656 = vmatpush1.msra.mxu0 0.0
  %657 = vmatprep.subr.mxu0 0.0
  %658 = vmatpush1.msra.mxu0 0.0
  %659 = vmatprep.subr.mxu0 0.0
  %660 = vmatpush1.msra.mxu0 0.0
  %661 = vmatprep.subr.mxu0 0.0
  %662 = vmatpush1.msra.mxu0 0.0
  %663 = vmatprep.subr.mxu0 0.0
  %664 = vmatpush1.msra.mxu0 0.0
  %665 = vmatprep.subr.mxu0 0.0
  %666 = vmatpush1.msra.mxu0 0.0
  %667 = vmatprep.subr.mxu0 0.0
  %668 = vmatpush1.msra.mxu0 0.0
  %669 = vmatprep.subr.mxu0 0.0
  %670 = vmatpush1.msra.mxu0 0.0
  %671 = vmatprep.subr.mxu0 0.0
  %672 = vmatpush1.msra.mxu0 0.0
  %673 = vmatprep.subr.mxu0 0.0
  %674 = vmatpush1.msra.mxu0 0.0
  %675 = vmatprep.subr.mxu0 0.0
  %676 = vmatpush1.msra.mxu0 0.0
  %677 = vmatprep.subr.mxu0 0.0
  %678 = vmatpush1.msra.mxu0 0.0
  %679 = vmatprep.subr.mxu0 0.0
  %680 = vmatpush1.msra.mxu0 0.0
  %681 = vmatprep.subr.mxu0 0.0
  %682 = vmatpush1.msra.mxu0 0.0
  %683 = vmatprep.subr.mxu0 0.0
  %684 = vmatpush1.msra.mxu0 0.0
  %685 = vmatprep.subr.mxu0 0.0
  %686 = vmatpush1.msra.mxu0 0.0
  %687 = vmatprep.subr.mxu0 0.0
  %688 = vmatpush1.msra.mxu0 0.0
  %689 = vmatprep.subr.mxu0 0.0
  %690 = vmatpush1.msra.mxu0 0.0
  %691 = vmatprep.subr.mxu0 0.0
  %692 = vmatpush1.msra.mxu0 0.0
  %693 = vmatprep.subr.mxu0 0.0
  %694 = vmatpush1.msra.mxu0 0.0
  %695 = vmatprep.subr.mxu0 0.0
  %696 = vmatpush1.msra.mxu0 0.0
  %697 = vmatprep.subr.mxu0 0.0
  %698 = vmatpush1.msra.mxu0 0.0
  %699 = vmatprep.subr.mxu0 0.0
  %700 = vmatpush1.msra.mxu0 0.0
  %701 = vmatprep.subr.mxu0 0.0
  %702 = vmatpush1.msra.mxu0 0.0
  %703 = vmatprep.subr.mxu0 0.0
  %704 = vmatpush1.msra.mxu0 0.0
  %705 = vmatprep.subr.mxu0 0.0
  %706 = vmatpush1.msra.mxu0 0.0
  %707 = vmatprep.subr.mxu0 0.0
  %708 = vmatpush1.msra.mxu0 0.0
  %709 = vmatprep.subr.mxu0 0.0
  %710 = vmatpush1.msra.mxu0 0.0
  %711 = vmatprep.mubr.f32.mxu0 0.0
  %712 = vmatmul.mubr.f32.gmra.mrb[0].mxu0 %v645
  %v713 = vpop.f32.mrb[0].mxu0
  %v714 = vadd.f32 %v301, %v713
  %v715 = vpop.f32.mrb[0].mxu0
  %716 = vdwg.mxu0
  %s717 = scalar_lea.vmem [#allocation3], 16
  %718 = vst [vmem:[%s717] sm:$0xff] %v714
  %s719 = scalar_lea.vmem [#allocation2], 24
  %v720 = vld [vmem:[%s719] sm:$0xff]
  %721 = vmatprep.subr.mxu0 0.0
  %722 = vmatpush1.msra.mxu0 %v192
  %723 = vmatprep.subr.mxu0 0.0
  %724 = vmatpush1.msra.mxu0 %v193
  %725 = vmatprep.subr.mxu0 0.0
  %726 = vmatpush1.msra.mxu0 %v194
  %727 = vmatprep.subr.mxu0 0.0
  %728 = vmatpush1.msra.mxu0 %v195
  %729 = vmatprep.subr.mxu0 0.0
  %730 = vmatpush1.msra.mxu0 0.0
  %731 = vmatprep.subr.mxu0 0.0
  %732 = vmatpush1.msra.mxu0 0.0
  %733 = vmatprep.subr.mxu0 0.0
  %734 = vmatpush1.msra.mxu0 0.0
  %735 = vmatprep.subr.mxu0 0.0
  %736 = vmatpush1.msra.mxu0 0.0
  %737 = vmatprep.subr.mxu0 0.0
  %738 = vmatpush1.msra.mxu0 0.0
  %739 = vmatprep.subr.mxu0 0.0
  %740 = vmatpush1.msra.mxu0 0.0
  %741 = vmatprep.subr.mxu0 0.0
  %742 = vmatpush1.msra.mxu0 0.0
  %743 = vmatprep.subr.mxu0 0.0
  %744 = vmatpush1.msra.mxu0 0.0
  %745 = vmatprep.subr.mxu0 0.0
  %746 = vmatpush1.msra.mxu0 0.0
  %747 = vmatprep.subr.mxu0 0.0
  %748 = vmatpush1.msra.mxu0 0.0
  %749 = vmatprep.subr.mxu0 0.0
  %750 = vmatpush1.msra.mxu0 0.0
  %751 = vmatprep.subr.mxu0 0.0
  %752 = vmatpush1.msra.mxu0 0.0
  %753 = vmatprep.subr.mxu0 0.0
  %754 = vmatpush1.msra.mxu0 0.0
  %755 = vmatprep.subr.mxu0 0.0
  %756 = vmatpush1.msra.mxu0 0.0
  %757 = vmatprep.subr.mxu0 0.0
  %758 = vmatpush1.msra.mxu0 0.0
  %759 = vmatprep.subr.mxu0 0.0
  %760 = vmatpush1.msra.mxu0 0.0
  %761 = vmatprep.subr.mxu0 0.0
  %762 = vmatpush1.msra.mxu0 0.0
  %763 = vmatprep.subr.mxu0 0.0
  %764 = vmatpush1.msra.mxu0 0.0
  %765 = vmatprep.subr.mxu0 0.0
  %766 = vmatpush1.msra.mxu0 0.0
  %767 = vmatprep.subr.mxu0 0.0
  %768 = vmatpush1.msra.mxu0 0.0
  %769 = vmatprep.subr.mxu0 0.0
  %770 = vmatpush1.msra.mxu0 0.0
  %771 = vmatprep.subr.mxu0 0.0
  %772 = vmatpush1.msra.mxu0 0.0
  %773 = vmatprep.subr.mxu0 0.0
  %774 = vmatpush1.msra.mxu0 0.0
  %775 = vmatprep.subr.mxu0 0.0
  %776 = vmatpush1.msra.mxu0 0.0
  %777 = vmatprep.subr.mxu0 0.0
  %778 = vmatpush1.msra.mxu0 0.0
  %779 = vmatprep.subr.mxu0 0.0
  %780 = vmatpush1.msra.mxu0 0.0
  %781 = vmatprep.subr.mxu0 0.0
  %782 = vmatpush1.msra.mxu0 0.0
  %783 = vmatprep.subr.mxu0 0.0
  %784 = vmatpush1.msra.mxu0 0.0
  %785 = vmatprep.mubr.f32.mxu0 0.0
  %786 = vmatmul.mubr.f32.gmra.mrb[0].mxu0 %v645
  %v787 = vpop.f32.mrb[0].mxu0
  %v788 = vadd.f32 0.0, %v787
  %v789 = vpop.f32.mrb[0].mxu0
  %790 = vdwg.mxu0
  %v791 = vadd.f32 %v720, %v788
  %v792 = vtanh.pop %v791
  %v793 = vmul.f32 %v792, 0.5
  %v794 = vadd.f32 %v793, 0.5
  %v795 = vmul.f32 %v794, %v635
  %797 = vrot.lane.b32.xlu0 %v792, 64
  %v798 = vpop.permute.xlu0 %797
  %v800 = vmul.f32 %v794, %v798
  %802 = vrot.lane.b32.xlu0 %v800, 32
  %v803 = vpop.permute.xlu0 %802
  %v805 = vadd.f32 %v795, %v803
  %v806 = vtanh.pop %v805
  %808 = vrot.lane.b32.xlu0 %v806, 64
  %v809 = vpop.permute.xlu0 %808
  %v811 = vmul.f32 %v794, %v809
  %813 = vrot.lane.b32.xlu0 %v811, 32
  %v814 = vpop.permute.xlu0 %813
  %v815 = vsel %vm202, %v814, 0
  %817 = vmatprep.subr.mxu0 0.0
  %818 = vmatpush1.msra.mxu0 %v196
  %819 = vmatprep.subr.mxu0 0.0
  %820 = vmatpush1.msra.mxu0 %v197
  %821 = vmatprep.subr.mxu0 0.0
  %822 = vmatpush1.msra.mxu0 %v198
  %823 = vmatprep.subr.mxu0 0.0
  %824 = vmatpush1.msra.mxu0 %v199
  %825 = vmatprep.subr.mxu0 0.0
  %826 = vmatpush1.msra.mxu0 0.0
  %827 = vmatprep.subr.mxu0 0.0
  %828 = vmatpush1.msra.mxu0 0.0
  %829 = vmatprep.subr.mxu0 0.0
  %830 = vmatpush1.msra.mxu0 0.0
  %831 = vmatprep.subr.mxu0 0.0
  %832 = vmatpush1.msra.mxu0 0.0
  %833 = vmatprep.subr.mxu0 0.0
  %834 = vmatpush1.msra.mxu0 0.0
  %835 = vmatprep.subr.mxu0 0.0
  %836 = vmatpush1.msra.mxu0 0.0
  %837 = vmatprep.subr.mxu0 0.0
  %838 = vmatpush1.msra.mxu0 0.0
  %839 = vmatprep.subr.mxu0 0.0
  %840 = vmatpush1.msra.mxu0 0.0
  %841 = vmatprep.subr.mxu0 0.0
  %842 = vmatpush1.msra.mxu0 0.0
  %843 = vmatprep.subr.mxu0 0.0
  %844 = vmatpush1.msra.mxu0 0.0
  %845 = vmatprep.subr.mxu0 0.0
  %846 = vmatpush1.msra.mxu0 0.0
  %847 = vmatprep.subr.mxu0 0.0
  %848 = vmatpush1.msra.mxu0 0.0
  %849 = vmatprep.subr.mxu0 0.0
  %850 = vmatpush1.msra.mxu0 0.0
  %851 = vmatprep.subr.mxu0 0.0
  %852 = vmatpush1.msra.mxu0 0.0
  %853 = vmatprep.subr.mxu0 0.0
  %854 = vmatpush1.msra.mxu0 0.0
  %855 = vmatprep.subr.mxu0 0.0
  %856 = vmatpush1.msra.mxu0 0.0
  %857 = vmatprep.subr.mxu0 0.0
  %858 = vmatpush1.msra.mxu0 0.0
  %859 = vmatprep.subr.mxu0 0.0
  %860 = vmatpush1.msra.mxu0 0.0
  %861 = vmatprep.subr.mxu0 0.0
  %862 = vmatpush1.msra.mxu0 0.0
  %863 = vmatprep.subr.mxu0 0.0
  %864 = vmatpush1.msra.mxu0 0.0
  %865 = vmatprep.subr.mxu0 0.0
  %866 = vmatpush1.msra.mxu0 0.0
  %867 = vmatprep.subr.mxu0 0.0
  %868 = vmatpush1.msra.mxu0 0.0
  %869 = vmatprep.subr.mxu0 0.0
  %870 = vmatpush1.msra.mxu0 0.0
  %871 = vmatprep.subr.mxu0 0.0
  %872 = vmatpush1.msra.mxu0 0.0
  %873 = vmatprep.subr.mxu0 0.0
  %874 = vmatpush1.msra.mxu0 0.0
  %875 = vmatprep.subr.mxu0 0.0
  %876 = vmatpush1.msra.mxu0 0.0
  %877 = vmatprep.subr.mxu0 0.0
  %878 = vmatpush1.msra.mxu0 0.0
  %879 = vmatprep.subr.mxu0 0.0
  %880 = vmatpush1.msra.mxu0 0.0
  %881 = vmatprep.mubr.f32.mxu0 0.0
  %882 = vmatmul.mubr.f32.gmra.mrb[0].mxu0 %v815
  %v883 = vpop.f32.mrb[0].mxu0
  %v884 = vadd.f32 %v301, %v883
  %v885 = vpop.f32.mrb[0].mxu0
  %886 = vdwg.mxu0
  %s887 = scalar_lea.vmem [#allocation3], 24
  %888 = vst [vmem:[%s887] sm:$0xff] %v884
  %s889 = scalar_lea.vmem [#allocation2], 32
  %v890 = vld [vmem:[%s889] sm:$0xff]
  %891 = vmatprep.subr.mxu0 0.0
  %892 = vmatpush1.msra.mxu0 %v192
  %893 = vmatprep.subr.mxu0 0.0
  %894 = vmatpush1.msra.mxu0 %v193
  %895 = vmatprep.subr.mxu0 0.0
  %896 = vmatpush1.msra.mxu0 %v194
  %897 = vmatprep.subr.mxu0 0.0
  %898 = vmatpush1.msra.mxu0 %v195
  %899 = vmatprep.subr.mxu0 0.0
  %900 = vmatpush1.msra.mxu0 0.0
  %901 = vmatprep.subr.mxu0 0.0
  %902 = vmatpush1.msra.mxu0 0.0
  %903 = vmatprep.subr.mxu0 0.0
  %904 = vmatpush1.msra.mxu0 0.0
  %905 = vmatprep.subr.mxu0 0.0
  %906 = vmatpush1.msra.mxu0 0.0
  %907 = vmatprep.subr.mxu0 0.0
  %908 = vmatpush1.msra.mxu0 0.0
  %909 = vmatprep.subr.mxu0 0.0
  %910 = vmatpush1.msra.mxu0 0.0
  %911 = vmatprep.subr.mxu0 0.0
  %912 = vmatpush1.msra.mxu0 0.0
  %913 = vmatprep.subr.mxu0 0.0
  %914 = vmatpush1.msra.mxu0 0.0
  %915 = vmatprep.subr.mxu0 0.0
  %916 = vmatpush1.msra.mxu0 0.0
  %917 = vmatprep.subr.mxu0 0.0
  %918 = vmatpush1.msra.mxu0 0.0
  %919 = vmatprep.subr.mxu0 0.0
  %920 = vmatpush1.msra.mxu0 0.0
  %921 = vmatprep.subr.mxu0 0.0
  %922 = vmatpush1.msra.mxu0 0.0
  %923 = vmatprep.subr.mxu0 0.0
  %924 = vmatpush1.msra.mxu0 0.0
  %925 = vmatprep.subr.mxu0 0.0
  %926 = vmatpush1.msra.mxu0 0.0
  %927 = vmatprep.subr.mxu0 0.0
  %928 = vmatpush1.msra.mxu0 0.0
  %929 = vmatprep.subr.mxu0 0.0
  %930 = vmatpush1.msra.mxu0 0.0
  %931 = vmatprep.subr.mxu0 0.0
  %932 = vmatpush1.msra.mxu0 0.0
  %933 = vmatprep.subr.mxu0 0.0
  %934 = vmatpush1.msra.mxu0 0.0
  %935 = vmatprep.subr.mxu0 0.0
  %936 = vmatpush1.msra.mxu0 0.0
  %937 = vmatprep.subr.mxu0 0.0
  %938 = vmatpush1.msra.mxu0 0.0
  %939 = vmatprep.subr.mxu0 0.0
  %940 = vmatpush1.msra.mxu0 0.0
  %941 = vmatprep.subr.mxu0 0.0
  %942 = vmatpush1.msra.mxu0 0.0
  %943 = vmatprep.subr.mxu0 0.0
  %944 = vmatpush1.msra.mxu0 0.0
  %945 = vmatprep.subr.mxu0 0.0
  %946 = vmatpush1.msra.mxu0 0.0
  %947 = vmatprep.subr.mxu0 0.0
  %948 = vmatpush1.msra.mxu0 0.0
  %949 = vmatprep.subr.mxu0 0.0
  %950 = vmatpush1.msra.mxu0 0.0
  %951 = vmatprep.subr.mxu0 0.0
  %952 = vmatpush1.msra.mxu0 0.0
  %953 = vmatprep.subr.mxu0 0.0
  %954 = vmatpush1.msra.mxu0 0.0
  %955 = vmatprep.mubr.f32.mxu0 0.0
  %956 = vmatmul.mubr.f32.gmra.mrb[0].mxu0 %v815
  %v957 = vpop.f32.mrb[0].mxu0
  %v958 = vadd.f32 0.0, %v957
  %v959 = vpop.f32.mrb[0].mxu0
  %960 = vdwg.mxu0
  %v961 = vadd.f32 %v890, %v958
  %v962 = vtanh.pop %v961
  %v963 = vmul.f32 %v962, 0.5
  %v964 = vadd.f32 %v963, 0.5
  %v965 = vmul.f32 %v964, %v805
  %967 = vrot.lane.b32.xlu0 %v962, 64
  %v968 = vpop.permute.xlu0 %967
  %v970 = vmul.f32 %v964, %v968
  %972 = vrot.lane.b32.xlu0 %v970, 32
  %v973 = vpop.permute.xlu0 %972
  %v975 = vadd.f32 %v965, %v973
  %v976 = vtanh.pop %v975
  %978 = vrot.lane.b32.xlu0 %v976, 64
  %v979 = vpop.permute.xlu0 %978
  %v981 = vmul.f32 %v964, %v979
  %983 = vrot.lane.b32.xlu0 %v981, 32
  %v984 = vpop.permute.xlu0 %983
  %v985 = vsel %vm202, %v984, 0
  %987 = vmatprep.subr.mxu0 0.0
  %988 = vmatpush1.msra.mxu0 %v196
  %989 = vmatprep.subr.mxu0 0.0
  %990 = vmatpush1.msra.mxu0 %v197
  %991 = vmatprep.subr.mxu0 0.0
  %992 = vmatpush1.msra.mxu0 %v198
  %993 = vmatprep.subr.mxu0 0.0
  %994 = vmatpush1.msra.mxu0 %v199
  %995 = vmatprep.subr.mxu0 0.0
  %996 = vmatpush1.msra.mxu0 0.0
  %997 = vmatprep.subr.mxu0 0.0
  %998 = vmatpush1.msra.mxu0 0.0
  %999 = vmatprep.subr.mxu0 0.0
  %1000 = vmatpush1.msra.mxu0 0.0
  %1001 = vmatprep.subr.mxu0 0.0
  %1002 = vmatpush1.msra.mxu0 0.0
  %1003 = vmatprep.subr.mxu0 0.0
  %1004 = vmatpush1.msra.mxu0 0.0
  %1005 = vmatprep.subr.mxu0 0.0
  %1006 = vmatpush1.msra.mxu0 0.0
  %1007 = vmatprep.subr.mxu0 0.0
  %1008 = vmatpush1.msra.mxu0 0.0
  %1009 = vmatprep.subr.mxu0 0.0
  %1010 = vmatpush1.msra.mxu0 0.0
  %1011 = vmatprep.subr.mxu0 0.0
  %1012 = vmatpush1.msra.mxu0 0.0
  %1013 = vmatprep.subr.mxu0 0.0
  %1014 = vmatpush1.msra.mxu0 0.0
  %1015 = vmatprep.subr.mxu0 0.0
  %1016 = vmatpush1.msra.mxu0 0.0
  %1017 = vmatprep.subr.mxu0 0.0
  %1018 = vmatpush1.msra.mxu0 0.0
  %1019 = vmatprep.subr.mxu0 0.0
  %1020 = vmatpush1.msra.mxu0 0.0
  %1021 = vmatprep.subr.mxu0 0.0
  %1022 = vmatpush1.msra.mxu0 0.0
  %1023 = vmatprep.subr.mxu0 0.0
  %1024 = vmatpush1.msra.mxu0 0.0
  %1025 = vmatprep.subr.mxu0 0.0
  %1026 = vmatpush1.msra.mxu0 0.0
  %1027 = vmatprep.subr.mxu0 0.0
  %1028 = vmatpush1.msra.mxu0 0.0
  %1029 = vmatprep.subr.mxu0 0.0
  %1030 = vmatpush1.msra.mxu0 0.0
  %1031 = vmatprep.subr.mxu0 0.0
  %1032 = vmatpush1.msra.mxu0 0.0
  %1033 = vmatprep.subr.mxu0 0.0
  %1034 = vmatpush1.msra.mxu0 0.0
  %1035 = vmatprep.subr.mxu0 0.0
  %1036 = vmatpush1.msra.mxu0 0.0
  %1037 = vmatprep.subr.mxu0 0.0
  %1038 = vmatpush1.msra.mxu0 0.0
  %1039 = vmatprep.subr.mxu0 0.0
  %1040 = vmatpush1.msra.mxu0 0.0
  %1041 = vmatprep.subr.mxu0 0.0
  %1042 = vmatpush1.msra.mxu0 0.0
  %1043 = vmatprep.subr.mxu0 0.0
  %1044 = vmatpush1.msra.mxu0 0.0
  %1045 = vmatprep.subr.mxu0 0.0
  %1046 = vmatpush1.msra.mxu0 0.0
  %1047 = vmatprep.subr.mxu0 0.0
  %1048 = vmatpush1.msra.mxu0 0.0
  %1049 = vmatprep.subr.mxu0 0.0
  %1050 = vmatpush1.msra.mxu0 0.0
  %1051 = vmatprep.mubr.f32.mxu0 0.0
  %1052 = vmatmul.mubr.f32.gmra.mrb[0].mxu0 %v985
  %v1053 = vpop.f32.mrb[0].mxu0
  %v1054 = vadd.f32 %v301, %v1053
  %v1055 = vpop.f32.mrb[0].mxu0
  %1056 = vdwg.mxu0
  %s1057 = scalar_lea.vmem [#allocation3], 32
  %1058 = vst [vmem:[%s1057] sm:$0xff] %v1054
  %s1059 = scalar_lea.vmem [#allocation2], 40
  %v1060 = vld [vmem:[%s1059] sm:$0xff]
  %1061 = vmatprep.subr.mxu0 0.0
  %1062 = vmatpush1.msra.mxu0 %v192
  %1063 = vmatprep.subr.mxu0 0.0
  %1064 = vmatpush1.msra.mxu0 %v193
  %1065 = vmatprep.subr.mxu0 0.0
  %1066 = vmatpush1.msra.mxu0 %v194
  %1067 = vmatprep.subr.mxu0 0.0
  %1068 = vmatpush1.msra.mxu0 %v195
  %1069 = vmatprep.subr.mxu0 0.0
  %1070 = vmatpush1.msra.mxu0 0.0
  %1071 = vmatprep.subr.mxu0 0.0
  %1072 = vmatpush1.msra.mxu0 0.0
  %1073 = vmatprep.subr.mxu0 0.0
  %1074 = vmatpush1.msra.mxu0 0.0
  %1075 = vmatprep.subr.mxu0 0.0
  %1076 = vmatpush1.msra.mxu0 0.0
  %1077 = vmatprep.subr.mxu0 0.0
  %1078 = vmatpush1.msra.mxu0 0.0
  %1079 = vmatprep.subr.mxu0 0.0
  %1080 = vmatpush1.msra.mxu0 0.0
  %1081 = vmatprep.subr.mxu0 0.0
  %1082 = vmatpush1.msra.mxu0 0.0
  %1083 = vmatprep.subr.mxu0 0.0
  %1084 = vmatpush1.msra.mxu0 0.0
  %1085 = vmatprep.subr.mxu0 0.0
  %1086 = vmatpush1.msra.mxu0 0.0
  %1087 = vmatprep.subr.mxu0 0.0
  %1088 = vmatpush1.msra.mxu0 0.0
  %1089 = vmatprep.subr.mxu0 0.0
  %1090 = vmatpush1.msra.mxu0 0.0
  %1091 = vmatprep.subr.mxu0 0.0
  %1092 = vmatpush1.msra.mxu0 0.0
  %1093 = vmatprep.subr.mxu0 0.0
  %1094 = vmatpush1.msra.mxu0 0.0
  %1095 = vmatprep.subr.mxu0 0.0
  %1096 = vmatpush1.msra.mxu0 0.0
  %1097 = vmatprep.subr.mxu0 0.0
  %1098 = vmatpush1.msra.mxu0 0.0
  %1099 = vmatprep.subr.mxu0 0.0
  %1100 = vmatpush1.msra.mxu0 0.0
  %1101 = vmatprep.subr.mxu0 0.0
  %1102 = vmatpush1.msra.mxu0 0.0
  %1103 = vmatprep.subr.mxu0 0.0
  %1104 = vmatpush1.msra.mxu0 0.0
  %1105 = vmatprep.subr.mxu0 0.0
  %1106 = vmatpush1.msra.mxu0 0.0
  %1107 = vmatprep.subr.mxu0 0.0
  %1108 = vmatpush1.msra.mxu0 0.0
  %1109 = vmatprep.subr.mxu0 0.0
  %1110 = vmatpush1.msra.mxu0 0.0
  %1111 = vmatprep.subr.mxu0 0.0
  %1112 = vmatpush1.msra.mxu0 0.0
  %1113 = vmatprep.subr.mxu0 0.0
  %1114 = vmatpush1.msra.mxu0 0.0
  %1115 = vmatprep.subr.mxu0 0.0
  %1116 = vmatpush1.msra.mxu0 0.0
  %1117 = vmatprep.subr.mxu0 0.0
  %1118 = vmatpush1.msra.mxu0 0.0
  %1119 = vmatprep.subr.mxu0 0.0
  %1120 = vmatpush1.msra.mxu0 0.0
  %1121 = vmatprep.subr.mxu0 0.0
  %1122 = vmatpush1.msra.mxu0 0.0
  %1123 = vmatprep.subr.mxu0 0.0
  %1124 = vmatpush1.msra.mxu0 0.0
  %1125 = vmatprep.mubr.f32.mxu0 0.0
  %1126 = vmatmul.mubr.f32.gmra.mrb[0].mxu0 %v985
  %v1127 = vpop.f32.mrb[0].mxu0
  %v1128 = vadd.f32 0.0, %v1127
  %v1129 = vpop.f32.mrb[0].mxu0
  %1130 = vdwg.mxu0
  %v1131 = vadd.f32 %v1060, %v1128
  %v1132 = vtanh.pop %v1131
  %v1133 = vmul.f32 %v1132, 0.5
  %v1134 = vadd.f32 %v1133, 0.5
  %v1135 = vmul.f32 %v1134, %v975
  %1137 = vrot.lane.b32.xlu0 %v1132, 64
  %v1138 = vpop.permute.xlu0 %1137
  %v1140 = vmul.f32 %v1134, %v1138
  %1142 = vrot.lane.b32.xlu0 %v1140, 32
  %v1143 = vpop.permute.xlu0 %1142
  %v1145 = vadd.f32 %v1135, %v1143
  %v1146 = vtanh.pop %v1145
  %1148 = vrot.lane.b32.xlu0 %v1146, 64
  %v1149 = vpop.permute.xlu0 %1148
  %v1151 = vmul.f32 %v1134, %v1149
  %1153 = vrot.lane.b32.xlu0 %v1151, 32
  %v1154 = vpop.permute.xlu0 %1153
  %v1155 = vsel %vm202, %v1154, 0
  %1157 = vmatprep.subr.mxu0 0.0
  %1158 = vmatpush1.msra.mxu0 %v196
  %1159 = vmatprep.subr.mxu0 0.0
  %1160 = vmatpush1.msra.mxu0 %v197
  %1161 = vmatprep.subr.mxu0 0.0
  %1162 = vmatpush1.msra.mxu0 %v198
  %1163 = vmatprep.subr.mxu0 0.0
  %1164 = vmatpush1.msra.mxu0 %v199
  %1165 = vmatprep.subr.mxu0 0.0
  %1166 = vmatpush1.msra.mxu0 0.0
  %1167 = vmatprep.subr.mxu0 0.0
  %1168 = vmatpush1.msra.mxu0 0.0
  %1169 = vmatprep.subr.mxu0 0.0
  %1170 = vmatpush1.msra.mxu0 0.0
  %1171 = vmatprep.subr.mxu0 0.0
  %1172 = vmatpush1.msra.mxu0 0.0
  %1173 = vmatprep.subr.mxu0 0.0
  %1174 = vmatpush1.msra.mxu0 0.0
  %1175 = vmatprep.subr.mxu0 0.0
  %1176 = vmatpush1.msra.mxu0 0.0
  %1177 = vmatprep.subr.mxu0 0.0
  %1178 = vmatpush1.msra.mxu0 0.0
  %1179 = vmatprep.subr.mxu0 0.0
  %1180 = vmatpush1.msra.mxu0 0.0
  %1181 = vmatprep.subr.mxu0 0.0
  %1182 = vmatpush1.msra.mxu0 0.0
  %1183 = vmatprep.subr.mxu0 0.0
  %1184 = vmatpush1.msra.mxu0 0.0
  %1185 = vmatprep.subr.mxu0 0.0
  %1186 = vmatpush1.msra.mxu0 0.0
  %1187 = vmatprep.subr.mxu0 0.0
  %1188 = vmatpush1.msra.mxu0 0.0
  %1189 = vmatprep.subr.mxu0 0.0
  %1190 = vmatpush1.msra.mxu0 0.0
  %1191 = vmatprep.subr.mxu0 0.0
  %1192 = vmatpush1.msra.mxu0 0.0
  %1193 = vmatprep.subr.mxu0 0.0
  %1194 = vmatpush1.msra.mxu0 0.0
  %1195 = vmatprep.subr.mxu0 0.0
  %1196 = vmatpush1.msra.mxu0 0.0
  %1197 = vmatprep.subr.mxu0 0.0
  %1198 = vmatpush1.msra.mxu0 0.0
  %1199 = vmatprep.subr.mxu0 0.0
  %1200 = vmatpush1.msra.mxu0 0.0
  %1201 = vmatprep.subr.mxu0 0.0
  %1202 = vmatpush1.msra.mxu0 0.0
  %1203 = vmatprep.subr.mxu0 0.0
  %1204 = vmatpush1.msra.mxu0 0.0
  %1205 = vmatprep.subr.mxu0 0.0
  %1206 = vmatpush1.msra.mxu0 0.0
  %1207 = vmatprep.subr.mxu0 0.0
  %1208 = vmatpush1.msra.mxu0 0.0
  %1209 = vmatprep.subr.mxu0 0.0
  %1210 = vmatpush1.msra.mxu0 0.0
  %1211 = vmatprep.subr.mxu0 0.0
  %1212 = vmatpush1.msra.mxu0 0.0
  %1213 = vmatprep.subr.mxu0 0.0
  %1214 = vmatpush1.msra.mxu0 0.0
  %1215 = vmatprep.subr.mxu0 0.0
  %1216 = vmatpush1.msra.mxu0 0.0
  %1217 = vmatprep.subr.mxu0 0.0
  %1218 = vmatpush1.msra.mxu0 0.0
  %1219 = vmatprep.subr.mxu0 0.0
  %1220 = vmatpush1.msra.mxu0 0.0
  %1221 = vmatprep.mubr.f32.mxu0 0.0
  %1222 = vmatmul.mubr.f32.gmra.mrb[0].mxu0 %v1155
  %v1223 = vpop.f32.mrb[0].mxu0
  %v1224 = vadd.f32 %v301, %v1223
  %v1225 = vpop.f32.mrb[0].mxu0
  %1226 = vdwg.mxu0
  %s1227 = scalar_lea.vmem [#allocation3], 40
  %1228 = vst [vmem:[%s1227] sm:$0xff] %v1224
  %s1229 = scalar_lea.vmem [#allocation2], 48
  %v1230 = vld [vmem:[%s1229] sm:$0xff]
  %1231 = vmatprep.subr.mxu0 0.0
  %1232 = vmatpush1.msra.mxu0 %v192
  %1233 = vmatprep.subr.mxu0 0.0
  %1234 = vmatpush1.msra.mxu0 %v193
  %1235 = vmatprep.subr.mxu0 0.0
  %1236 = vmatpush1.msra.mxu0 %v194
  %1237 = vmatprep.subr.mxu0 0.0
  %1238 = vmatpush1.msra.mxu0 %v195
  %1239 = vmatprep.subr.mxu0 0.0
  %1240 = vmatpush1.msra.mxu0 0.0
  %1241 = vmatprep.subr.mxu0 0.0
  %1242 = vmatpush1.msra.mxu0 0.0
  %1243 = vmatprep.subr.mxu0 0.0
  %1244 = vmatpush1.msra.mxu0 0.0
  %1245 = vmatprep.subr.mxu0 0.0
  %1246 = vmatpush1.msra.mxu0 0.0
  %1247 = vmatprep.subr.mxu0 0.0
  %1248 = vmatpush1.msra.mxu0 0.0
  %1249 = vmatprep.subr.mxu0 0.0
  %1250 = vmatpush1.msra.mxu0 0.0
  %1251 = vmatprep.subr.mxu0 0.0
  %1252 = vmatpush1.msra.mxu0 0.0
  %1253 = vmatprep.subr.mxu0 0.0
  %1254 = vmatpush1.msra.mxu0 0.0
  %1255 = vmatprep.subr.mxu0 0.0
  %1256 = vmatpush1.msra.mxu0 0.0
  %1257 = vmatprep.subr.mxu0 0.0
  %1258 = vmatpush1.msra.mxu0 0.0
  %1259 = vmatprep.subr.mxu0 0.0
  %1260 = vmatpush1.msra.mxu0 0.0
  %1261 = vmatprep.subr.mxu0 0.0
  %1262 = vmatpush1.msra.mxu0 0.0
  %1263 = vmatprep.subr.mxu0 0.0
  %1264 = vmatpush1.msra.mxu0 0.0
  %1265 = vmatprep.subr.mxu0 0.0
  %1266 = vmatpush1.msra.mxu0 0.0
  %1267 = vmatprep.subr.mxu0 0.0
  %1268 = vmatpush1.msra.mxu0 0.0
  %1269 = vmatprep.subr.mxu0 0.0
  %1270 = vmatpush1.msra.mxu0 0.0
  %1271 = vmatprep.subr.mxu0 0.0
  %1272 = vmatpush1.msra.mxu0 0.0
  %1273 = vmatprep.subr.mxu0 0.0
  %1274 = vmatpush1.msra.mxu0 0.0
  %1275 = vmatprep.subr.mxu0 0.0
  %1276 = vmatpush1.msra.mxu0 0.0
  %1277 = vmatprep.subr.mxu0 0.0
  %1278 = vmatpush1.msra.mxu0 0.0
  %1279 = vmatprep.subr.mxu0 0.0
  %1280 = vmatpush1.msra.mxu0 0.0
  %1281 = vmatprep.subr.mxu0 0.0
  %1282 = vmatpush1.msra.mxu0 0.0
  %1283 = vmatprep.subr.mxu0 0.0
  %1284 = vmatpush1.msra.mxu0 0.0
  %1285 = vmatprep.subr.mxu0 0.0
  %1286 = vmatpush1.msra.mxu0 0.0
  %1287 = vmatprep.subr.mxu0 0.0
  %1288 = vmatpush1.msra.mxu0 0.0
  %1289 = vmatprep.subr.mxu0 0.0
  %1290 = vmatpush1.msra.mxu0 0.0
  %1291 = vmatprep.subr.mxu0 0.0
  %1292 = vmatpush1.msra.mxu0 0.0
  %1293 = vmatprep.subr.mxu0 0.0
  %1294 = vmatpush1.msra.mxu0 0.0
  %1295 = vmatprep.mubr.f32.mxu0 0.0
  %1296 = vmatmul.mubr.f32.gmra.mrb[0].mxu0 %v1155
  %v1297 = vpop.f32.mrb[0].mxu0
  %v1298 = vadd.f32 0.0, %v1297
  %v1299 = vpop.f32.mrb[0].mxu0
  %1300 = vdwg.mxu0
  %v1301 = vadd.f32 %v1230, %v1298
  %v1302 = vtanh.pop %v1301
  %v1303 = vmul.f32 %v1302, 0.5
  %v1304 = vadd.f32 %v1303, 0.5
  %v1305 = vmul.f32 %v1304, %v1145
  %1307 = vrot.lane.b32.xlu0 %v1302, 64
  %v1308 = vpop.permute.xlu0 %1307
  %v1310 = vmul.f32 %v1304, %v1308
  %1312 = vrot.lane.b32.xlu0 %v1310, 32
  %v1313 = vpop.permute.xlu0 %1312
  %v1315 = vadd.f32 %v1305, %v1313
  %v1316 = vtanh.pop %v1315
  %1318 = vrot.lane.b32.xlu0 %v1316, 64
  %v1319 = vpop.permute.xlu0 %1318
  %v1321 = vmul.f32 %v1304, %v1319
  %1323 = vrot.lane.b32.xlu0 %v1321, 32
  %v1324 = vpop.permute.xlu0 %1323
  %v1325 = vsel %vm202, %v1324, 0
  %1327 = vmatprep.subr.mxu0 0.0
  %1328 = vmatpush1.msra.mxu0 %v196
  %1329 = vmatprep.subr.mxu0 0.0
  %1330 = vmatpush1.msra.mxu0 %v197
  %1331 = vmatprep.subr.mxu0 0.0
  %1332 = vmatpush1.msra.mxu0 %v198
  %1333 = vmatprep.subr.mxu0 0.0
  %1334 = vmatpush1.msra.mxu0 %v199
  %1335 = vmatprep.subr.mxu0 0.0
  %1336 = vmatpush1.msra.mxu0 0.0
  %1337 = vmatprep.subr.mxu0 0.0
  %1338 = vmatpush1.msra.mxu0 0.0
  %1339 = vmatprep.subr.mxu0 0.0
  %1340 = vmatpush1.msra.mxu0 0.0
  %1341 = vmatprep.subr.mxu0 0.0
  %1342 = vmatpush1.msra.mxu0 0.0
  %1343 = vmatprep.subr.mxu0 0.0
  %1344 = vmatpush1.msra.mxu0 0.0
  %1345 = vmatprep.subr.mxu0 0.0
  %1346 = vmatpush1.msra.mxu0 0.0
  %1347 = vmatprep.subr.mxu0 0.0
  %1348 = vmatpush1.msra.mxu0 0.0
  %1349 = vmatprep.subr.mxu0 0.0
  %1350 = vmatpush1.msra.mxu0 0.0
  %1351 = vmatprep.subr.mxu0 0.0
  %1352 = vmatpush1.msra.mxu0 0.0
  %1353 = vmatprep.subr.mxu0 0.0
  %1354 = vmatpush1.msra.mxu0 0.0
  %1355 = vmatprep.subr.mxu0 0.0
  %1356 = vmatpush1.msra.mxu0 0.0
  %1357 = vmatprep.subr.mxu0 0.0
  %1358 = vmatpush1.msra.mxu0 0.0
  %1359 = vmatprep.subr.mxu0 0.0
  %1360 = vmatpush1.msra.mxu0 0.0
  %1361 = vmatprep.subr.mxu0 0.0
  %1362 = vmatpush1.msra.mxu0 0.0
  %1363 = vmatprep.subr.mxu0 0.0
  %1364 = vmatpush1.msra.mxu0 0.0
  %1365 = vmatprep.subr.mxu0 0.0
  %1366 = vmatpush1.msra.mxu0 0.0
  %1367 = vmatprep.subr.mxu0 0.0
  %1368 = vmatpush1.msra.mxu0 0.0
  %1369 = vmatprep.subr.mxu0 0.0
  %1370 = vmatpush1.msra.mxu0 0.0
  %1371 = vmatprep.subr.mxu0 0.0
  %1372 = vmatpush1.msra.mxu0 0.0
  %1373 = vmatprep.subr.mxu0 0.0
  %1374 = vmatpush1.msra.mxu0 0.0
  %1375 = vmatprep.subr.mxu0 0.0
  %1376 = vmatpush1.msra.mxu0 0.0
  %1377 = vmatprep.subr.mxu0 0.0
  %1378 = vmatpush1.msra.mxu0 0.0
  %1379 = vmatprep.subr.mxu0 0.0
  %1380 = vmatpush1.msra.mxu0 0.0
  %1381 = vmatprep.subr.mxu0 0.0
  %1382 = vmatpush1.msra.mxu0 0.0
  %1383 = vmatprep.subr.mxu0 0.0
  %1384 = vmatpush1.msra.mxu0 0.0
  %1385 = vmatprep.subr.mxu0 0.0
  %1386 = vmatpush1.msra.mxu0 0.0
  %1387 = vmatprep.subr.mxu0 0.0
  %1388 = vmatpush1.msra.mxu0 0.0
  %1389 = vmatprep.subr.mxu0 0.0
  %1390 = vmatpush1.msra.mxu0 0.0
  %1391 = vmatprep.mubr.f32.mxu0 0.0
  %1392 = vmatmul.mubr.f32.gmra.mrb[0].mxu0 %v1325
  %v1393 = vpop.f32.mrb[0].mxu0
  %v1394 = vadd.f32 %v301, %v1393
  %v1395 = vpop.f32.mrb[0].mxu0
  %1396 = vdwg.mxu0
  %s1397 = scalar_lea.vmem [#allocation3], 48
  %1398 = vst [vmem:[%s1397] sm:$0xff] %v1394
  %s1399 = scalar_lea.vmem [#allocation2], 56
  %v1400 = vld [vmem:[%s1399] sm:$0xff]
  %1401 = vmatprep.subr.mxu0 0.0
  %1402 = vmatpush1.msra.mxu0 %v192
  %1403 = vmatprep.subr.mxu0 0.0
  %1404 = vmatpush1.msra.mxu0 %v193
  %1405 = vmatprep.subr.mxu0 0.0
  %1406 = vmatpush1.msra.mxu0 %v194
  %1407 = vmatprep.subr.mxu0 0.0
  %1408 = vmatpush1.msra.mxu0 %v195
  %1409 = vmatprep.subr.mxu0 0.0
  %1410 = vmatpush1.msra.mxu0 0.0
  %1411 = vmatprep.subr.mxu0 0.0
  %1412 = vmatpush1.msra.mxu0 0.0
  %1413 = vmatprep.subr.mxu0 0.0
  %1414 = vmatpush1.msra.mxu0 0.0
  %1415 = vmatprep.subr.mxu0 0.0
  %1416 = vmatpush1.msra.mxu0 0.0
  %1417 = vmatprep.subr.mxu0 0.0
  %1418 = vmatpush1.msra.mxu0 0.0
  %1419 = vmatprep.subr.mxu0 0.0
  %1420 = vmatpush1.msra.mxu0 0.0
  %1421 = vmatprep.subr.mxu0 0.0
  %1422 = vmatpush1.msra.mxu0 0.0
  %1423 = vmatprep.subr.mxu0 0.0
  %1424 = vmatpush1.msra.mxu0 0.0
  %1425 = vmatprep.subr.mxu0 0.0
  %1426 = vmatpush1.msra.mxu0 0.0
  %1427 = vmatprep.subr.mxu0 0.0
  %1428 = vmatpush1.msra.mxu0 0.0
  %1429 = vmatprep.subr.mxu0 0.0
  %1430 = vmatpush1.msra.mxu0 0.0
  %1431 = vmatprep.subr.mxu0 0.0
  %1432 = vmatpush1.msra.mxu0 0.0
  %1433 = vmatprep.subr.mxu0 0.0
  %1434 = vmatpush1.msra.mxu0 0.0
  %1435 = vmatprep.subr.mxu0 0.0
  %1436 = vmatpush1.msra.mxu0 0.0
  %1437 = vmatprep.subr.mxu0 0.0
  %1438 = vmatpush1.msra.mxu0 0.0
  %1439 = vmatprep.subr.mxu0 0.0
  %1440 = vmatpush1.msra.mxu0 0.0
  %1441 = vmatprep.subr.mxu0 0.0
  %1442 = vmatpush1.msra.mxu0 0.0
  %1443 = vmatprep.subr.mxu0 0.0
  %1444 = vmatpush1.msra.mxu0 0.0
  %1445 = vmatprep.subr.mxu0 0.0
  %1446 = vmatpush1.msra.mxu0 0.0
  %1447 = vmatprep.subr.mxu0 0.0
  %1448 = vmatpush1.msra.mxu0 0.0
  %1449 = vmatprep.subr.mxu0 0.0
  %1450 = vmatpush1.msra.mxu0 0.0
  %1451 = vmatprep.subr.mxu0 0.0
  %1452 = vmatpush1.msra.mxu0 0.0
  %1453 = vmatprep.subr.mxu0 0.0
  %1454 = vmatpush1.msra.mxu0 0.0
  %1455 = vmatprep.subr.mxu0 0.0
  %1456 = vmatpush1.msra.mxu0 0.0
  %1457 = vmatprep.subr.mxu0 0.0
  %1458 = vmatpush1.msra.mxu0 0.0
  %1459 = vmatprep.subr.mxu0 0.0
  %1460 = vmatpush1.msra.mxu0 0.0
  %1461 = vmatprep.subr.mxu0 0.0
  %1462 = vmatpush1.msra.mxu0 0.0
  %1463 = vmatprep.subr.mxu0 0.0
  %1464 = vmatpush1.msra.mxu0 0.0
  %1465 = vmatprep.mubr.f32.mxu0 0.0
  %1466 = vmatmul.mubr.f32.gmra.mrb[0].mxu0 %v1325
  %v1467 = vpop.f32.mrb[0].mxu0
  %v1468 = vadd.f32 0.0, %v1467
  %v1469 = vpop.f32.mrb[0].mxu0
  %1470 = vdwg.mxu0
  %v1471 = vadd.f32 %v1400, %v1468
  %v1472 = vtanh.pop %v1471
  %v1473 = vmul.f32 %v1472, 0.5
  %v1474 = vadd.f32 %v1473, 0.5
  %v1475 = vmul.f32 %v1474, %v1315
  %1477 = vrot.lane.b32.xlu0 %v1472, 64
  %v1478 = vpop.permute.xlu0 %1477
  %v1480 = vmul.f32 %v1474, %v1478
  %1482 = vrot.lane.b32.xlu0 %v1480, 32
  %v1483 = vpop.permute.xlu0 %1482
  %v1485 = vadd.f32 %v1475, %v1483
  %v1486 = vtanh.pop %v1485
  %1488 = vrot.lane.b32.xlu0 %v1486, 64
  %v1489 = vpop.permute.xlu0 %1488
  %v1491 = vmul.f32 %v1474, %v1489
  %1493 = vrot.lane.b32.xlu0 %v1491, 32
  %v1494 = vpop.permute.xlu0 %1493
  %v1495 = vsel %vm202, %v1494, 0
  %1497 = vmatprep.subr.mxu0 0.0
  %1498 = vmatpush1.msra.mxu0 %v196
  %1499 = vmatprep.subr.mxu0 0.0
  %1500 = vmatpush1.msra.mxu0 %v197
  %1501 = vmatprep.subr.mxu0 0.0
  %1502 = vmatpush1.msra.mxu0 %v198
  %1503 = vmatprep.subr.mxu0 0.0
  %1504 = vmatpush1.msra.mxu0 %v199
  %1505 = vmatprep.subr.mxu0 0.0
  %1506 = vmatpush1.msra.mxu0 0.0
  %1507 = vmatprep.subr.mxu0 0.0
  %1508 = vmatpush1.msra.mxu0 0.0
  %1509 = vmatprep.subr.mxu0 0.0
  %1510 = vmatpush1.msra.mxu0 0.0
  %1511 = vmatprep.subr.mxu0 0.0
  %1512 = vmatpush1.msra.mxu0 0.0
  %1513 = vmatprep.subr.mxu0 0.0
  %1514 = vmatpush1.msra.mxu0 0.0
  %1515 = vmatprep.subr.mxu0 0.0
  %1516 = vmatpush1.msra.mxu0 0.0
  %1517 = vmatprep.subr.mxu0 0.0
  %1518 = vmatpush1.msra.mxu0 0.0
  %1519 = vmatprep.subr.mxu0 0.0
  %1520 = vmatpush1.msra.mxu0 0.0
  %1521 = vmatprep.subr.mxu0 0.0
  %1522 = vmatpush1.msra.mxu0 0.0
  %1523 = vmatprep.subr.mxu0 0.0
  %1524 = vmatpush1.msra.mxu0 0.0
  %1525 = vmatprep.subr.mxu0 0.0
  %1526 = vmatpush1.msra.mxu0 0.0
  %1527 = vmatprep.subr.mxu0 0.0
  %1528 = vmatpush1.msra.mxu0 0.0
  %1529 = vmatprep.subr.mxu0 0.0
  %1530 = vmatpush1.msra.mxu0 0.0
  %1531 = vmatprep.subr.mxu0 0.0
  %1532 = vmatpush1.msra.mxu0 0.0
  %1533 = vmatprep.subr.mxu0 0.0
  %1534 = vmatpush1.msra.mxu0 0.0
  %1535 = vmatprep.subr.mxu0 0.0
  %1536 = vmatpush1.msra.mxu0 0.0
  %1537 = vmatprep.subr.mxu0 0.0
  %1538 = vmatpush1.msra.mxu0 0.0
  %1539 = vmatprep.subr.mxu0 0.0
  %1540 = vmatpush1.msra.mxu0 0.0
  %1541 = vmatprep.subr.mxu0 0.0
  %1542 = vmatpush1.msra.mxu0 0.0
  %1543 = vmatprep.subr.mxu0 0.0
  %1544 = vmatpush1.msra.mxu0 0.0
  %1545 = vmatprep.subr.mxu0 0.0
  %1546 = vmatpush1.msra.mxu0 0.0
  %1547 = vmatprep.subr.mxu0 0.0
  %1548 = vmatpush1.msra.mxu0 0.0
  %1549 = vmatprep.subr.mxu0 0.0
  %1550 = vmatpush1.msra.mxu0 0.0
  %1551 = vmatprep.subr.mxu0 0.0
  %1552 = vmatpush1.msra.mxu0 0.0
  %1553 = vmatprep.subr.mxu0 0.0
  %1554 = vmatpush1.msra.mxu0 0.0
  %1555 = vmatprep.subr.mxu0 0.0
  %1556 = vmatpush1.msra.mxu0 0.0
  %1557 = vmatprep.subr.mxu0 0.0
  %1558 = vmatpush1.msra.mxu0 0.0
  %1559 = vmatprep.subr.mxu0 0.0
  %1560 = vmatpush1.msra.mxu0 0.0
  %1561 = vmatprep.mubr.f32.mxu0 0.0
  %1562 = vmatmul.mubr.f32.gmra.mrb[0].mxu0 %v1495
  %v1563 = vpop.f32.mrb[0].mxu0
  %v1564 = vadd.f32 %v301, %v1563
  %v1565 = vpop.f32.mrb[0].mxu0
  %1566 = vdwg.mxu0
  %s1567 = scalar_lea.vmem [#allocation3], 56
  %1568 = vst [vmem:[%s1567] sm:$0xff] %v1564
  %v1569 = vld [vmem:[%s5] sm:$0xff]
  %v1570 = vld [vmem:[%s5 + $0x8] sm:$0xff]
  %v1571 = vld [vmem:[%s5 + $0x10] sm:$0xff]
  %v1572 = vld [vmem:[%s5 + $0x18] sm:$0xff]
  %v1573 = vld [vmem:[#allocation3] sm:$0xff]
  %1574 = vmatprep.subr.mxu0 0.0
  %1575 = vmatpush1.msra.mxu0 %v1569
  %1576 = vmatprep.subr.mxu0 0.0
  %1577 = vmatpush1.msra.mxu0 %v1570
  %1578 = vmatprep.subr.mxu0 0.0
  %1579 = vmatpush1.msra.mxu0 %v1571
  %1580 = vmatprep.subr.mxu0 0.0
  %1581 = vmatpush1.msra.mxu0 %v1572
  %1582 = vmatprep.subr.mxu0 0.0
  %1583 = vmatpush1.msra.mxu0 0.0
  %1584 = vmatprep.subr.mxu0 0.0
  %1585 = vmatpush1.msra.mxu0 0.0
  %1586 = vmatprep.subr.mxu0 0.0
  %1587 = vmatpush1.msra.mxu0 0.0
  %1588 = vmatprep.subr.mxu0 0.0
  %1589 = vmatpush1.msra.mxu0 0.0
  %1590 = vmatprep.subr.mxu0 0.0
  %1591 = vmatpush1.msra.mxu0 0.0
  %1592 = vmatprep.subr.mxu0 0.0
  %1593 = vmatpush1.msra.mxu0 0.0
  %1594 = vmatprep.subr.mxu0 0.0
  %1595 = vmatpush1.msra.mxu0 0.0
  %1596 = vmatprep.subr.mxu0 0.0
  %1597 = vmatpush1.msra.mxu0 0.0
  %1598 = vmatprep.subr.mxu0 0.0
  %1599 = vmatpush1.msra.mxu0 0.0
  %1600 = vmatprep.subr.mxu0 0.0
  %1601 = vmatpush1.msra.mxu0 0.0
  %1602 = vmatprep.subr.mxu0 0.0
  %1603 = vmatpush1.msra.mxu0 0.0
  %1604 = vmatprep.subr.mxu0 0.0
  %1605 = vmatpush1.msra.mxu0 0.0
  %1606 = vmatprep.subr.mxu0 0.0
  %1607 = vmatpush1.msra.mxu0 0.0
  %1608 = vmatprep.subr.mxu0 0.0
  %1609 = vmatpush1.msra.mxu0 0.0
  %1610 = vmatprep.subr.mxu0 0.0
  %1611 = vmatpush1.msra.mxu0 0.0
  %1612 = vmatprep.subr.mxu0 0.0
  %1613 = vmatpush1.msra.mxu0 0.0
  %1614 = vmatprep.subr.mxu0 0.0
  %1615 = vmatpush1.msra.mxu0 0.0
  %1616 = vmatprep.subr.mxu0 0.0
  %1617 = vmatpush1.msra.mxu0 0.0
  %1618 = vmatprep.subr.mxu0 0.0
  %1619 = vmatpush1.msra.mxu0 0.0
  %1620 = vmatprep.subr.mxu0 0.0
  %1621 = vmatpush1.msra.mxu0 0.0
  %1622 = vmatprep.subr.mxu0 0.0
  %1623 = vmatpush1.msra.mxu0 0.0
  %1624 = vmatprep.subr.mxu0 0.0
  %1625 = vmatpush1.msra.mxu0 0.0
  %1626 = vmatprep.subr.mxu0 0.0
  %1627 = vmatpush1.msra.mxu0 0.0
  %1628 = vmatprep.subr.mxu0 0.0
  %1629 = vmatpush1.msra.mxu0 0.0
  %1630 = vmatprep.subr.mxu0 0.0
  %1631 = vmatpush1.msra.mxu0 0.0
  %1632 = vmatprep.subr.mxu0 0.0
  %1633 = vmatpush1.msra.mxu0 0.0
  %1634 = vmatprep.subr.mxu0 0.0
  %1635 = vmatpush1.msra.mxu0 0.0
  %1636 = vmatprep.subr.mxu0 0.0
  %1637 = vmatpush1.msra.mxu0 0.0
  %1638 = vmatprep.mubr.f32.mxu0 0.0
  %1639 = vmatmul.mubr.f32.gmra.mrb[0].mxu0 %v204
  %v1640 = vpop.f32.mrb[0].mxu0
  %v1641 = vadd.f32 0.0, %v1640
  %v1642 = vpop.f32.mrb[0].mxu0
  %1643 = vdwg.mxu0
  %v1644 = vadd.f32 %v1573, %v1641
  %v1645 = vtanh.pop %v1644
  %v1646 = vmul.f32 %v1645, 0.5
  %v1647 = vadd.f32 %v1646, 0.5
  %v1648 = vmul.f32 %v1647, 0.0
  %1650 = vrot.lane.b32.xlu0 %v1645, 64
  %v1651 = vpop.permute.xlu0 %1650
  %v1653 = vmul.f32 %v1647, %v1651
  %1655 = vrot.lane.b32.xlu0 %v1653, 32
  %v1656 = vpop.permute.xlu0 %1655
  %v1658 = vadd.f32 %v1648, %v1656
  %v1659 = vtanh.pop %v1658
  %1661 = vrot.lane.b32.xlu0 %v1659, 64
  %v1662 = vpop.permute.xlu0 %1661
  %v1664 = vmul.f32 %v1647, %v1662
  %v1665 = vld [vmem:[%s547] sm:$0xff]
  %1667 = vrot.lane.b32.xlu0 %v1664, 32
  %v1668 = vpop.permute.xlu0 %1667
  %v1669 = vsel %vm202, %v1668, 0
  %1671 = vmatprep.subr.mxu0 0.0
  %1672 = vmatpush1.msra.mxu0 %v1569
  %1673 = vmatprep.subr.mxu0 0.0
  %1674 = vmatpush1.msra.mxu0 %v1570
  %1675 = vmatprep.subr.mxu0 0.0
  %1676 = vmatpush1.msra.mxu0 %v1571
  %1677 = vmatprep.subr.mxu0 0.0
  %1678 = vmatpush1.msra.mxu0 %v1572
  %1679 = vmatprep.subr.mxu0 0.0
  %1680 = vmatpush1.msra.mxu0 0.0
  %1681 = vmatprep.subr.mxu0 0.0
  %1682 = vmatpush1.msra.mxu0 0.0
  %1683 = vmatprep.subr.mxu0 0.0
  %1684 = vmatpush1.msra.mxu0 0.0
  %1685 = vmatprep.subr.mxu0 0.0
  %1686 = vmatpush1.msra.mxu0 0.0
  %1687 = vmatprep.subr.mxu0 0.0
  %1688 = vmatpush1.msra.mxu0 0.0
  %1689 = vmatprep.subr.mxu0 0.0
  %1690 = vmatpush1.msra.mxu0 0.0
  %1691 = vmatprep.subr.mxu0 0.0
  %1692 = vmatpush1.msra.mxu0 0.0
  %1693 = vmatprep.subr.mxu0 0.0
  %1694 = vmatpush1.msra.mxu0 0.0
  %1695 = vmatprep.subr.mxu0 0.0
  %1696 = vmatpush1.msra.mxu0 0.0
  %1697 = vmatprep.subr.mxu0 0.0
  %1698 = vmatpush1.msra.mxu0 0.0
  %1699 = vmatprep.subr.mxu0 0.0
  %1700 = vmatpush1.msra.mxu0 0.0
  %1701 = vmatprep.subr.mxu0 0.0
  %1702 = vmatpush1.msra.mxu0 0.0
  %1703 = vmatprep.subr.mxu0 0.0
  %1704 = vmatpush1.msra.mxu0 0.0
  %1705 = vmatprep.subr.mxu0 0.0
  %1706 = vmatpush1.msra.mxu0 0.0
  %1707 = vmatprep.subr.mxu0 0.0
  %1708 = vmatpush1.msra.mxu0 0.0
  %1709 = vmatprep.subr.mxu0 0.0
  %1710 = vmatpush1.msra.mxu0 0.0
  %1711 = vmatprep.subr.mxu0 0.0
  %1712 = vmatpush1.msra.mxu0 0.0
  %1713 = vmatprep.subr.mxu0 0.0
  %1714 = vmatpush1.msra.mxu0 0.0
  %1715 = vmatprep.subr.mxu0 0.0
  %1716 = vmatpush1.msra.mxu0 0.0
  %1717 = vmatprep.subr.mxu0 0.0
  %1718 = vmatpush1.msra.mxu0 0.0
  %1719 = vmatprep.subr.mxu0 0.0
  %1720 = vmatpush1.msra.mxu0 0.0
  %1721 = vmatprep.subr.mxu0 0.0
  %1722 = vmatpush1.msra.mxu0 0.0
  %1723 = vmatprep.subr.mxu0 0.0
  %1724 = vmatpush1.msra.mxu0 0.0
  %1725 = vmatprep.subr.mxu0 0.0
  %1726 = vmatpush1.msra.mxu0 0.0
  %1727 = vmatprep.subr.mxu0 0.0
  %1728 = vmatpush1.msra.mxu0 0.0
  %1729 = vmatprep.subr.mxu0 0.0
  %1730 = vmatpush1.msra.mxu0 0.0
  %1731 = vmatprep.subr.mxu0 0.0
  %1732 = vmatpush1.msra.mxu0 0.0
  %1733 = vmatprep.subr.mxu0 0.0
  %1734 = vmatpush1.msra.mxu0 0.0
  %1735 = vmatprep.mubr.f32.mxu0 0.0
  %1736 = vmatmul.mubr.f32.gmra.mrb[0].mxu0 %v1669
  %v1737 = vpop.f32.mrb[0].mxu0
  %v1738 = vadd.f32 0.0, %v1737
  %v1739 = vpop.f32.mrb[0].mxu0
  %1740 = vdwg.mxu0
  %v1741 = vadd.f32 %v1665, %v1738
  %v1742 = vtanh.pop %v1741
  %v1743 = vmul.f32 %v1742, 0.5
  %v1744 = vadd.f32 %v1743, 0.5
  %v1745 = vmul.f32 %v1744, %v1658
  %1747 = vrot.lane.b32.xlu0 %v1742, 64
  %v1748 = vpop.permute.xlu0 %1747
  %v1750 = vmul.f32 %v1744, %v1748
  %1752 = vrot.lane.b32.xlu0 %v1750, 32
  %v1753 = vpop.permute.xlu0 %1752
  %v1755 = vadd.f32 %v1745, %v1753
  %v1756 = vtanh.pop %v1755
  %1758 = vrot.lane.b32.xlu0 %v1756, 64
  %v1759 = vpop.permute.xlu0 %1758
  %v1761 = vmul.f32 %v1744, %v1759
  %v1762 = vld [vmem:[%s717] sm:$0xff]
  %1764 = vrot.lane.b32.xlu0 %v1761, 32
  %v1765 = vpop.permute.xlu0 %1764
  %v1766 = vsel %vm202, %v1765, 0
  %1768 = vmatprep.subr.mxu0 0.0
  %1769 = vmatpush1.msra.mxu0 %v1569
  %1770 = vmatprep.subr.mxu0 0.0
  %1771 = vmatpush1.msra.mxu0 %v1570
  %1772 = vmatprep.subr.mxu0 0.0
  %1773 = vmatpush1.msra.mxu0 %v1571
  %1774 = vmatprep.subr.mxu0 0.0
  %1775 = vmatpush1.msra.mxu0 %v1572
  %1776 = vmatprep.subr.mxu0 0.0
  %1777 = vmatpush1.msra.mxu0 0.0
  %1778 = vmatprep.subr.mxu0 0.0
  %1779 = vmatpush1.msra.mxu0 0.0
  %1780 = vmatprep.subr.mxu0 0.0
  %1781 = vmatpush1.msra.mxu0 0.0
  %1782 = vmatprep.subr.mxu0 0.0
  %1783 = vmatpush1.msra.mxu0 0.0
  %1784 = vmatprep.subr.mxu0 0.0
  %1785 = vmatpush1.msra.mxu0 0.0
  %1786 = vmatprep.subr.mxu0 0.0
  %1787 = vmatpush1.msra.mxu0 0.0
  %1788 = vmatprep.subr.mxu0 0.0
  %1789 = vmatpush1.msra.mxu0 0.0
  %1790 = vmatprep.subr.mxu0 0.0
  %1791 = vmatpush1.msra.mxu0 0.0
  %1792 = vmatprep.subr.mxu0 0.0
  %1793 = vmatpush1.msra.mxu0 0.0
  %1794 = vmatprep.subr.mxu0 0.0
  %1795 = vmatpush1.msra.mxu0 0.0
  %1796 = vmatprep.subr.mxu0 0.0
  %1797 = vmatpush1.msra.mxu0 0.0
  %1798 = vmatprep.subr.mxu0 0.0
  %1799 = vmatpush1.msra.mxu0 0.0
  %1800 = vmatprep.subr.mxu0 0.0
  %1801 = vmatpush1.msra.mxu0 0.0
  %1802 = vmatprep.subr.mxu0 0.0
  %1803 = vmatpush1.msra.mxu0 0.0
  %1804 = vmatprep.subr.mxu0 0.0
  %1805 = vmatpush1.msra.mxu0 0.0
  %1806 = vmatprep.subr.mxu0 0.0
  %1807 = vmatpush1.msra.mxu0 0.0
  %1808 = vmatprep.subr.mxu0 0.0
  %1809 = vmatpush1.msra.mxu0 0.0
  %1810 = vmatprep.subr.mxu0 0.0
  %1811 = vmatpush1.msra.mxu0 0.0
  %1812 = vmatprep.subr.mxu0 0.0
  %1813 = vmatpush1.msra.mxu0 0.0
  %1814 = vmatprep.subr.mxu0 0.0
  %1815 = vmatpush1.msra.mxu0 0.0
  %1816 = vmatprep.subr.mxu0 0.0
  %1817 = vmatpush1.msra.mxu0 0.0
  %1818 = vmatprep.subr.mxu0 0.0
  %1819 = vmatpush1.msra.mxu0 0.0
  %1820 = vmatprep.subr.mxu0 0.0
  %1821 = vmatpush1.msra.mxu0 0.0
  %1822 = vmatprep.subr.mxu0 0.0
  %1823 = vmatpush1.msra.mxu0 0.0
  %1824 = vmatprep.subr.mxu0 0.0
  %1825 = vmatpush1.msra.mxu0 0.0
  %1826 = vmatprep.subr.mxu0 0.0
  %1827 = vmatpush1.msra.mxu0 0.0
  %1828 = vmatprep.subr.mxu0 0.0
  %1829 = vmatpush1.msra.mxu0 0.0
  %1830 = vmatprep.subr.mxu0 0.0
  %1831 = vmatpush1.msra.mxu0 0.0
  %1832 = vmatprep.mubr.f32.mxu0 0.0
  %1833 = vmatmul.mubr.f32.gmra.mrb[0].mxu0 %v1766
  %v1834 = vpop.f32.mrb[0].mxu0
  %v1835 = vadd.f32 0.0, %v1834
  %v1836 = vpop.f32.mrb[0].mxu0
  %1837 = vdwg.mxu0
  %v1838 = vadd.f32 %v1762, %v1835
  %v1839 = vtanh.pop %v1838
  %v1840 = vmul.f32 %v1839, 0.5
  %v1841 = vadd.f32 %v1840, 0.5
  %v1842 = vmul.f32 %v1841, %v1755
  %1844 = vrot.lane.b32.xlu0 %v1839, 64
  %v1845 = vpop.permute.xlu0 %1844
  %v1847 = vmul.f32 %v1841, %v1845
  %1849 = vrot.lane.b32.xlu0 %v1847, 32
  %v1850 = vpop.permute.xlu0 %1849
  %v1852 = vadd.f32 %v1842, %v1850
  %v1853 = vtanh.pop %v1852
  %1855 = vrot.lane.b32.xlu0 %v1853, 64
  %v1856 = vpop.permute.xlu0 %1855
  %v1858 = vmul.f32 %v1841, %v1856
  %v1859 = vld [vmem:[%s887] sm:$0xff]
  %1861 = vrot.lane.b32.xlu0 %v1858, 32
  %v1862 = vpop.permute.xlu0 %1861
  %v1863 = vsel %vm202, %v1862, 0
  %1865 = vmatprep.subr.mxu0 0.0
  %1866 = vmatpush1.msra.mxu0 %v1569
  %1867 = vmatprep.subr.mxu0 0.0
  %1868 = vmatpush1.msra.mxu0 %v1570
  %1869 = vmatprep.subr.mxu0 0.0
  %1870 = vmatpush1.msra.mxu0 %v1571
  %1871 = vmatprep.subr.mxu0 0.0
  %1872 = vmatpush1.msra.mxu0 %v1572
  %1873 = vmatprep.subr.mxu0 0.0
  %1874 = vmatpush1.msra.mxu0 0.0
  %1875 = vmatprep.subr.mxu0 0.0
  %1876 = vmatpush1.msra.mxu0 0.0
  %1877 = vmatprep.subr.mxu0 0.0
  %1878 = vmatpush1.msra.mxu0 0.0
  %1879 = vmatprep.subr.mxu0 0.0
  %1880 = vmatpush1.msra.mxu0 0.0
  %1881 = vmatprep.subr.mxu0 0.0
  %1882 = vmatpush1.msra.mxu0 0.0
  %1883 = vmatprep.subr.mxu0 0.0
  %1884 = vmatpush1.msra.mxu0 0.0
  %1885 = vmatprep.subr.mxu0 0.0
  %1886 = vmatpush1.msra.mxu0 0.0
  %1887 = vmatprep.subr.mxu0 0.0
  %1888 = vmatpush1.msra.mxu0 0.0
  %1889 = vmatprep.subr.mxu0 0.0
  %1890 = vmatpush1.msra.mxu0 0.0
  %1891 = vmatprep.subr.mxu0 0.0
  %1892 = vmatpush1.msra.mxu0 0.0
  %1893 = vmatprep.subr.mxu0 0.0
  %1894 = vmatpush1.msra.mxu0 0.0
  %1895 = vmatprep.subr.mxu0 0.0
  %1896 = vmatpush1.msra.mxu0 0.0
  %1897 = vmatprep.subr.mxu0 0.0
  %1898 = vmatpush1.msra.mxu0 0.0
  %1899 = vmatprep.subr.mxu0 0.0
  %1900 = vmatpush1.msra.mxu0 0.0
  %1901 = vmatprep.subr.mxu0 0.0
  %1902 = vmatpush1.msra.mxu0 0.0
  %1903 = vmatprep.subr.mxu0 0.0
  %1904 = vmatpush1.msra.mxu0 0.0
  %1905 = vmatprep.subr.mxu0 0.0
  %1906 = vmatpush1.msra.mxu0 0.0
  %1907 = vmatprep.subr.mxu0 0.0
  %1908 = vmatpush1.msra.mxu0 0.0
  %1909 = vmatprep.subr.mxu0 0.0
  %1910 = vmatpush1.msra.mxu0 0.0
  %1911 = vmatprep.subr.mxu0 0.0
  %1912 = vmatpush1.msra.mxu0 0.0
  %1913 = vmatprep.subr.mxu0 0.0
  %1914 = vmatpush1.msra.mxu0 0.0
  %1915 = vmatprep.subr.mxu0 0.0
  %1916 = vmatpush1.msra.mxu0 0.0
  %1917 = vmatprep.subr.mxu0 0.0
  %1918 = vmatpush1.msra.mxu0 0.0
  %1919 = vmatprep.subr.mxu0 0.0
  %1920 = vmatpush1.msra.mxu0 0.0
  %1921 = vmatprep.subr.mxu0 0.0
  %1922 = vmatpush1.msra.mxu0 0.0
  %1923 = vmatprep.subr.mxu0 0.0
  %1924 = vmatpush1.msra.mxu0 0.0
  %1925 = vmatprep.subr.mxu0 0.0
  %1926 = vmatpush1.msra.mxu0 0.0
  %1927 = vmatprep.subr.mxu0 0.0
  %1928 = vmatpush1.msra.mxu0 0.0
  %1929 = vmatprep.mubr.f32.mxu0 0.0
  %1930 = vmatmul.mubr.f32.gmra.mrb[0].mxu0 %v1863
  %v1931 = vpop.f32.mrb[0].mxu0
  %v1932 = vadd.f32 0.0, %v1931
  %v1933 = vpop.f32.mrb[0].mxu0
  %1934 = vdwg.mxu0
  %v1935 = vadd.f32 %v1859, %v1932
  %v1936 = vtanh.pop %v1935
  %v1937 = vmul.f32 %v1936, 0.5
  %v1938 = vadd.f32 %v1937, 0.5
  %v1939 = vmul.f32 %v1938, %v1852
  %1941 = vrot.lane.b32.xlu0 %v1936, 64
  %v1942 = vpop.permute.xlu0 %1941
  %v1944 = vmul.f32 %v1938, %v1942
  %1946 = vrot.lane.b32.xlu0 %v1944, 32
  %v1947 = vpop.permute.xlu0 %1946
  %v1949 = vadd.f32 %v1939, %v1947
  %v1950 = vtanh.pop %v1949
  %1952 = vrot.lane.b32.xlu0 %v1950, 64
  %v1953 = vpop.permute.xlu0 %1952
  %v1955 = vmul.f32 %v1938, %v1953
  %v1956 = vld [vmem:[%s1057] sm:$0xff]
  %1958 = vrot.lane.b32.xlu0 %v1955, 32
  %v1959 = vpop.permute.xlu0 %1958
  %v1960 = vsel %vm202, %v1959, 0
  %1962 = vmatprep.subr.mxu0 0.0
  %1963 = vmatpush1.msra.mxu0 %v1569
  %1964 = vmatprep.subr.mxu0 0.0
  %1965 = vmatpush1.msra.mxu0 %v1570
  %1966 = vmatprep.subr.mxu0 0.0
  %1967 = vmatpush1.msra.mxu0 %v1571
  %1968 = vmatprep.subr.mxu0 0.0
  %1969 = vmatpush1.msra.mxu0 %v1572
  %1970 = vmatprep.subr.mxu0 0.0
  %1971 = vmatpush1.msra.mxu0 0.0
  %1972 = vmatprep.subr.mxu0 0.0
  %1973 = vmatpush1.msra.mxu0 0.0
  %1974 = vmatprep.subr.mxu0 0.0
  %1975 = vmatpush1.msra.mxu0 0.0
  %1976 = vmatprep.subr.mxu0 0.0
  %1977 = vmatpush1.msra.mxu0 0.0
  %1978 = vmatprep.subr.mxu0 0.0
  %1979 = vmatpush1.msra.mxu0 0.0
  %1980 = vmatprep.subr.mxu0 0.0
  %1981 = vmatpush1.msra.mxu0 0.0
  %1982 = vmatprep.subr.mxu0 0.0
  %1983 = vmatpush1.msra.mxu0 0.0
  %1984 = vmatprep.subr.mxu0 0.0
  %1985 = vmatpush1.msra.mxu0 0.0
  %1986 = vmatprep.subr.mxu0 0.0
  %1987 = vmatpush1.msra.mxu0 0.0
  %1988 = vmatprep.subr.mxu0 0.0
  %1989 = vmatpush1.msra.mxu0 0.0
  %1990 = vmatprep.subr.mxu0 0.0
  %1991 = vmatpush1.msra.mxu0 0.0
  %1992 = vmatprep.subr.mxu0 0.0
  %1993 = vmatpush1.msra.mxu0 0.0
  %1994 = vmatprep.subr.mxu0 0.0
  %1995 = vmatpush1.msra.mxu0 0.0
  %1996 = vmatprep.subr.mxu0 0.0
  %1997 = vmatpush1.msra.mxu0 0.0
  %1998 = vmatprep.subr.mxu0 0.0
  %1999 = vmatpush1.msra.mxu0 0.0
  %2000 = vmatprep.subr.mxu0 0.0
  %2001 = vmatpush1.msra.mxu0 0.0
  %2002 = vmatprep.subr.mxu0 0.0
  %2003 = vmatpush1.msra.mxu0 0.0
  %2004 = vmatprep.subr.mxu0 0.0
  %2005 = vmatpush1.msra.mxu0 0.0
  %2006 = vmatprep.subr.mxu0 0.0
  %2007 = vmatpush1.msra.mxu0 0.0
  %2008 = vmatprep.subr.mxu0 0.0
  %2009 = vmatpush1.msra.mxu0 0.0
  %2010 = vmatprep.subr.mxu0 0.0
  %2011 = vmatpush1.msra.mxu0 0.0
  %2012 = vmatprep.subr.mxu0 0.0
  %2013 = vmatpush1.msra.mxu0 0.0
  %2014 = vmatprep.subr.mxu0 0.0
  %2015 = vmatpush1.msra.mxu0 0.0
  %2016 = vmatprep.subr.mxu0 0.0
  %2017 = vmatpush1.msra.mxu0 0.0
  %2018 = vmatprep.subr.mxu0 0.0
  %2019 = vmatpush1.msra.mxu0 0.0
  %2020 = vmatprep.subr.mxu0 0.0
  %2021 = vmatpush1.msra.mxu0 0.0
  %2022 = vmatprep.subr.mxu0 0.0
  %2023 = vmatpush1.msra.mxu0 0.0
  %2024 = vmatprep.subr.mxu0 0.0
  %2025 = vmatpush1.msra.mxu0 0.0
  %2026 = vmatprep.mubr.f32.mxu0 0.0
  %2027 = vmatmul.mubr.f32.gmra.mrb[0].mxu0 %v1960
  %v2028 = vpop.f32.mrb[0].mxu0
  %v2029 = vadd.f32 0.0, %v2028
  %v2030 = vpop.f32.mrb[0].mxu0
  %2031 = vdwg.mxu0
  %v2032 = vadd.f32 %v1956, %v2029
  %v2033 = vtanh.pop %v2032
  %v2034 = vmul.f32 %v2033, 0.5
  %v2035 = vadd.f32 %v2034, 0.5
  %v2036 = vmul.f32 %v2035, %v1949
  %2038 = vrot.lane.b32.xlu0 %v2033, 64
  %v2039 = vpop.permute.xlu0 %2038
  %v2041 = vmul.f32 %v2035, %v2039
  %2043 = vrot.lane.b32.xlu0 %v2041, 32
  %v2044 = vpop.permute.xlu0 %2043
  %v2046 = vadd.f32 %v2036, %v2044
  %v2047 = vtanh.pop %v2046
  %2049 = vrot.lane.b32.xlu0 %v2047, 64
  %v2050 = vpop.permute.xlu0 %2049
  %v2052 = vmul.f32 %v2035, %v2050
  %v2053 = vld [vmem:[%s1227] sm:$0xff]
  %2055 = vrot.lane.b32.xlu0 %v2052, 32
  %v2056 = vpop.permute.xlu0 %2055
  %v2057 = vsel %vm202, %v2056, 0
  %2059 = vmatprep.subr.mxu0 0.0
  %2060 = vmatpush1.msra.mxu0 %v1569
  %2061 = vmatprep.subr.mxu0 0.0
  %2062 = vmatpush1.msra.mxu0 %v1570
  %2063 = vmatprep.subr.mxu0 0.0
  %2064 = vmatpush1.msra.mxu0 %v1571
  %2065 = vmatprep.subr.mxu0 0.0
  %2066 = vmatpush1.msra.mxu0 %v1572
  %2067 = vmatprep.subr.mxu0 0.0
  %2068 = vmatpush1.msra.mxu0 0.0
  %2069 = vmatprep.subr.mxu0 0.0
  %2070 = vmatpush1.msra.mxu0 0.0
  %2071 = vmatprep.subr.mxu0 0.0
  %2072 = vmatpush1.msra.mxu0 0.0
  %2073 = vmatprep.subr.mxu0 0.0
  %2074 = vmatpush1.msra.mxu0 0.0
  %2075 = vmatprep.subr.mxu0 0.0
  %2076 = vmatpush1.msra.mxu0 0.0
  %2077 = vmatprep.subr.mxu0 0.0
  %2078 = vmatpush1.msra.mxu0 0.0
  %2079 = vmatprep.subr.mxu0 0.0
  %2080 = vmatpush1.msra.mxu0 0.0
  %2081 = vmatprep.subr.mxu0 0.0
  %2082 = vmatpush1.msra.mxu0 0.0
  %2083 = vmatprep.subr.mxu0 0.0
  %2084 = vmatpush1.msra.mxu0 0.0
  %2085 = vmatprep.subr.mxu0 0.0
  %2086 = vmatpush1.msra.mxu0 0.0
  %2087 = vmatprep.subr.mxu0 0.0
  %2088 = vmatpush1.msra.mxu0 0.0
  %2089 = vmatprep.subr.mxu0 0.0
  %2090 = vmatpush1.msra.mxu0 0.0
  %2091 = vmatprep.subr.mxu0 0.0
  %2092 = vmatpush1.msra.mxu0 0.0
  %2093 = vmatprep.subr.mxu0 0.0
  %2094 = vmatpush1.msra.mxu0 0.0
  %2095 = vmatprep.subr.mxu0 0.0
  %2096 = vmatpush1.msra.mxu0 0.0
  %2097 = vmatprep.subr.mxu0 0.0
  %2098 = vmatpush1.msra.mxu0 0.0
  %2099 = vmatprep.subr.mxu0 0.0
  %2100 = vmatpush1.msra.mxu0 0.0
  %2101 = vmatprep.subr.mxu0 0.0
  %2102 = vmatpush1.msra.mxu0 0.0
  %2103 = vmatprep.subr.mxu0 0.0
  %2104 = vmatpush1.msra.mxu0 0.0
  %2105 = vmatprep.subr.mxu0 0.0
  %2106 = vmatpush1.msra.mxu0 0.0
  %2107 = vmatprep.subr.mxu0 0.0
  %2108 = vmatpush1.msra.mxu0 0.0
  %2109 = vmatprep.subr.mxu0 0.0
  %2110 = vmatpush1.msra.mxu0 0.0
  %2111 = vmatprep.subr.mxu0 0.0
  %2112 = vmatpush1.msra.mxu0 0.0
  %2113 = vmatprep.subr.mxu0 0.0
  %2114 = vmatpush1.msra.mxu0 0.0
  %2115 = vmatprep.subr.mxu0 0.0
  %2116 = vmatpush1.msra.mxu0 0.0
  %2117 = vmatprep.subr.mxu0 0.0
  %2118 = vmatpush1.msra.mxu0 0.0
  %2119 = vmatprep.subr.mxu0 0.0
  %2120 = vmatpush1.msra.mxu0 0.0
  %2121 = vmatprep.subr.mxu0 0.0
  %2122 = vmatpush1.msra.mxu0 0.0
  %2123 = vmatprep.mubr.f32.mxu0 0.0
  %2124 = vmatmul.mubr.f32.gmra.mrb[0].mxu0 %v2057
  %v2125 = vpop.f32.mrb[0].mxu0
  %v2126 = vadd.f32 0.0, %v2125
  %v2127 = vpop.f32.mrb[0].mxu0
  %2128 = vdwg.mxu0
  %v2129 = vadd.f32 %v2053, %v2126
  %v2130 = vtanh.pop %v2129
  %v2131 = vmul.f32 %v2130, 0.5
  %v2132 = vadd.f32 %v2131, 0.5
  %v2133 = vmul.f32 %v2132, %v2046
  %2135 = vrot.lane.b32.xlu0 %v2130, 64
  %v2136 = vpop.permute.xlu0 %2135
  %v2138 = vmul.f32 %v2132, %v2136
  %2140 = vrot.lane.b32.xlu0 %v2138, 32
  %v2141 = vpop.permute.xlu0 %2140
  %v2143 = vadd.f32 %v2133, %v2141
  %v2144 = vtanh.pop %v2143
  %2146 = vrot.lane.b32.xlu0 %v2144, 64
  %v2147 = vpop.permute.xlu0 %2146
  %v2149 = vmul.f32 %v2132, %v2147
  %v2150 = vld [vmem:[%s1397] sm:$0xff]
  %2152 = vrot.lane.b32.xlu0 %v2149, 32
  %v2153 = vpop.permute.xlu0 %2152
  %v2154 = vsel %vm202, %v2153, 0
  %2156 = vmatprep.subr.mxu0 0.0
  %2157 = vmatpush1.msra.mxu0 %v1569
  %2158 = vmatprep.subr.mxu0 0.0
  %2159 = vmatpush1.msra.mxu0 %v1570
  %2160 = vmatprep.subr.mxu0 0.0
  %2161 = vmatpush1.msra.mxu0 %v1571
  %2162 = vmatprep.subr.mxu0 0.0
  %2163 = vmatpush1.msra.mxu0 %v1572
  %2164 = vmatprep.subr.mxu0 0.0
  %2165 = vmatpush1.msra.mxu0 0.0
  %2166 = vmatprep.subr.mxu0 0.0
  %2167 = vmatpush1.msra.mxu0 0.0
  %2168 = vmatprep.subr.mxu0 0.0
  %2169 = vmatpush1.msra.mxu0 0.0
  %2170 = vmatprep.subr.mxu0 0.0
  %2171 = vmatpush1.msra.mxu0 0.0
  %2172 = vmatprep.subr.mxu0 0.0
  %2173 = vmatpush1.msra.mxu0 0.0
  %2174 = vmatprep.subr.mxu0 0.0
  %2175 = vmatpush1.msra.mxu0 0.0
  %2176 = vmatprep.subr.mxu0 0.0
  %2177 = vmatpush1.msra.mxu0 0.0
  %2178 = vmatprep.subr.mxu0 0.0
  %2179 = vmatpush1.msra.mxu0 0.0
  %2180 = vmatprep.subr.mxu0 0.0
  %2181 = vmatpush1.msra.mxu0 0.0
  %2182 = vmatprep.subr.mxu0 0.0
  %2183 = vmatpush1.msra.mxu0 0.0
  %2184 = vmatprep.subr.mxu0 0.0
  %2185 = vmatpush1.msra.mxu0 0.0
  %2186 = vmatprep.subr.mxu0 0.0
  %2187 = vmatpush1.msra.mxu0 0.0
  %2188 = vmatprep.subr.mxu0 0.0
  %2189 = vmatpush1.msra.mxu0 0.0
  %2190 = vmatprep.subr.mxu0 0.0
  %2191 = vmatpush1.msra.mxu0 0.0
  %2192 = vmatprep.subr.mxu0 0.0
  %2193 = vmatpush1.msra.mxu0 0.0
  %2194 = vmatprep.subr.mxu0 0.0
  %2195 = vmatpush1.msra.mxu0 0.0
  %2196 = vmatprep.subr.mxu0 0.0
  %2197 = vmatpush1.msra.mxu0 0.0
  %2198 = vmatprep.subr.mxu0 0.0
  %2199 = vmatpush1.msra.mxu0 0.0
  %2200 = vmatprep.subr.mxu0 0.0
  %2201 = vmatpush1.msra.mxu0 0.0
  %2202 = vmatprep.subr.mxu0 0.0
  %2203 = vmatpush1.msra.mxu0 0.0
  %2204 = vmatprep.subr.mxu0 0.0
  %2205 = vmatpush1.msra.mxu0 0.0
  %2206 = vmatprep.subr.mxu0 0.0
  %2207 = vmatpush1.msra.mxu0 0.0
  %2208 = vmatprep.subr.mxu0 0.0
  %2209 = vmatpush1.msra.mxu0 0.0
  %2210 = vmatprep.subr.mxu0 0.0
  %2211 = vmatpush1.msra.mxu0 0.0
  %2212 = vmatprep.subr.mxu0 0.0
  %2213 = vmatpush1.msra.mxu0 0.0
  %2214 = vmatprep.subr.mxu0 0.0
  %2215 = vmatpush1.msra.mxu0 0.0
  %2216 = vmatprep.subr.mxu0 0.0
  %2217 = vmatpush1.msra.mxu0 0.0
  %2218 = vmatprep.subr.mxu0 0.0
  %2219 = vmatpush1.msra.mxu0 0.0
  %2220 = vmatprep.mubr.f32.mxu0 0.0
  %2221 = vmatmul.mubr.f32.gmra.mrb[0].mxu0 %v2154
  %v2222 = vpop.f32.mrb[0].mxu0
  %v2223 = vadd.f32 0.0, %v2222
  %v2224 = vpop.f32.mrb[0].mxu0
  %2225 = vdwg.mxu0
  %v2226 = vadd.f32 %v2150, %v2223
  %v2227 = vtanh.pop %v2226
  %v2228 = vmul.f32 %v2227, 0.5
  %v2229 = vadd.f32 %v2228, 0.5
  %v2230 = vmul.f32 %v2229, %v2143
  %2232 = vrot.lane.b32.xlu0 %v2227, 64
  %v2233 = vpop.permute.xlu0 %2232
  %v2235 = vmul.f32 %v2229, %v2233
  %2237 = vrot.lane.b32.xlu0 %v2235, 32
  %v2238 = vpop.permute.xlu0 %2237
  %v2240 = vadd.f32 %v2230, %v2238
  %v2241 = vtanh.pop %v2240
  %2243 = vrot.lane.b32.xlu0 %v2241, 64
  %v2244 = vpop.permute.xlu0 %2243
  %v2246 = vmul.f32 %v2229, %v2244
  %v2247 = vld [vmem:[%s1567] sm:$0xff]
  %2249 = vrot.lane.b32.xlu0 %v2246, 32
  %v2250 = vpop.permute.xlu0 %2249
  %v2251 = vsel %vm202, %v2250, 0
  %2253 = vmatprep.subr.mxu0 0.0
  %2254 = vmatpush1.msra.mxu0 %v1569
  %2255 = vmatprep.subr.mxu0 0.0
  %2256 = vmatpush1.msra.mxu0 %v1570
  %2257 = vmatprep.subr.mxu0 0.0
  %2258 = vmatpush1.msra.mxu0 %v1571
  %2259 = vmatprep.subr.mxu0 0.0
  %2260 = vmatpush1.msra.mxu0 %v1572
  %2261 = vmatprep.subr.mxu0 0.0
  %2262 = vmatpush1.msra.mxu0 0.0
  %2263 = vmatprep.subr.mxu0 0.0
  %2264 = vmatpush1.msra.mxu0 0.0
  %2265 = vmatprep.subr.mxu0 0.0
  %2266 = vmatpush1.msra.mxu0 0.0
  %2267 = vmatprep.subr.mxu0 0.0
  %2268 = vmatpush1.msra.mxu0 0.0
  %2269 = vmatprep.subr.mxu0 0.0
  %2270 = vmatpush1.msra.mxu0 0.0
  %2271 = vmatprep.subr.mxu0 0.0
  %2272 = vmatpush1.msra.mxu0 0.0
  %2273 = vmatprep.subr.mxu0 0.0
  %2274 = vmatpush1.msra.mxu0 0.0
  %2275 = vmatprep.subr.mxu0 0.0
  %2276 = vmatpush1.msra.mxu0 0.0
  %2277 = vmatprep.subr.mxu0 0.0
  %2278 = vmatpush1.msra.mxu0 0.0
  %2279 = vmatprep.subr.mxu0 0.0
  %2280 = vmatpush1.msra.mxu0 0.0
  %2281 = vmatprep.subr.mxu0 0.0
  %2282 = vmatpush1.msra.mxu0 0.0
  %2283 = vmatprep.subr.mxu0 0.0
  %2284 = vmatpush1.msra.mxu0 0.0
  %2285 = vmatprep.subr.mxu0 0.0
  %2286 = vmatpush1.msra.mxu0 0.0
  %2287 = vmatprep.subr.mxu0 0.0
  %2288 = vmatpush1.msra.mxu0 0.0
  %2289 = vmatprep.subr.mxu0 0.0
  %2290 = vmatpush1.msra.mxu0 0.0
  %2291 = vmatprep.subr.mxu0 0.0
  %2292 = vmatpush1.msra.mxu0 0.0
  %2293 = vmatprep.subr.mxu0 0.0
  %2294 = vmatpush1.msra.mxu0 0.0
  %2295 = vmatprep.subr.mxu0 0.0
  %2296 = vmatpush1.msra.mxu0 0.0
  %2297 = vmatprep.subr.mxu0 0.0
  %2298 = vmatpush1.msra.mxu0 0.0
  %2299 = vmatprep.subr.mxu0 0.0
  %2300 = vmatpush1.msra.mxu0 0.0
  %2301 = vmatprep.subr.mxu0 0.0
  %2302 = vmatpush1.msra.mxu0 0.0
  %2303 = vmatprep.subr.mxu0 0.0
  %2304 = vmatpush1.msra.mxu0 0.0
  %2305 = vmatprep.subr.mxu0 0.0
  %2306 = vmatpush1.msra.mxu0 0.0
  %2307 = vmatprep.subr.mxu0 0.0
  %2308 = vmatpush1.msra.mxu0 0.0
  %2309 = vmatprep.subr.mxu0 0.0
  %2310 = vmatpush1.msra.mxu0 0.0
  %2311 = vmatprep.subr.mxu0 0.0
  %2312 = vmatpush1.msra.mxu0 0.0
  %2313 = vmatprep.subr.mxu0 0.0
  %2314 = vmatpush1.msra.mxu0 0.0
  %2315 = vmatprep.subr.mxu0 0.0
  %2316 = vmatpush1.msra.mxu0 0.0
  %2317 = vmatprep.mubr.f32.mxu0 0.0
  %2318 = vmatmul.mubr.f32.gmra.mrb[0].mxu0 %v2251
  %v2319 = vpop.f32.mrb[0].mxu0
  %v2320 = vadd.f32 0.0, %v2319
  %v2321 = vpop.f32.mrb[0].mxu0
  %2322 = vdwg.mxu0
  %v2323 = vadd.f32 %v2247, %v2320
  %v2324 = vtanh.pop %v2323
  %v2325 = vmul.f32 %v2324, 0.5
  %v2326 = vadd.f32 %v2325, 0.5
  %v2327 = vmul.f32 %v2326, %v2240
  %2329 = vrot.lane.b32.xlu0 %v2324, 64
  %v2330 = vpop.permute.xlu0 %2329
  %v2332 = vmul.f32 %v2326, %v2330
  %2334 = vrot.lane.b32.xlu0 %v2332, 32
  %v2335 = vpop.permute.xlu0 %2334
  %v2337 = vadd.f32 %v2327, %v2335
  %v2338 = vtanh.pop %v2337
  %2340 = vrot.lane.b32.xlu0 %v2338, 64
  %v2341 = vpop.permute.xlu0 %2340
  %v2343 = vmul.f32 %v2326, %v2341
  %v2344 = vld [vmem:[%s7] sm:$0x1]
  %v2346 = vlaneseq
  %v2347 = vshrl.u32 %v2346, 7
  %v2348 = vsub.s32 0, %v2347
  %v2349 = vrot.slane %v2344, %v2348
  %2350 = vrot.lane.b32.xlu0 %v2349, 96
  %v2351 = vpop.permute.xlu0 %2350
  %v2353 = vmul.f32 %v2343, %v2351
  %2355 = vrot.lane.b32.xlu0 %v2353, 32
  %v2356 = vpop.permute.xlu0 %2355
  %v2358 = vsel %vm202, %v2356, 0.0
  %2359 = vadd.xlane.f32.xlu0 %v2358
  %v2360 = vpop.xlane.xlu0 %2359
  %v2361 = vld [vmem:[#allocation4] sm:$0x1]
  %v2363 = vlaneseq
  %v2364 = vshrl.u32 %v2363, 7
  %v2365 = vsub.s32 0, %v2364
  %v2366 = vrot.slane %v2361, %v2365
  %v2368 = vadd.f32 %v2360, %v2366
  %vm2369 = vcmask 7168
  %2370 = vst.msk [vmem:[%s9] sm:$0xff] %vm2369, %v2368
  // Predicated region
  $region38: #{lstm_model_forward.1} parent=0 // pred_check
    _
  $region39: #{lstm_model_forward.1} parent=0 // pred_check_branch
    %2372 = sbr.rel (0) target = $region41
  $region40: #{lstm_model_forward.1} parent=0 // pred_region
    _
  $region41: #{lstm_model_forward.1} parent=0 // pred_fallthru
    _
  // Predicated region
  $region42: #{lstm_model_forward.1} parent=0 // pred_check
    _
  $region43: #{lstm_model_forward.1} parent=0 // pred_check_branch
    %2374 = sbr.rel (0) target = $region45
  $region44: #{lstm_model_forward.1} parent=0 // pred_region
    _
  $region45: #{lstm_model_forward.1} parent=0 // pred_fallthru
    _

</llo_original>
